<compile_context>
chip_gen: v5e
topology: v5e:2x2
jax: 0.10.0
libtpu: 0.0.40
codegen_flags: <defaults>
</compile_context>

<pallas_src>
import functools

import jax
import jax.numpy as jnp
from jax import lax
from jax.experimental import pallas as pl
from jax.experimental.pallas import tpu as pltpu


def _bottleneck_kernel(x_hbm, w1_ref, w2_ref, w3_ref, b1_ref, b2_ref, b3_ref,
                       kl_ref, kr_ref, out_ref, xbuf, buf, cp_sem,
                       *, TH, W, Cin, P, d, HT):
    """One (batch, row-tile) step of the bottleneck.

    x_hbm   : (N, H, W, Cin) bf16 HBM ref (memory_space=pl.ANY)
    w1_ref  : (Cin, P)       bf16  1x1 conv #1, BN1 scale folded in
    w2_ref  : (3, 3P, P)     bf16  3x3 dilated conv, [ky] -> stacked kx taps
    w3_ref  : (P, 4P)        bf16  1x1 conv #3, BN3 scale folded in
    b*_ref  : (1, C)         f32   folded BN biases
    kl/kr   : (Hh*W, 1)      f32   column keep-masks (left / right shift)
    out_ref : (1, TH, W, 4P) bf16
    xbuf    : (TH+2d, W, Cin) bf16 VMEM halo slab
    buf     : (Hh*W, 3P)      bf16 staged conv2 input [left | center | right]
    cp_sem  : DMA semaphore
    """
    Hh = TH + 2 * d
    M_h = Hh * W                       # flat rows incl. halo
    M = TH * W                         # flat output positions
    Cout = 4 * P
    H = HT * TH

    n = pl.program_id(0)
    h = pl.program_id(1)

    # ---- fetch the x halo slab straight from HBM (no wrapper-side windows) --
    def fetch(src_row, dst_row, nrows):
        cp = pltpu.make_async_copy(x_hbm.at[n, pl.ds(src_row, nrows)],
                                   xbuf.at[pl.ds(dst_row, nrows)],
                                   cp_sem)
        cp.start()
        cp.wait()

    zx = jnp.zeros((d, W, Cin), jnp.bfloat16)
    if HT == 1:
        fetch(0, d, TH)
        xbuf[0:d] = zx
        xbuf[TH + d:Hh] = zx
    else:
        @pl.when(h == 0)
        def _():
            fetch(0, d, TH + d)
            xbuf[0:d] = zx                      # above-image rows

        @pl.when(h == HT - 1)
        def _():
            fetch(H - (TH + d), 0, TH + d)
            xbuf[TH + d:Hh] = zx                # below-image rows

        @pl.when(jnp.logical_and(h > 0, h < HT - 1))
        def _():
            fetch(h * TH - d, 0, Hh)

    # ---- conv1 (1x1) + bias + ReLU over tile + halo (halo recompute) --------
    h1 = jnp.dot(xbuf[...].reshape(M_h, Cin), w1_ref[...],
                 preferred_element_type=jnp.float32)
    h1 = jnp.maximum(h1 + b1_ref[...], 0.0).astype(jnp.bfloat16)     # (M_h, P)

    # ---- stage conv2 input: [left-shift | center | right-shift] planes ------
    # left plane  : value at (y, x-d)   (zero where x <  d  -> keep_l mask)
    # right plane : value at (y, x+d)   (zero where x >= W-d -> keep_r mask)
    zp = jnp.zeros((d, P), jnp.bfloat16)
    sh_l = jnp.concatenate([zp, h1[:M_h - d]], axis=0)
    sh_r = jnp.concatenate([h1[d:], zp], axis=0)
    keep_l = kl_ref[...] > 0.5
    keep_r = kr_ref[...] > 0.5
    buf[:, 0:P] = jnp.where(keep_l, sh_l, jnp.zeros_like(sh_l))
    buf[:, P:2 * P] = h1
    buf[:, 2 * P:3 * P] = jnp.where(keep_r, sh_r, jnp.zeros_like(sh_r))

    # Halo rows that fall outside the image are conv2 zero-padding: overwrite
    # the relu(bias) rows with zeros (only at the first / last row tile).
    zstrip = jnp.zeros((d * W, 3 * P), jnp.bfloat16)

    @pl.when(h == 0)
    def _():
        buf[0:d * W, :] = zstrip

    @pl.when(h == HT - 1)
    def _():
        buf[(TH + d) * W:M_h, :] = zstrip

    # ---- conv2: 3 matmuls of K = 3P from aligned row-offset slices -----------
    acc = jnp.dot(buf[0:M, :], w2_ref[0], preferred_element_type=jnp.float32)
    acc = acc + jnp.dot(buf[d * W:d * W + M, :], w2_ref[1],
                        preferred_element_type=jnp.float32)
    acc = acc + jnp.dot(buf[2 * d * W:2 * d * W + M, :], w2_ref[2],
                        preferred_element_type=jnp.float32)
    h2 = jnp.maximum(acc + b2_ref[...], 0.0).astype(jnp.bfloat16)     # (M, P)

    # ---- conv3 (1x1) + bias + residual + ReLU (f32 math, bf16 store) --------
    h3 = jnp.dot(h2, w3_ref[...], preferred_element_type=jnp.float32)
    h3 = h3 + b3_ref[...]
    res = xbuf[d:d + TH].reshape(M, Cin).astype(jnp.float32)
    out = jnp.maximum(h3 + res, 0.0).astype(jnp.bfloat16)
    out_ref[0] = out.reshape(TH, W, Cout)


def _pick_row_tile(H, d, requested):
    if requested is not None:
        rt = int(requested)
        assert H % rt == 0, "row_tile must divide H"
        assert rt >= d, "row_tile must be >= dilation (halo covers d rows)"
        return rt
    # Prefer the biggest tile that divides H (amortizes per-step overhead and
    # the (TH+2d)/TH conv1 halo recompute).  On v7x cap this at 8..16 for
    # production channel counts (64 MiB VMEM).
    for t in (32, 16, 8, 4, 2, 1):
        if t <= H and H % t == 0 and t >= d:
            return t
    return H


def bottleneck_pallas(x_nhwc, w1_oihw, w2_oihw, w3_oihw,
                      s1, b1, s2, b2, s3, b3, *, dilation=1, row_tile=None):
    """Bottleneck forward (stride=1, downsample=None), eval-mode BN.

    x_nhwc : [N, H, W, Cin] (any float dtype; used as bf16).  Returns
             [N, H, W, 4*planes] bf16 (NHWC in / NHWC out — no transposes).
    w*_oihw: PyTorch conv weights (OIHW, bias=False).
    s*/b*  : folded BN scale / bias per layer (gamma/sqrt(var+eps), beta-mean*scale).
    """
    N, H, W, Cin = x_nhwc.shape
    P = w1_oihw.shape[0]
    Cout = 4 * P
    d = int(dilation)
    assert w1_oihw.shape == (P, Cin, 1, 1)
    assert w2_oihw.shape == (P, P, 3, 3)
    assert w3_oihw.shape == (Cout, P, 1, 1)
    assert Cin == Cout, "stride=1 / downsample=None requires inplanes == planes*4"
    assert 1 <= d < W
    assert W % 8 == 0, "pad W to a multiple of 8 (aligned sublane layout)"

    TH = _pick_row_tile(H, d, row_tile)
    HT = H // TH
    Hh = TH + 2 * d
    M_h = Hh * W

    # ---- fold frozen-BN scales into the conv weights, cast to bf16 ----------
    w1k = (jnp.transpose(w1_oihw[:, :, 0, 0], (1, 0)) * s1[None, :]
           ).astype(jnp.bfloat16)                                    # (Cin, P)
    w2t = jnp.transpose(w2_oihw, (2, 3, 1, 0)) * s2[None, None, None, :]
    w2k = w2t.reshape(3, 3 * P, P).astype(jnp.bfloat16)              # (ky, 3P, P)
    w3k = (jnp.transpose(w3_oihw[:, :, 0, 0], (1, 0)) * s3[None, :]
           ).astype(jnp.bfloat16)                                    # (P, 4P)
    b1k = b1[None, :].astype(jnp.float32)
    b2k = b2[None, :].astype(jnp.float32)
    b3k = b3[None, :].astype(jnp.float32)

    # Grid-invariant column keep-masks (hoisted out of the kernel).
    col = jnp.arange(M_h, dtype=jnp.int32) % W
    keep_l = (col >= d).astype(jnp.float32)[:, None]                 # (M_h, 1)
    keep_r = (col < W - d).astype(jnp.float32)[:, None]

    xb = x_nhwc.astype(jnp.bfloat16)

    kernel = functools.partial(_bottleneck_kernel, TH=TH, W=W, Cin=Cin, P=P,
                               d=d, HT=HT)

    flops = 2 * N * H * W * (Cin * P + 9 * P * P + P * Cout)
    bytes_accessed = (N * HT * Hh * W * Cin * 2          # halo slabs read
                      + N * H * W * Cout * 2             # bf16 output
                      + (w1k.size + w2k.size + w3k.size) * 2
                      + (b1k.size + b2k.size + b3k.size) * 4
                      + (keep_l.size + keep_r.size) * 4)

    def _full(a):
        # Constant index_map -> never re-fetched across the grid.
        # (On v7x, pipeline_mode=pl.Buffered(1) would also single-buffer them.)
        return pl.BlockSpec(a.shape, lambda n, h, nd=a.ndim: (0,) * nd)

    out = pl.pallas_call(
        kernel,
        out_shape=jax.ShapeDtypeStruct((N, H, W, Cout), jnp.bfloat16),
        grid_spec=pltpu.PrefetchScalarGridSpec(
            num_scalar_prefetch=0,
            grid=(N, HT),
            in_specs=[
                pl.BlockSpec(memory_space=pl.ANY),       # x stays in HBM
                _full(w1k), _full(w2k), _full(w3k),
                _full(b1k), _full(b2k), _full(b3k),
                _full(keep_l), _full(keep_r),
            ],
            out_specs=pl.BlockSpec((1, TH, W, Cout), lambda n, h: (n, h, 0, 0)),
            scratch_shapes=[
                pltpu.VMEM((Hh, W, Cin), jnp.bfloat16),  # x halo slab
                pltpu.VMEM((M_h, 3 * P), jnp.bfloat16),  # staged conv2 input
                pltpu.SemaphoreType.DMA(()),
            ],
        ),
        compiler_params=pltpu.CompilerParams(
            dimension_semantics=("parallel", "parallel"),
            vmem_limit_bytes=64 * 1024 * 1024,           # tune per generation
        ),
        cost_estimate=pl.CostEstimate(flops=int(flops), transcendentals=0,
                                      bytes_accessed=int(bytes_accessed)),
    )(xb, w1k, w2k, w3k, b1k, b2k, b3k, keep_l, keep_r)
    return out


# ---------------------------------------------------------------------------
# Pure-JAX f32 reference (mirrors the PyTorch forward, eval-mode BN), NCHW.
# ---------------------------------------------------------------------------
def bottleneck_ref(x, w1_oihw, w2_oihw, w3_oihw, s1, b1, s2, b2, s3, b3, *,
                   dilation=1):
    dn = ("NCHW", "OIHW", "NCHW")

    def bn(y, s, b):
        return y * s[None, :, None, None] + b[None, :, None, None]

    out = lax.conv_general_dilated(x, w1_oihw, (1, 1), "VALID",
                                   dimension_numbers=dn)
    out = jax.nn.relu(bn(out, s1, b1))
    out = lax.conv_general_dilated(out, w2_oihw, (1, 1),
                                   [(dilation, dilation), (dilation, dilation)],
                                   rhs_dilation=(dilation, dilation),
                                   dimension_numbers=dn)
    out = jax.nn.relu(bn(out, s2, b2))
    out = lax.conv_general_dilated(out, w3_oihw, (1, 1), "VALID",
                                   dimension_numbers=dn)
    out = bn(out, s3, b3)
    return jax.nn.relu(out + x)


if __name__ == "__main__":
    # Small deterministic config: Bottleneck(inplanes=128, planes=32),
    # i.e. Cout = 128 (lane-dense output).  Layer3 of the DeepLab ResNet uses
    # dilation=2, layer4 dilation=4; dilations 1 and 2 are exercised here, with
    # row tiles covering the HT==1, boundary-only, and interior-tile paths.
    N, H, Wd = 2, 16, 16
    inplanes, planes = 128, 32
    eps = 1e-5

    keys = jax.random.split(jax.random.PRNGKey(0), 16)
    k = iter(keys)

    def make_bn(kg, kb, km, kv, c):
        gamma = jax.random.uniform(kg, (c,), jnp.float32, 0.5, 1.5)
        beta = jax.random.normal(kb, (c,), jnp.float32) * 0.1
        mean = jax.random.normal(km, (c,), jnp.float32) * 0.1
        var = jax.random.uniform(kv, (c,), jnp.float32, 0.5, 1.5)
        scale = gamma / jnp.sqrt(var + eps)
        bias = beta - mean * scale
        return scale, bias

    # PyTorch-shaped conv weights (OIHW, bias=False)
    w1_t = jax.random.normal(next(k), (planes, inplanes, 1, 1), jnp.float32) * 0.1
    w2_t = jax.random.normal(next(k), (planes, planes, 3, 3), jnp.float32) * 0.1
    w3_t = jax.random.normal(next(k), (planes * 4, planes, 1, 1), jnp.float32) * 0.1

    s1, b1 = make_bn(next(k), next(k), next(k), next(k), planes)
    s2, b2 = make_bn(next(k), next(k), next(k), next(k), planes)
    s3, b3 = make_bn(next(k), next(k), next(k), next(k), planes * 4)

    # Kernel path is NHWC / bf16 end-to-end; NCHW + transposes exist only on
    # the PyTorch-layout reference side of the test.
    x_f32 = jax.random.normal(next(k), (N, H, Wd, inplanes), jnp.float32)
    x_bf16 = x_f32.astype(jnp.bfloat16)
    x_nchw = jnp.transpose(x_bf16.astype(jnp.float32), (0, 3, 1, 2))

    for dilation, rt in ((1, 16), (1, 8), (2, 8), (2, 4)):
        out = bottleneck_pallas(x_bf16, w1_t, w2_t, w3_t, s1, b1, s2, b2, s3, b3,
                                dilation=dilation, row_tile=rt)
        out = jax.block_until_ready(out)

        ref = bottleneck_ref(x_nchw, w1_t, w2_t, w3_t, s1, b1, s2, b2, s3, b3,
                             dilation=dilation)
        ref = jnp.transpose(ref, (0, 2, 3, 1))
        ref = jax.block_until_ready(ref)

        assert out.shape == (N, H, Wd, planes * 4)
        out_f = out.astype(jnp.float32)
        assert bool(jnp.isfinite(out_f).all())
        err = float(jnp.max(jnp.abs(out_f - ref)))
        # bf16 inputs/weights/output with f32 accumulation -> relaxed tolerance.
        tol = 3e-2 * float(jnp.max(jnp.abs(ref))) + 3e-2
        assert err <= tol, (dilation, rt, err, tol)

    print("KERNEL_OK")
</pallas_src>

<mosaic_0001>
module attributes {stable_mosaic.version = 11 : i64} {
  func.func @_bottleneck_kernel(%arg0: i32, %arg1: i32, %arg2: memref<2x16x16x128xbf16, #tpu.memory_space<any>>, %arg3: memref<128x32xbf16, #tpu.memory_space<vmem>>, %arg4: memref<3x96x32xbf16, #tpu.memory_space<vmem>>, %arg5: memref<32x128xbf16, #tpu.memory_space<vmem>>, %arg6: memref<1x32xf32, #tpu.memory_space<vmem>>, %arg7: memref<1x32xf32, #tpu.memory_space<vmem>>, %arg8: memref<1x128xf32, #tpu.memory_space<vmem>>, %arg9: memref<288x1xf32, #tpu.memory_space<vmem>>, %arg10: memref<288x1xf32, #tpu.memory_space<vmem>>, %arg11: memref<1x16x16x128xbf16, #tpu.memory_space<vmem>>, %arg12: memref<18x16x128xbf16, #tpu.memory_space<vmem>>, %arg13: memref<288x96xbf16, #tpu.memory_space<vmem>>, %arg14: memref<!tpu.dma_semaphore, #tpu.memory_space<semaphore_mem>>) attributes {dimension_semantics = [#tpu.dimension_semantics<parallel>, #tpu.dimension_semantics<parallel>], iteration_bounds = array<i64: 2, 1>, scalar_prefetch = 0 : i64, scratch_operands = 3 : i64, tpu.core_type = #tpu.core_type<tc>, window_params = [{}, {pipeline_mode = #tpu.pipeline_mode<synchronous>, transform_indices = @transform_1, window_bounds = array<i64: 128, 32>}, {pipeline_mode = #tpu.pipeline_mode<synchronous>, transform_indices = @transform_2, window_bounds = array<i64: 3, 96, 32>}, {pipeline_mode = #tpu.pipeline_mode<synchronous>, transform_indices = @transform_3, window_bounds = array<i64: 32, 128>}, {pipeline_mode = #tpu.pipeline_mode<synchronous>, transform_indices = @transform_4, window_bounds = array<i64: 1, 32>}, {pipeline_mode = #tpu.pipeline_mode<synchronous>, transform_indices = @transform_5, window_bounds = array<i64: 1, 32>}, {pipeline_mode = #tpu.pipeline_mode<synchronous>, transform_indices = @transform_6, window_bounds = array<i64: 1, 128>}, {pipeline_mode = #tpu.pipeline_mode<synchronous>, transform_indices = @transform_7, window_bounds = array<i64: 288, 1>}, {pipeline_mode = #tpu.pipeline_mode<synchronous>, transform_indices = @transform_8, window_bounds = array<i64: 288, 1>}, {transform_indices = @transform_9, window_bounds = array<i64: 1, 16, 16, 128>}]} {
    %cst = arith.constant 0.000000e+00 : bf16
    %0 = vector.broadcast %cst : bf16 to vector<1x16x128xbf16>
    %c0_i32 = arith.constant 0 : i32
    %c0_i32_0 = arith.constant 0 : i32
    %c0_i32_1 = arith.constant 0 : i32
    %1 = tpu.memref_slice %arg2[%arg0, %c0_i32, %c0_i32_0, %c0_i32_1] : memref<2x16x16x128xbf16, #tpu.memory_space<any>> -> memref<1x16x16x128xbf16, #tpu.memory_space<any>>
    %2 = tpu.memref_squeeze %1 : memref<1x16x16x128xbf16, #tpu.memory_space<any>> -> memref<16x16x128xbf16, #tpu.memory_space<any>>
    %c1_i32 = arith.constant 1 : i32
    %c0_i32_2 = arith.constant 0 : i32
    %c0_i32_3 = arith.constant 0 : i32
    %3 = tpu.memref_slice %arg12[%c1_i32, %c0_i32_2, %c0_i32_3] : memref<18x16x128xbf16, #tpu.memory_space<vmem>> -> memref<16x16x128xbf16, #tpu.memory_space<vmem>>
    tpu.enqueue_dma source(%2 : memref<16x16x128xbf16, #tpu.memory_space<any>>) target(%3 : memref<16x16x128xbf16, #tpu.memory_space<vmem>>) target_semaphore(%arg14 : memref<!tpu.dma_semaphore, #tpu.memory_space<semaphore_mem>>)
    %c0_i32_4 = arith.constant 0 : i32
    %c0_i32_5 = arith.constant 0 : i32
    %c0_i32_6 = arith.constant 0 : i32
    %4 = tpu.memref_slice %arg2[%arg0, %c0_i32_4, %c0_i32_5, %c0_i32_6] : memref<2x16x16x128xbf16, #tpu.memory_space<any>> -> memref<1x16x16x128xbf16, #tpu.memory_space<any>>
    %5 = tpu.memref_squeeze %4 : memref<1x16x16x128xbf16, #tpu.memory_space<any>> -> memref<16x16x128xbf16, #tpu.memory_space<any>>
    %c1_i32_7 = arith.constant 1 : i32
    %c0_i32_8 = arith.constant 0 : i32
    %c0_i32_9 = arith.constant 0 : i32
    %6 = tpu.memref_slice %arg12[%c1_i32_7, %c0_i32_8, %c0_i32_9] : memref<18x16x128xbf16, #tpu.memory_space<vmem>> -> memref<16x16x128xbf16, #tpu.memory_space<vmem>>
    tpu.wait_dma2 semaphore(%arg14 : memref<!tpu.dma_semaphore, #tpu.memory_space<semaphore_mem>>) src(%5 : memref<16x16x128xbf16, #tpu.memory_space<any>>) dst(%6 : memref<16x16x128xbf16, #tpu.memory_space<vmem>>)
    %c0 = arith.constant 0 : index
    %c0_10 = arith.constant 0 : index
    %c0_11 = arith.constant 0 : index
    %7 = vector.load %arg12[%c0, %c0_10, %c0_11] : memref<18x16x128xbf16, #tpu.memory_space<vmem>>, vector<1x16x128xbf16>
    tpu.vector_store %arg12[%c0, %c0_10, %c0_11], %0 {strides = array<i32>} : memref<18x16x128xbf16, #tpu.memory_space<vmem>>, vector<1x16x128xbf16>,
    %c17 = arith.constant 17 : index
    %c0_12 = arith.constant 0 : index
    %c0_13 = arith.constant 0 : index
    %8 = vector.load %arg12[%c17, %c0_12, %c0_13] : memref<18x16x128xbf16, #tpu.memory_space<vmem>>, vector<1x16x128xbf16>
    tpu.vector_store %arg12[%c17, %c0_12, %c0_13], %0 {strides = array<i32>} : memref<18x16x128xbf16, #tpu.memory_space<vmem>>, vector<1x16x128xbf16>,
    %c0_14 = arith.constant 0 : index
    %c0_15 = arith.constant 0 : index
    %c0_16 = arith.constant 0 : index
    %9 = vector.load %arg12[%c0_14, %c0_15, %c0_16] : memref<18x16x128xbf16, #tpu.memory_space<vmem>>, vector<18x16x128xbf16>
    %10 = vector.shape_cast %9 : vector<18x16x128xbf16> to vector<288x128xbf16>
    %c0_17 = arith.constant 0 : index
    %c0_18 = arith.constant 0 : index
    %11 = vector.load %arg3[%c0_17, %c0_18] : memref<128x32xbf16, #tpu.memory_space<vmem>>, vector<128x32xbf16>
    %cst_19 = arith.constant dense<0.000000e+00> : vector<288x32xf32>
    %12 = tpu.matmul %10, %11, %cst_19 {dimension_numbers = #tpu.dot_dimension_numbers<[1], [0], [0], [1], [0, 0, 1, 1], [], []>} : vector<288x128xbf16>, vector<128x32xbf16>, vector<288x32xf32> -> vector<288x32xf32>
    %c0_20 = arith.constant 0 : index
    %c0_21 = arith.constant 0 : index
    %13 = vector.load %arg6[%c0_20, %c0_21] : memref<1x32xf32, #tpu.memory_space<vmem>>, vector<1x32xf32>
    %14 = vector.broadcast %13 : vector<1x32xf32> to vector<288x32xf32>
    %15 = arith.addf %12, %14 : vector<288x32xf32>
    %cst_22 = arith.constant 0.000000e+00 : f32
    %16 = vector.broadcast %cst_22 : f32 to vector<288x32xf32>
    %17 = arith.maximumf %15, %16 : vector<288x32xf32>
    %18 = arith.truncf %17 : vector<288x32xf32> to vector<288x32xbf16>
    %cst_23 = arith.constant 0.000000e+00 : bf16
    %19 = vector.broadcast %cst_23 : bf16 to vector<1x32xbf16>
    %20 = vector.extract_strided_slice %18 {offsets = [0, 0], sizes = [287, 32], strides = [1, 1]} : vector<288x32xbf16> to vector<287x32xbf16>
    %21 = tpu.concatenate %19, %20 in 0 : vector<1x32xbf16>, vector<287x32xbf16> -> vector<288x32xbf16>
    %22 = vector.extract_strided_slice %18 {offsets = [1, 0], sizes = [287, 32], strides = [1, 1]} : vector<288x32xbf16> to vector<287x32xbf16>
    %23 = tpu.concatenate %22, %19 in 0 : vector<287x32xbf16>, vector<1x32xbf16> -> vector<288x32xbf16>
    %c0_24 = arith.constant 0 : index
    %c0_25 = arith.constant 0 : index
    %24 = vector.load %arg9[%c0_24, %c0_25] : memref<288x1xf32, #tpu.memory_space<vmem>>, vector<288x1xf32>
    %cst_26 = arith.constant 5.000000e-01 : f32
    %25 = vector.broadcast %cst_26 : f32 to vector<288x1xf32>
    %26 = arith.cmpf ogt, %24, %25 : vector<288x1xf32>
    %c0_27 = arith.constant 0 : index
    %c0_28 = arith.constant 0 : index
    %27 = vector.load %arg10[%c0_27, %c0_28] : memref<288x1xf32, #tpu.memory_space<vmem>>, vector<288x1xf32>
    %cst_29 = arith.constant 5.000000e-01 : f32
    %28 = vector.broadcast %cst_29 : f32 to vector<288x1xf32>
    %29 = arith.cmpf ogt, %27, %28 : vector<288x1xf32>
    %cst_30 = arith.constant 0.000000e+00 : bf16
    %30 = vector.broadcast %cst_30 : bf16 to vector<288x32xbf16>
    %31 = vector.shape_cast %26 : vector<288x1xi1> to vector<288x1xi1>
    %32 = vector.broadcast %31 : vector<288x1xi1> to vector<288x32xi1>
    %33 = arith.select %32, %21, %30 : vector<288x32xi1>, vector<288x32xbf16>
    %c0_31 = arith.constant 0 : index
    %c0_32 = arith.constant 0 : index
    %34 = vector.load %arg13[%c0_31, %c0_32] : memref<288x96xbf16, #tpu.memory_space<vmem>>, vector<288x32xbf16>
    tpu.vector_store %arg13[%c0_31, %c0_32], %33 {strides = array<i32>} : memref<288x96xbf16, #tpu.memory_space<vmem>>, vector<288x32xbf16>,
    %c0_33 = arith.constant 0 : index
    %c32 = arith.constant 32 : index
    %35 = vector.load %arg13[%c0_33, %c32] : memref<288x96xbf16, #tpu.memory_space<vmem>>, vector<288x32xbf16>
    tpu.vector_store %arg13[%c0_33, %c32], %18 {strides = array<i32>} : memref<288x96xbf16, #tpu.memory_space<vmem>>, vector<288x32xbf16>,
    %cst_34 = arith.constant 0.000000e+00 : bf16
    %36 = vector.broadcast %cst_34 : bf16 to vector<288x32xbf16>
    %37 = vector.shape_cast %29 : vector<288x1xi1> to vector<288x1xi1>
    %38 = vector.broadcast %37 : vector<288x1xi1> to vector<288x32xi1>
    %39 = arith.select %38, %23, %36 : vector<288x32xi1>, vector<288x32xbf16>
    %c0_35 = arith.constant 0 : index
    %c64 = arith.constant 64 : index
    %40 = vector.load %arg13[%c0_35, %c64] : memref<288x96xbf16, #tpu.memory_space<vmem>>, vector<288x32xbf16>
    tpu.vector_store %arg13[%c0_35, %c64], %39 {strides = array<i32>} : memref<288x96xbf16, #tpu.memory_space<vmem>>, vector<288x32xbf16>,
    %cst_36 = arith.constant 0.000000e+00 : bf16
    %41 = vector.broadcast %cst_36 : bf16 to vector<16x96xbf16>
    %c0_i32_37 = arith.constant 0 : i32
    %42 = arith.cmpi eq, %arg1, %c0_i32_37 : i32
    %43 = arith.extui %42 : i1 to i32
    %c0_i32_38 = arith.constant 0 : i32
    %44 = arith.cmpi ne, %43, %c0_i32_38 : i32
    scf.if %44 {
      %c0_72 = arith.constant 0 : index
      %c0_73 = arith.constant 0 : index
      %84 = vector.load %arg13[%c0_72, %c0_73] : memref<288x96xbf16, #tpu.memory_space<vmem>>, vector<16x96xbf16>
      tpu.vector_store %arg13[%c0_72, %c0_73], %41 {strides = array<i32>} : memref<288x96xbf16, #tpu.memory_space<vmem>>, vector<16x96xbf16>,
    } else {
    }
    %c0_i32_39 = arith.constant 0 : i32
    %45 = arith.cmpi eq, %arg1, %c0_i32_39 : i32
    %46 = arith.extui %45 : i1 to i32
    %c0_i32_40 = arith.constant 0 : i32
    %47 = arith.cmpi ne, %46, %c0_i32_40 : i32
    scf.if %47 {
      %c272 = arith.constant 272 : index
      %c0_72 = arith.constant 0 : index
      %84 = vector.load %arg13[%c272, %c0_72] : memref<288x96xbf16, #tpu.memory_space<vmem>>, vector<16x96xbf16>
      tpu.vector_store %arg13[%c272, %c0_72], %41 {strides = array<i32>} : memref<288x96xbf16, #tpu.memory_space<vmem>>, vector<16x96xbf16>,
    } else {
    }
    %c0_41 = arith.constant 0 : index
    %c0_42 = arith.constant 0 : index
    %48 = vector.load %arg13[%c0_41, %c0_42] : memref<288x96xbf16, #tpu.memory_space<vmem>>, vector<256x96xbf16>
    %c0_43 = arith.constant 0 : index
    %c0_44 = arith.constant 0 : index
    %c0_45 = arith.constant 0 : index
    %49 = vector.load %arg4[%c0_43, %c0_44, %c0_45] : memref<3x96x32xbf16, #tpu.memory_space<vmem>>, vector<1x96x32xbf16>
    %50 = vector.shape_cast %49 : vector<1x96x32xbf16> to vector<96x32xbf16>
    %cst_46 = arith.constant dense<0.000000e+00> : vector<256x32xf32>
    %51 = tpu.matmul %48, %50, %cst_46 {dimension_numbers = #tpu.dot_dimension_numbers<[1], [0], [0], [1], [0, 0, 1, 1], [], []>} : vector<256x96xbf16>, vector<96x32xbf16>, vector<256x32xf32> -> vector<256x32xf32>
    %c16 = arith.constant 16 : index
    %c0_47 = arith.constant 0 : index
    %52 = vector.load %arg13[%c16, %c0_47] : memref<288x96xbf16, #tpu.memory_space<vmem>>, vector<256x96xbf16>
    %c1 = arith.constant 1 : index
    %c0_48 = arith.constant 0 : index
    %c0_49 = arith.constant 0 : index
    %53 = vector.load %arg4[%c1, %c0_48, %c0_49] : memref<3x96x32xbf16, #tpu.memory_space<vmem>>, vector<1x96x32xbf16>
    %54 = vector.shape_cast %53 : vector<1x96x32xbf16> to vector<96x32xbf16>
    %cst_50 = arith.constant dense<0.000000e+00> : vector<256x32xf32>
    %55 = tpu.matmul %52, %54, %cst_50 {dimension_numbers = #tpu.dot_dimension_numbers<[1], [0], [0], [1], [0, 0, 1, 1], [], []>} : vector<256x96xbf16>, vector<96x32xbf16>, vector<256x32xf32> -> vector<256x32xf32>
    %56 = arith.addf %51, %55 : vector<256x32xf32>
    %c32_51 = arith.constant 32 : index
    %c0_52 = arith.constant 0 : index
    %57 = vector.load %arg13[%c32_51, %c0_52] : memref<288x96xbf16, #tpu.memory_space<vmem>>, vector<256x96xbf16>
    %c2 = arith.constant 2 : index
    %c0_53 = arith.constant 0 : index
    %c0_54 = arith.constant 0 : index
    %58 = vector.load %arg4[%c2, %c0_53, %c0_54] : memref<3x96x32xbf16, #tpu.memory_space<vmem>>, vector<1x96x32xbf16>
    %59 = vector.shape_cast %58 : vector<1x96x32xbf16> to vector<96x32xbf16>
    %cst_55 = arith.constant dense<0.000000e+00> : vector<256x32xf32>
    %60 = tpu.matmul %57, %59, %cst_55 {dimension_numbers = #tpu.dot_dimension_numbers<[1], [0], [0], [1], [0, 0, 1, 1], [], []>} : vector<256x96xbf16>, vector<96x32xbf16>, vector<256x32xf32> -> vector<256x32xf32>
    %61 = arith.addf %56, %60 : vector<256x32xf32>
    %c0_56 = arith.constant 0 : index
    %c0_57 = arith.constant 0 : index
    %62 = vector.load %arg7[%c0_56, %c0_57] : memref<1x32xf32, #tpu.memory_space<vmem>>, vector<1x32xf32>
    %63 = vector.broadcast %62 : vector<1x32xf32> to vector<256x32xf32>
    %64 = arith.addf %61, %63 : vector<256x32xf32>
    %cst_58 = arith.constant 0.000000e+00 : f32
    %65 = vector.broadcast %cst_58 : f32 to vector<256x32xf32>
    %66 = arith.maximumf %64, %65 : vector<256x32xf32>
    %67 = arith.truncf %66 : vector<256x32xf32> to vector<256x32xbf16>
    %c0_59 = arith.constant 0 : index
    %c0_60 = arith.constant 0 : index
    %68 = vector.load %arg5[%c0_59, %c0_60] : memref<32x128xbf16, #tpu.memory_space<vmem>>, vector<32x128xbf16>
    %cst_61 = arith.constant dense<0.000000e+00> : vector<256x128xf32>
    %69 = tpu.matmul %67, %68, %cst_61 {dimension_numbers = #tpu.dot_dimension_numbers<[1], [0], [0], [1], [0, 0, 1, 1], [], []>} : vector<256x32xbf16>, vector<32x128xbf16>, vector<256x128xf32> -> vector<256x128xf32>
    %c0_62 = arith.constant 0 : index
    %c0_63 = arith.constant 0 : index
    %70 = vector.load %arg8[%c0_62, %c0_63] : memref<1x128xf32, #tpu.memory_space<vmem>>, vector<1x128xf32>
    %71 = vector.broadcast %70 : vector<1x128xf32> to vector<256x128xf32>
    %72 = arith.addf %69, %71 : vector<256x128xf32>
    %c1_64 = arith.constant 1 : index
    %c0_65 = arith.constant 0 : index
    %c0_66 = arith.constant 0 : index
    %73 = vector.load %arg12[%c1_64, %c0_65, %c0_66] : memref<18x16x128xbf16, #tpu.memory_space<vmem>>, vector<16x16x128xbf16>
    %74 = vector.shape_cast %73 : vector<16x16x128xbf16> to vector<256x128xbf16>
    %75 = arith.extf %74 : vector<256x128xbf16> to vector<256x128xf32>
    %76 = arith.addf %72, %75 : vector<256x128xf32>
    %cst_67 = arith.constant 0.000000e+00 : f32
    %77 = vector.broadcast %cst_67 : f32 to vector<256x128xf32>
    %78 = arith.maximumf %76, %77 : vector<256x128xf32>
    %79 = arith.truncf %78 : vector<256x128xf32> to vector<256x128xbf16>
    %80 = vector.shape_cast %79 : vector<256x128xbf16> to vector<16x16x128xbf16>
    %c0_68 = arith.constant 0 : index
    %c0_69 = arith.constant 0 : index
    %c0_70 = arith.constant 0 : index
    %c0_71 = arith.constant 0 : index
    %81 = vector.load %arg11[%c0_68, %c0_69, %c0_70, %c0_71] : memref<1x16x16x128xbf16, #tpu.memory_space<vmem>>, vector<1x16x16x128xbf16>
    %82 = vector.shape_cast %81 : vector<1x16x16x128xbf16> to vector<16x16x128xbf16>
    %83 = vector.shape_cast %80 : vector<16x16x128xbf16> to vector<1x16x16x128xbf16>
    tpu.vector_store %arg11[%c0_68, %c0_69, %c0_70, %c0_71], %83 {strides = array<i32>} : memref<1x16x16x128xbf16, #tpu.memory_space<vmem>>, vector<1x16x16x128xbf16>,
    return
  }
  func.func @transform_1(%arg0: i32, %arg1: i32) -> (i32, i32) {
    %c0_i32 = arith.constant 0 : i32
    %c0_i32_0 = arith.constant 0 : i32
    %c0_i32_1 = arith.constant 0 : i32
    return %c0_i32, %c0_i32_0 : i32, i32
  }
  func.func @transform_2(%arg0: i32, %arg1: i32) -> (i32, i32, i32) {
    %c0_i32 = arith.constant 0 : i32
    %c0_i32_0 = arith.constant 0 : i32
    %c0_i32_1 = arith.constant 0 : i32
    %c0_i32_2 = arith.constant 0 : i32
    return %c0_i32, %c0_i32_0, %c0_i32_1 : i32, i32, i32
  }
  func.func @transform_3(%arg0: i32, %arg1: i32) -> (i32, i32) {
    %c0_i32 = arith.constant 0 : i32
    %c0_i32_0 = arith.constant 0 : i32
    %c0_i32_1 = arith.constant 0 : i32
    return %c0_i32, %c0_i32_0 : i32, i32
  }
  func.func @transform_4(%arg0: i32, %arg1: i32) -> (i32, i32) {
    %c0_i32 = arith.constant 0 : i32
    %c0_i32_0 = arith.constant 0 : i32
    %c0_i32_1 = arith.constant 0 : i32
    return %c0_i32, %c0_i32_0 : i32, i32
  }
  func.func @transform_5(%arg0: i32, %arg1: i32) -> (i32, i32) {
    %c0_i32 = arith.constant 0 : i32
    %c0_i32_0 = arith.constant 0 : i32
    %c0_i32_1 = arith.constant 0 : i32
    return %c0_i32, %c0_i32_0 : i32, i32
  }
  func.func @transform_6(%arg0: i32, %arg1: i32) -> (i32, i32) {
    %c0_i32 = arith.constant 0 : i32
    %c0_i32_0 = arith.constant 0 : i32
    %c0_i32_1 = arith.constant 0 : i32
    return %c0_i32, %c0_i32_0 : i32, i32
  }
  func.func @transform_7(%arg0: i32, %arg1: i32) -> (i32, i32) {
    %c0_i32 = arith.constant 0 : i32
    %c0_i32_0 = arith.constant 0 : i32
    %c0_i32_1 = arith.constant 0 : i32
    return %c0_i32, %c0_i32_0 : i32, i32
  }
  func.func @transform_8(%arg0: i32, %arg1: i32) -> (i32, i32) {
    %c0_i32 = arith.constant 0 : i32
    %c0_i32_0 = arith.constant 0 : i32
    %c0_i32_1 = arith.constant 0 : i32
    return %c0_i32, %c0_i32_0 : i32, i32
  }
  func.func @transform_9(%arg0: i32, %arg1: i32) -> (i32, i32, i32, i32) {
    %c0_i32 = arith.constant 0 : i32
    %c0_i32_0 = arith.constant 0 : i32
    %c0_i32_1 = arith.constant 0 : i32
    return %arg0, %arg1, %c0_i32, %c0_i32_0 : i32, i32, i32, i32
  }
}

</mosaic_0001>

<llo_original>
// kernel: tpu_custom_call.1
$region0: #{tpu_custom_call.1}
  #allocation0 [shape = 'u32[]', space=smem, size = 0x4, offset = 0x4, fixed_abs, tag = 'smem constant byte address 0x4 - core index']
  #allocation1 [shape = 'u32[72,128]{1,0:T(1,128)}', space=vmem, size = 0x9000, scoped, tag = 'internal scratch']
  #allocation2 [shape = 'bf16[18,16,128]{2,1,0:T(8,128)(2,1)}', space=vmem, size = 0x12000, scoped, tag = 'scratch operand']
  #allocation3 [shape = 'bf16[288,96]{1,0:T(8,128)(2,1)}', space=vmem, size = 0x12000, scoped, tag = 'scratch operand']
  #allocation4 [shape = 's32[1]{0}', space=sflag, size = 0x4, scoped, tag = 'scratch operand']
  #allocation7 [shape = 's32[]', space=sflag, size = 0x4, offset = 0, fixed_abs, tag = 'sflag constant byte address 0x0 - dummy sync flag']
  %s0 = inlined_call_operand.vmem [shape: bf16[2,16,16,128], index: 0, kind: input, shape index: {}]
  %s1 = inlined_call_operand.vmem [shape: bf16[128,32], index: 1, kind: input, shape index: {}]
  %s2 = inlined_call_operand.vmem [shape: bf16[3,96,32], index: 2, kind: input, shape index: {}]
  %s3 = inlined_call_operand.vmem [shape: bf16[32,128], index: 3, kind: input, shape index: {}]
  %s4 = inlined_call_operand.vmem [shape: f32[1,32], index: 4, kind: input, shape index: {}]
  %s5 = inlined_call_operand.vmem [shape: f32[1,32], index: 5, kind: input, shape index: {}]
  %s6 = inlined_call_operand.vmem [shape: f32[1,128], index: 6, kind: input, shape index: {}]
  %s7 = inlined_call_operand.vmem [shape: f32[288,1], index: 7, kind: input, shape index: {}]
  %s8 = inlined_call_operand.vmem [shape: f32[288,1], index: 8, kind: input, shape index: {}]
  %s9 = inlined_call_operand.hbm [shape: bf16[2,16,16,128], index: 9, kind: output, shape index: {}]
  %s10 = sld [smem:[#allocation0]]
  $region88: #{tpu_custom_call.1} parent=0
    _
  %s12 = ssub.s32 1, %s10
  %s13 = scalar_select 0, %s12, %s10
  $region1: #{tpu_custom_call.1} parent=0
    #allocation5 [shape = 'u8[131072]{0}', space=vmem, size = 0x20000, scoped, tag = 'output window, operand 0']
    #allocation6 [shape = 's32[2]{0}', space=sflag, size = 0x8, scoped, tag = 'scoped memory for tpu_custom_call.1']
    %14 = vsyncpa [#allocation6], 0
    %s15 = scalar_lea.sflag [#allocation6], 1
    %16 = vsyncpa %s15, 0
    loop: start=0, step=1, limit=4
    $region2: #{tpu_custom_call.1} parent=1 // loop_pre_header
      _
    $region3: #{tpu_custom_call.1} parent=1 // loop_header
      %s18 = sphi 0, %s22
      %p19 = scmp.ge.s32.totalorder %s18, 4
      %s25 = sphi 0, %s37
      %s26 = sphi 0, %s33
      %s27 = sphi 0, %s25
      %s28 = sphi 0, %s26
      %s29 = sphi 0, %s27
      %s30 = sphi 0, %s28
      %s38 = sphi 0, %s38
      %s40 = sphi 0, %s38
      %s41 = sphi 0, %s40
      %s55 = sphi 0, %s41
      %s59 = sphi 0, %s59
      %s61 = sphi 0, %s59
      %s62 = sphi 0, %s61
      %s76 = sphi 0, %s62
      %s80 = sphi 0, %s80
      %s82 = sphi 0, %s80
      %s83 = sphi 0, %s82
      %s97 = sphi 0, %s83
      %s101 = sphi 0, %s101
      %s103 = sphi 0, %s101
      %s104 = sphi 0, %s103
      %s118 = sphi 0, %s104
      %s122 = sphi 0, %s122
      %s124 = sphi 0, %s122
      %s125 = sphi 0, %s124
      %s139 = sphi 0, %s125
      %s143 = sphi 0, %s143
      %s145 = sphi 0, %s143
      %s146 = sphi 0, %s145
      %s160 = sphi 0, %s146
      %s164 = sphi 0, %s164
      %s166 = sphi 0, %s164
      %s167 = sphi 0, %s166
      %s181 = sphi 0, %s167
      %s185 = sphi 0, %s185
      %s187 = sphi 0, %s185
      %s188 = sphi 0, %s187
      %s202 = sphi 0, %s188
      %s210 = sphi 0, %s212
      %s213 = sphi 0, %s210
      %s214 = sphi 0, %s213
      %s230 = sphi 0, %s214
    $region4: #{tpu_custom_call.1} parent=1 // loop_header_branch
      %21 = sbr.rel (%p19) target = $region8
    $region5: #{tpu_custom_call.1} parent=1 // loop_body
      %s23 = ssub.s32 %s18, 1
      %s24 = ssub.s32 %s18, 2
      %s31 = sadd.s32 1, %s26
      %p32 = scmp.ge.s32.totalorder %s31, 1
      %s33 = scalar_select %p32, 0, %s31
      %s34 = sadd.s32 1, %s25
      %s35 = scalar_select %p32, %s34, %s25
      %p36 = scmp.ge.s32.totalorder %s35, 2
      %s37 = scalar_select %p36, 0, %s35
      %s39 = sadd.s32 %s38, 1
      %p42 = scmp.eq.s32.totalorder %s18, 1
      %p43 = scmp.ne.s32.totalorder %s38, %s40
      %p44 = scmp.eq.s32.totalorder %s18, 0
      %p45 = por %p43, %p44
      %p46 = scmp.ne.s32.totalorder %s38, %s40
      %p47 = scmp.eq.s32.totalorder %s23, 1
      %p48 = por %p46, %p47
      %p49 = scmp.ne.s32.totalorder %s40, %s41
      %p50 = scmp.eq.s32.totalorder %s23, 0
      %p51 = por %p49, %p50
      %p52 = scmp.ne.s32.totalorder %s40, %s41
      %p53 = scmp.eq.s32.totalorder %s24, 1
      %p54 = por %p52, %p53
      %p56 = scmp.ne.s32.totalorder %s41, %s55
      %p57 = scmp.eq.s32.totalorder %s24, 0
      %p58 = por %p56, %p57
      %s60 = sadd.s32 %s59, 1
      %p63 = scmp.eq.s32.totalorder %s18, 1
      %p64 = scmp.ne.s32.totalorder %s59, %s61
      %p65 = scmp.eq.s32.totalorder %s18, 0
      %p66 = por %p64, %p65
      %p67 = scmp.ne.s32.totalorder %s59, %s61
      %p68 = scmp.eq.s32.totalorder %s23, 1
      %p69 = por %p67, %p68
      %p70 = scmp.ne.s32.totalorder %s61, %s62
      %p71 = scmp.eq.s32.totalorder %s23, 0
      %p72 = por %p70, %p71
      %p73 = scmp.ne.s32.totalorder %s61, %s62
      %p74 = scmp.eq.s32.totalorder %s24, 1
      %p75 = por %p73, %p74
      %p77 = scmp.ne.s32.totalorder %s62, %s76
      %p78 = scmp.eq.s32.totalorder %s24, 0
      %p79 = por %p77, %p78
      %s81 = sadd.s32 %s80, 1
      %p84 = scmp.eq.s32.totalorder %s18, 1
      %p85 = scmp.ne.s32.totalorder %s80, %s82
      %p86 = scmp.eq.s32.totalorder %s18, 0
      %p87 = por %p85, %p86
      %p88 = scmp.ne.s32.totalorder %s80, %s82
      %p89 = scmp.eq.s32.totalorder %s23, 1
      %p90 = por %p88, %p89
      %p91 = scmp.ne.s32.totalorder %s82, %s83
      %p92 = scmp.eq.s32.totalorder %s23, 0
      %p93 = por %p91, %p92
      %p94 = scmp.ne.s32.totalorder %s82, %s83
      %p95 = scmp.eq.s32.totalorder %s24, 1
      %p96 = por %p94, %p95
      %p98 = scmp.ne.s32.totalorder %s83, %s97
      %p99 = scmp.eq.s32.totalorder %s24, 0
      %p100 = por %p98, %p99
      %s102 = sadd.s32 %s101, 1
      %p105 = scmp.eq.s32.totalorder %s18, 1
      %p106 = scmp.ne.s32.totalorder %s101, %s103
      %p107 = scmp.eq.s32.totalorder %s18, 0
      %p108 = por %p106, %p107
      %p109 = scmp.ne.s32.totalorder %s101, %s103
      %p110 = scmp.eq.s32.totalorder %s23, 1
      %p111 = por %p109, %p110
      %p112 = scmp.ne.s32.totalorder %s103, %s104
      %p113 = scmp.eq.s32.totalorder %s23, 0
      %p114 = por %p112, %p113
      %p115 = scmp.ne.s32.totalorder %s103, %s104
      %p116 = scmp.eq.s32.totalorder %s24, 1
      %p117 = por %p115, %p116
      %p119 = scmp.ne.s32.totalorder %s104, %s118
      %p120 = scmp.eq.s32.totalorder %s24, 0
      %p121 = por %p119, %p120
      %s123 = sadd.s32 %s122, 1
      %p126 = scmp.eq.s32.totalorder %s18, 1
      %p127 = scmp.ne.s32.totalorder %s122, %s124
      %p128 = scmp.eq.s32.totalorder %s18, 0
      %p129 = por %p127, %p128
      %p130 = scmp.ne.s32.totalorder %s122, %s124
      %p131 = scmp.eq.s32.totalorder %s23, 1
      %p132 = por %p130, %p131
      %p133 = scmp.ne.s32.totalorder %s124, %s125
      %p134 = scmp.eq.s32.totalorder %s23, 0
      %p135 = por %p133, %p134
      %p136 = scmp.ne.s32.totalorder %s124, %s125
      %p137 = scmp.eq.s32.totalorder %s24, 1
      %p138 = por %p136, %p137
      %p140 = scmp.ne.s32.totalorder %s125, %s139
      %p141 = scmp.eq.s32.totalorder %s24, 0
      %p142 = por %p140, %p141
      %s144 = sadd.s32 %s143, 1
      %p147 = scmp.eq.s32.totalorder %s18, 1
      %p148 = scmp.ne.s32.totalorder %s143, %s145
      %p149 = scmp.eq.s32.totalorder %s18, 0
      %p150 = por %p148, %p149
      %p151 = scmp.ne.s32.totalorder %s143, %s145
      %p152 = scmp.eq.s32.totalorder %s23, 1
      %p153 = por %p151, %p152
      %p154 = scmp.ne.s32.totalorder %s145, %s146
      %p155 = scmp.eq.s32.totalorder %s23, 0
      %p156 = por %p154, %p155
      %p157 = scmp.ne.s32.totalorder %s145, %s146
      %p158 = scmp.eq.s32.totalorder %s24, 1
      %p159 = por %p157, %p158
      %p161 = scmp.ne.s32.totalorder %s146, %s160
      %p162 = scmp.eq.s32.totalorder %s24, 0
      %p163 = por %p161, %p162
      %s165 = sadd.s32 %s164, 1
      %p168 = scmp.eq.s32.totalorder %s18, 1
      %p169 = scmp.ne.s32.totalorder %s164, %s166
      %p170 = scmp.eq.s32.totalorder %s18, 0
      %p171 = por %p169, %p170
      %p172 = scmp.ne.s32.totalorder %s164, %s166
      %p173 = scmp.eq.s32.totalorder %s23, 1
      %p174 = por %p172, %p173
      %p175 = scmp.ne.s32.totalorder %s166, %s167
      %p176 = scmp.eq.s32.totalorder %s23, 0
      %p177 = por %p175, %p176
      %p178 = scmp.ne.s32.totalorder %s166, %s167
      %p179 = scmp.eq.s32.totalorder %s24, 1
      %p180 = por %p178, %p179
      %p182 = scmp.ne.s32.totalorder %s167, %s181
      %p183 = scmp.eq.s32.totalorder %s24, 0
      %p184 = por %p182, %p183
      %s186 = sadd.s32 %s185, 1
      %p189 = scmp.eq.s32.totalorder %s18, 1
      %p190 = scmp.ne.s32.totalorder %s185, %s187
      %p191 = scmp.eq.s32.totalorder %s18, 0
      %p192 = por %p190, %p191
      %p193 = scmp.ne.s32.totalorder %s185, %s187
      %p194 = scmp.eq.s32.totalorder %s23, 1
      %p195 = por %p193, %p194
      %p196 = scmp.ne.s32.totalorder %s187, %s188
      %p197 = scmp.eq.s32.totalorder %s23, 0
      %p198 = por %p196, %p197
      %p199 = scmp.ne.s32.totalorder %s187, %s188
      %p200 = scmp.eq.s32.totalorder %s24, 1
      %p201 = por %p199, %p200
      %p203 = scmp.ne.s32.totalorder %s188, %s202
      %p204 = scmp.eq.s32.totalorder %s24, 0
      %p205 = por %p203, %p204
      %s206 = ssub.s32 %s25, %s37
      %s207 = ssub.s32 %s26, %s33
      %s208 = sor.u32 %s206, %s207
      %p209 = scmp.eq.s32.totalorder %s208, 0
      %s211 = sadd.s32 %s210, 1
      %s212 = scalar_select %p209, %s210, %s211
      %p215 = pneg %p209
      %p216 = scmp.eq.s32.totalorder %s18, 1
      %p217 = por %p215, %p216
      %p218 = scmp.ne.s32.totalorder %s210, %s213
      %p219 = scmp.eq.s32.totalorder %s18, 0
      %p220 = por %p218, %p219
      %p221 = scmp.ne.s32.totalorder %s210, %s213
      %p222 = scmp.eq.s32.totalorder %s23, 1
      %p223 = por %p221, %p222
      %p224 = scmp.ne.s32.totalorder %s213, %s214
      %p225 = scmp.eq.s32.totalorder %s23, 0
      %p226 = por %p224, %p225
      %p227 = scmp.ne.s32.totalorder %s213, %s214
      %p228 = scmp.eq.s32.totalorder %s24, 1
      %p229 = por %p227, %p228
      %p231 = scmp.ne.s32.totalorder %s214, %s230
      %p232 = scmp.eq.s32.totalorder %s24, 0
      %p233 = por %p231, %p232
      %p234 = scmp.le.s32.totalorder 1, %s18
      %p235 = scmp.lt.s32.totalorder %s18, 3
      %p236 = pnand %p234, %p235
      %p237 = pneg %p236
      // Predicated region
      $region9: #{tpu_custom_call.1} parent=5 // pred_check
        _
      $region10: #{tpu_custom_call.1} parent=5 // pred_check_branch
        %239 = sbr.rel (%p236) target = $region12
      $region11: #{tpu_custom_call.1} parent=5 // pred_region
        %s240 = ssub.s32 %s18, 1
        // Predicated region
        $region13: #{tpu_custom_call.1} parent=11 // pred_check
          %p241 = pneg %p51
        $region14: #{tpu_custom_call.1} parent=11 // pred_check_branch
          %243 = sbr.rel (%p241) target = $region16
        $region15: #{tpu_custom_call.1} parent=11 // pred_region
          _
        $region16: #{tpu_custom_call.1} parent=11 // pred_fallthru
          _
        // Predicated region
        $region17: #{tpu_custom_call.1} parent=11 // pred_check
          %p244 = pneg %p72
        $region18: #{tpu_custom_call.1} parent=11 // pred_check_branch
          %246 = sbr.rel (%p244) target = $region20
        $region19: #{tpu_custom_call.1} parent=11 // pred_region
          _
        $region20: #{tpu_custom_call.1} parent=11 // pred_fallthru
          _
        // Predicated region
        $region21: #{tpu_custom_call.1} parent=11 // pred_check
          %p247 = pneg %p93
        $region22: #{tpu_custom_call.1} parent=11 // pred_check_branch
          %249 = sbr.rel (%p247) target = $region24
        $region23: #{tpu_custom_call.1} parent=11 // pred_region
          _
        $region24: #{tpu_custom_call.1} parent=11 // pred_fallthru
          _
        // Predicated region
        $region25: #{tpu_custom_call.1} parent=11 // pred_check
          %p250 = pneg %p114
        $region26: #{tpu_custom_call.1} parent=11 // pred_check_branch
          %252 = sbr.rel (%p250) target = $region28
        $region27: #{tpu_custom_call.1} parent=11 // pred_region
          _
        $region28: #{tpu_custom_call.1} parent=11 // pred_fallthru
          _
        // Predicated region
        $region29: #{tpu_custom_call.1} parent=11 // pred_check
          %p253 = pneg %p135
        $region30: #{tpu_custom_call.1} parent=11 // pred_check_branch
          %255 = sbr.rel (%p253) target = $region32
        $region31: #{tpu_custom_call.1} parent=11 // pred_region
          _
        $region32: #{tpu_custom_call.1} parent=11 // pred_fallthru
          _
        // Predicated region
        $region33: #{tpu_custom_call.1} parent=11 // pred_check
          %p256 = pneg %p156
        $region34: #{tpu_custom_call.1} parent=11 // pred_check_branch
          %258 = sbr.rel (%p256) target = $region36
        $region35: #{tpu_custom_call.1} parent=11 // pred_region
          _
        $region36: #{tpu_custom_call.1} parent=11 // pred_fallthru
          _
        // Predicated region
        $region37: #{tpu_custom_call.1} parent=11 // pred_check
          %p259 = pneg %p177
        $region38: #{tpu_custom_call.1} parent=11 // pred_check_branch
          %261 = sbr.rel (%p259) target = $region40
        $region39: #{tpu_custom_call.1} parent=11 // pred_region
          _
        $region40: #{tpu_custom_call.1} parent=11 // pred_fallthru
          _
        // Predicated region
        $region41: #{tpu_custom_call.1} parent=11 // pred_check
          %p262 = pneg %p198
        $region42: #{tpu_custom_call.1} parent=11 // pred_check_branch
          %264 = sbr.rel (%p262) target = $region44
        $region43: #{tpu_custom_call.1} parent=11 // pred_region
          _
        $region44: #{tpu_custom_call.1} parent=11 // pred_fallthru
          _
      $region12: #{tpu_custom_call.1} parent=5 // pred_fallthru
        _
      %p265 = scmp.lt.s32.totalorder %s18, 2
      // Predicated region
      $region45: #{tpu_custom_call.1} parent=5 // pred_check
        %p266 = pneg %p265
      $region46: #{tpu_custom_call.1} parent=5 // pred_check_branch
        %268 = sbr.rel (%p266) target = $region48
      $region47: #{tpu_custom_call.1} parent=5 // pred_region
        _
      $region48: #{tpu_custom_call.1} parent=5 // pred_fallthru
        _
      %p269 = scmp.le.s32.totalorder 1, %s18
      %p270 = scmp.lt.s32.totalorder %s18, 3
      %p271 = pnand %p269, %p270
      %p272 = pneg %p271
      // Predicated region
      $region49: #{tpu_custom_call.1} parent=5 // pred_check
        _
      $region50: #{tpu_custom_call.1} parent=5 // pred_check_branch
        %274 = sbr.rel (%p271) target = $region52
      $region51: #{tpu_custom_call.1} parent=5 // pred_region
        %s275 = ssub.s32 %s18, 1
        %p276 = pneg %p51
        %p277 = pneg %p48
        %p278 = pneg %p72
        %p279 = pneg %p69
        %p280 = pneg %p93
        %p281 = pneg %p90
        %p282 = pneg %p114
        %p283 = pneg %p111
        %p284 = pneg %p135
        %p285 = pneg %p132
        %p286 = pneg %p156
        %p287 = pneg %p153
        %p288 = pneg %p177
        %p289 = pneg %p174
        %p290 = pneg %p198
        %p291 = pneg %p195
        %p292 = pneg %p226
        %p293 = pneg %p223
        %s294 = sand.u32 %s213, 1
        %s295 = scalar_lea.sflag [#allocation6], %s294
        %s296 = sand.u32 %s213, 1
        %s297 = smul.addr %s296, 128
        %s298 = scalar_lea.vmem [#allocation5], %s297
        %s299 = smul.u32 16, %s28
        %s303 = smul.u32 %s27, 32
        %s304 = smul.addr %s303, 4
        %s305 = scalar_lea.vmem %s0, %s304
        %s306 = scalar_lea.vmem [#allocation2], 8
        // Predicated region
        $region53: #{tpu_custom_call.1} parent=51 // pred_check
          _
        $region54: #{tpu_custom_call.1} parent=51 // pred_check_branch
          %308 = sbr.rel (0) target = $region56
        $region55: #{tpu_custom_call.1} parent=51 // pred_region
          loop: start=0, step=1, limit=1
          $region57: #{tpu_custom_call.1} parent=55 // loop_pre_header
            _
          $region58: #{tpu_custom_call.1} parent=55 // loop_header
            %s310 = sphi 0, %s314
            %p311 = scmp.ge.s32.totalorder %s310, 1
            %s315 = sphi %s305, %s305
            %s316 = sphi %s306, %s306
          $region59: #{tpu_custom_call.1} parent=55 // loop_header_branch
            %313 = sbr.rel (%p311) target = $region63
          $region60: #{tpu_custom_call.1} parent=55 // loop_body
            %v317 = vld [vmem:[%s315] sm:$0xff]
            %318 = vst [vmem:[%s316] sm:$0xff] %v317
            %v319 = vld [vmem:[%s315 + $0x8] sm:$0xff]
            %320 = vst [vmem:[%s316 + $0x8] sm:$0xff] %v319
            %v321 = vld [vmem:[%s315 + $0x10] sm:$0xff]
            %322 = vst [vmem:[%s316 + $0x10] sm:$0xff] %v321
            %v323 = vld [vmem:[%s315 + $0x18] sm:$0xff]
            %324 = vst [vmem:[%s316 + $0x18] sm:$0xff] %v323
            %v325 = vld [vmem:[%s315 + $0x20] sm:$0xff]
            %326 = vst [vmem:[%s316 + $0x20] sm:$0xff] %v325
            %v327 = vld [vmem:[%s315 + $0x28] sm:$0xff]
            %328 = vst [vmem:[%s316 + $0x28] sm:$0xff] %v327
            %v329 = vld [vmem:[%s315 + $0x30] sm:$0xff]
            %330 = vst [vmem:[%s316 + $0x30] sm:$0xff] %v329
            %v331 = vld [vmem:[%s315 + $0x38] sm:$0xff]
            %332 = vst [vmem:[%s316 + $0x38] sm:$0xff] %v331
            %v333 = vld [vmem:[%s315 + $0x40] sm:$0xff]
            %334 = vst [vmem:[%s316 + $0x40] sm:$0xff] %v333
            %v335 = vld [vmem:[%s315 + $0x48] sm:$0xff]
            %336 = vst [vmem:[%s316 + $0x48] sm:$0xff] %v335
            %v337 = vld [vmem:[%s315 + $0x50] sm:$0xff]
            %338 = vst [vmem:[%s316 + $0x50] sm:$0xff] %v337
            %v339 = vld [vmem:[%s315 + $0x58] sm:$0xff]
            %340 = vst [vmem:[%s316 + $0x58] sm:$0xff] %v339
            %v341 = vld [vmem:[%s315 + $0x60] sm:$0xff]
            %342 = vst [vmem:[%s316 + $0x60] sm:$0xff] %v341
            %v343 = vld [vmem:[%s315 + $0x68] sm:$0xff]
            %344 = vst [vmem:[%s316 + $0x68] sm:$0xff] %v343
            %v345 = vld [vmem:[%s315 + $0x70] sm:$0xff]
            %346 = vst [vmem:[%s316 + $0x70] sm:$0xff] %v345
            %v347 = vld [vmem:[%s315 + $0x78] sm:$0xff]
            %348 = vst [vmem:[%s316 + $0x78] sm:$0xff] %v347
          $region61: #{tpu_custom_call.1} parent=55 // loop_footer
            %s314 = sadd.s32 1, %s310
          $region62: #{tpu_custom_call.1} parent=55 // loop_footer_branch
            %309 = sbr.rel target = $region58
          $region63: #{tpu_custom_call.1} parent=55 // loop_exit
            _
        $region56: #{tpu_custom_call.1} parent=51 // pred_fallthru
          _
        // Predicated region
        $region64: #{tpu_custom_call.1} parent=51 // pred_check
          _
        $region65: #{tpu_custom_call.1} parent=51 // pred_check_branch
          %350 = sbr.rel target = $region67
        $region66: #{tpu_custom_call.1} parent=51 // pred_region
          _
        $region67: #{tpu_custom_call.1} parent=51 // pred_fallthru
          _
        // Predicated region
        $region68: #{tpu_custom_call.1} parent=51 // pred_check
          _
        $region69: #{tpu_custom_call.1} parent=51 // pred_check_branch
          %353 = sbr.rel (0) target = $region71
        $region70: #{tpu_custom_call.1} parent=51 // pred_region
          %354 = vsyncadd [#allocation4], 2048
        $region71: #{tpu_custom_call.1} parent=51 // pred_fallthru
          _
        %s355 = smul.u32 4, 16
        %s356 = smul.u32 %s355, 2
        %s357 = smul.u32 %s356, 1
        %s358 = sshll.u32 %s357, 4
        %359 = dma.done [#allocation4], %s358
        %360 = vst [vmem:[#allocation2] sm:$0xf] 0
        %361 = vst [vmem:[#allocation2 + $0x4] sm:$0xf] 0
        %s362 = scalar_lea.vmem [#allocation2], 136
        %363 = vst [vmem:[%s362] sm:$0xf] 0
        %364 = vst [vmem:[%s362 + $0x4] sm:$0xf] 0
        %v365 = vld [vmem:[#allocation2] sm:$0xf]
        %v366 = vld [vmem:[#allocation2 + $0x4] sm:$0xf]
        %v367 = vld [vmem:[#allocation2 + $0x8] sm:$0xf]
        %v368 = vld [vmem:[#allocation2 + $0xc] sm:$0xf]
        %v369 = vld [vmem:[#allocation2 + $0x10] sm:$0xf]
        %v370 = vld [vmem:[#allocation2 + $0x14] sm:$0xf]
        %v371 = vld [vmem:[#allocation2 + $0x18] sm:$0xf]
        %v372 = vld [vmem:[#allocation2 + $0x1c] sm:$0xf]
        %v373 = vld [vmem:[#allocation2 + $0x20] sm:$0xf]
        %v374 = vld [vmem:[#allocation2 + $0x24] sm:$0xf]
        %v375 = vld [vmem:[#allocation2 + $0x28] sm:$0xf]
        %v376 = vld [vmem:[#allocation2 + $0x2c] sm:$0xf]
        %v377 = vld [vmem:[#allocation2 + $0x30] sm:$0xf]
        %v378 = vld [vmem:[#allocation2 + $0x34] sm:$0xf]
        %v379 = vld [vmem:[#allocation2 + $0x38] sm:$0xf]
        %v380 = vld [vmem:[#allocation2 + $0x3c] sm:$0xf]
        %v381 = vld [vmem:[#allocation2 + $0x40] sm:$0xf]
        %v382 = vld [vmem:[#allocation2 + $0x44] sm:$0xf]
        %v383 = vld [vmem:[#allocation2 + $0x48] sm:$0xf]
        %v384 = vld [vmem:[#allocation2 + $0x4c] sm:$0xf]
        %v385 = vld [vmem:[#allocation2 + $0x50] sm:$0xf]
        %v386 = vld [vmem:[#allocation2 + $0x54] sm:$0xf]
        %v387 = vld [vmem:[#allocation2 + $0x58] sm:$0xf]
        %v388 = vld [vmem:[#allocation2 + $0x5c] sm:$0xf]
        %v389 = vld [vmem:[#allocation2 + $0x60] sm:$0xf]
        %v390 = vld [vmem:[#allocation2 + $0x64] sm:$0xf]
        %v391 = vld [vmem:[#allocation2 + $0x68] sm:$0xf]
        %v392 = vld [vmem:[#allocation2 + $0x6c] sm:$0xf]
        %v393 = vld [vmem:[#allocation2 + $0x70] sm:$0xf]
        %v394 = vld [vmem:[#allocation2 + $0x74] sm:$0xf]
        %v395 = vld [vmem:[#allocation2 + $0x78] sm:$0xf]
        %v396 = vld [vmem:[#allocation2 + $0x7c] sm:$0xf]
        %v397 = vld [vmem:[#allocation2 + $0x80] sm:$0xf]
        %v398 = vld [vmem:[#allocation2 + $0x84] sm:$0xf]
        %v399 = vld [vmem:[#allocation2 + $0x88] sm:$0xf]
        %v400 = vld [vmem:[#allocation2 + $0x8c] sm:$0xf]
        %v401 = vld [vmem:[%s1] sm:$0xf]
        %v402 = vld [vmem:[%s1 + $0x4] sm:$0xf]
        %v403 = vld [vmem:[%s1 + $0x8] sm:$0xf]
        %v404 = vld [vmem:[%s1 + $0xc] sm:$0xf]
        %v405 = vld [vmem:[%s1 + $0x10] sm:$0xf]
        %v406 = vld [vmem:[%s1 + $0x14] sm:$0xf]
        %v407 = vld [vmem:[%s1 + $0x18] sm:$0xf]
        %v408 = vld [vmem:[%s1 + $0x1c] sm:$0xf]
        %v409 = vld [vmem:[%s1 + $0x20] sm:$0xf]
        %v410 = vld [vmem:[%s1 + $0x24] sm:$0xf]
        %v411 = vld [vmem:[%s1 + $0x28] sm:$0xf]
        %v412 = vld [vmem:[%s1 + $0x2c] sm:$0xf]
        %v413 = vld [vmem:[%s1 + $0x30] sm:$0xf]
        %v414 = vld [vmem:[%s1 + $0x34] sm:$0xf]
        %v415 = vld [vmem:[%s1 + $0x38] sm:$0xf]
        %v416 = vld [vmem:[%s1 + $0x3c] sm:$0xf]
        %v417 = vld [vmem:[%s4] sm:$0x1]
        %v419 = vperm.slane %v417, 0
        %v457 = vunpack.c.l.b16 %v365
        %v458 = vunpack.c.l.b16 %v366
        %v459 = vunpack.c.l.b16 %v367
        %v460 = vunpack.c.l.b16 %v368
        %v461 = vunpack.c.l.b16 %v369
        %v462 = vunpack.c.l.b16 %v370
        %v463 = vunpack.c.l.b16 %v371
        %v464 = vunpack.c.l.b16 %v372
        %v465 = vunpack.c.l.b16 %v373
        %v466 = vunpack.c.l.b16 %v374
        %v467 = vunpack.c.l.b16 %v375
        %v468 = vunpack.c.l.b16 %v376
        %v469 = vunpack.c.l.b16 %v377
        %v470 = vunpack.c.l.b16 %v378
        %v471 = vunpack.c.l.b16 %v379
        %v472 = vunpack.c.l.b16 %v380
        %v473 = vunpack.c.l.b16 %v381
        %v474 = vunpack.c.l.b16 %v382
        %v475 = vunpack.c.l.b16 %v383
        %v476 = vunpack.c.l.b16 %v384
        %v477 = vunpack.c.l.b16 %v385
        %v478 = vunpack.c.l.b16 %v386
        %v479 = vunpack.c.l.b16 %v387
        %v480 = vunpack.c.l.b16 %v388
        %v481 = vunpack.c.l.b16 %v389
        %v482 = vunpack.c.l.b16 %v390
        %v483 = vunpack.c.l.b16 %v391
        %v484 = vunpack.c.l.b16 %v392
        %v485 = vunpack.c.l.b16 %v393
        %v486 = vunpack.c.l.b16 %v394
        %v487 = vunpack.c.l.b16 %v395
        %v488 = vunpack.c.l.b16 %v396
        %v489 = vunpack.c.l.b16 %v397
        %v490 = vunpack.c.l.b16 %v398
        %v491 = vunpack.c.l.b16 %v399
        %v492 = vunpack.c.l.b16 %v400
        %v493 = vpack.c.b16 %v458, %v457
        %v494 = vpack.c.b16 %v460, %v459
        %v495 = vpack.c.b16 %v462, %v461
        %v496 = vpack.c.b16 %v464, %v463
        %v497 = vpack.c.b16 %v466, %v465
        %v498 = vpack.c.b16 %v468, %v467
        %v499 = vpack.c.b16 %v470, %v469
        %v500 = vpack.c.b16 %v472, %v471
        %v501 = vpack.c.b16 %v474, %v473
        %v502 = vpack.c.b16 %v476, %v475
        %v503 = vpack.c.b16 %v478, %v477
        %v504 = vpack.c.b16 %v480, %v479
        %v505 = vpack.c.b16 %v482, %v481
        %v506 = vpack.c.b16 %v484, %v483
        %v507 = vpack.c.b16 %v486, %v485
        %v508 = vpack.c.b16 %v488, %v487
        %v509 = vpack.c.b16 %v490, %v489
        %v510 = vpack.c.b16 %v492, %v491
        %v545 = vunpack.c.l.b16 %v401
        %v546 = vunpack.c.l.b16 %v402
        %v547 = vunpack.c.l.b16 %v403
        %v548 = vunpack.c.l.b16 %v404
        %v549 = vunpack.c.l.b16 %v405
        %v550 = vunpack.c.l.b16 %v406
        %v551 = vunpack.c.l.b16 %v407
        %v552 = vunpack.c.l.b16 %v408
        %v553 = vunpack.c.l.b16 %v409
        %v554 = vunpack.c.l.b16 %v410
        %v555 = vunpack.c.l.b16 %v411
        %v556 = vunpack.c.l.b16 %v412
        %v557 = vunpack.c.l.b16 %v413
        %v558 = vunpack.c.l.b16 %v414
        %v559 = vunpack.c.l.b16 %v415
        %v560 = vunpack.c.l.b16 %v416
        %v561 = vpack.c.b16 %v546, %v545
        %v562 = vpack.c.b16 %v548, %v547
        %v563 = vpack.c.b16 %v550, %v549
        %v564 = vpack.c.b16 %v552, %v551
        %v565 = vpack.c.b16 %v554, %v553
        %v566 = vpack.c.b16 %v556, %v555
        %v567 = vpack.c.b16 %v558, %v557
        %v568 = vpack.c.b16 %v560, %v559
        %577 = vmatpush.bf16.msra.mxu0 %v568
        %578 = vmatpush.bf16.msra.mxu0 %v567
        %579 = vmatpush.bf16.msra.mxu0 %v566
        %580 = vmatpush.bf16.msra.mxu0 %v565
        %581 = vmatpush.bf16.msra.mxu0 %v564
        %582 = vmatpush.bf16.msra.mxu0 %v563
        %583 = vmatpush.bf16.msra.mxu0 %v562
        %584 = vmatpush.bf16.msra.mxu0 %v561
        %585 = vmatmul.bf16.gmra.mxu0 %v493
        %v586 = vpop.f32.mrf.mxu0
        %v587 = vadd.f32 %v419, %v586
        %v588 = vpop.f32.mrf.mxu0
        %v589 = vadd.f32 %v419, %v588
        %590 = vmatmul.bf16.gmra.mxu0 %v494
        %v591 = vpop.f32.mrf.mxu0
        %v592 = vadd.f32 %v419, %v591
        %v593 = vpop.f32.mrf.mxu0
        %v594 = vadd.f32 %v419, %v593
        %595 = vmatmul.bf16.gmra.mxu0 %v495
        %v596 = vpop.f32.mrf.mxu0
        %v597 = vadd.f32 %v419, %v596
        %v598 = vpop.f32.mrf.mxu0
        %v599 = vadd.f32 %v419, %v598
        %600 = vmatmul.bf16.gmra.mxu0 %v496
        %v601 = vpop.f32.mrf.mxu0
        %v602 = vadd.f32 %v419, %v601
        %v603 = vpop.f32.mrf.mxu0
        %v604 = vadd.f32 %v419, %v603
        %605 = vmatmul.bf16.gmra.mxu0 %v497
        %v606 = vpop.f32.mrf.mxu0
        %v607 = vadd.f32 %v419, %v606
        %v608 = vpop.f32.mrf.mxu0
        %v609 = vadd.f32 %v419, %v608
        %610 = vmatmul.bf16.gmra.mxu0 %v498
        %v611 = vpop.f32.mrf.mxu0
        %v612 = vadd.f32 %v419, %v611
        %v613 = vpop.f32.mrf.mxu0
        %v614 = vadd.f32 %v419, %v613
        %615 = vmatmul.bf16.gmra.mxu0 %v499
        %v616 = vpop.f32.mrf.mxu0
        %v617 = vadd.f32 %v419, %v616
        %v618 = vpop.f32.mrf.mxu0
        %v619 = vadd.f32 %v419, %v618
        %620 = vmatmul.bf16.gmra.mxu0 %v500
        %v621 = vpop.f32.mrf.mxu0
        %v622 = vadd.f32 %v419, %v621
        %v623 = vpop.f32.mrf.mxu0
        %v624 = vadd.f32 %v419, %v623
        %625 = vmatmul.bf16.gmra.mxu0 %v501
        %v626 = vpop.f32.mrf.mxu0
        %v627 = vadd.f32 %v419, %v626
        %v628 = vpop.f32.mrf.mxu0
        %v629 = vadd.f32 %v419, %v628
        %630 = vmatmul.bf16.gmra.mxu0 %v502
        %v631 = vpop.f32.mrf.mxu0
        %v632 = vadd.f32 %v419, %v631
        %v633 = vpop.f32.mrf.mxu0
        %v634 = vadd.f32 %v419, %v633
        %635 = vmatmul.bf16.gmra.mxu0 %v503
        %v636 = vpop.f32.mrf.mxu0
        %v637 = vadd.f32 %v419, %v636
        %v638 = vpop.f32.mrf.mxu0
        %v639 = vadd.f32 %v419, %v638
        %640 = vmatmul.bf16.gmra.mxu0 %v504
        %v641 = vpop.f32.mrf.mxu0
        %v642 = vadd.f32 %v419, %v641
        %v643 = vpop.f32.mrf.mxu0
        %v644 = vadd.f32 %v419, %v643
        %645 = vmatmul.bf16.gmra.mxu0 %v505
        %v646 = vpop.f32.mrf.mxu0
        %v647 = vadd.f32 %v419, %v646
        %v648 = vpop.f32.mrf.mxu0
        %v649 = vadd.f32 %v419, %v648
        %650 = vmatmul.bf16.gmra.mxu0 %v506
        %v651 = vpop.f32.mrf.mxu0
        %v652 = vadd.f32 %v419, %v651
        %v653 = vpop.f32.mrf.mxu0
        %v654 = vadd.f32 %v419, %v653
        %655 = vmatmul.bf16.gmra.mxu0 %v507
        %v656 = vpop.f32.mrf.mxu0
        %v657 = vadd.f32 %v419, %v656
        %v658 = vpop.f32.mrf.mxu0
        %v659 = vadd.f32 %v419, %v658
        %660 = vmatmul.bf16.gmra.mxu0 %v508
        %v661 = vpop.f32.mrf.mxu0
        %v662 = vadd.f32 %v419, %v661
        %v663 = vpop.f32.mrf.mxu0
        %v664 = vadd.f32 %v419, %v663
        %665 = vmatmul.bf16.gmra.mxu0 %v509
        %v666 = vpop.f32.mrf.mxu0
        %v667 = vadd.f32 %v419, %v666
        %v668 = vpop.f32.mrf.mxu0
        %v669 = vadd.f32 %v419, %v668
        %670 = vmatmul.bf16.gmra.mxu0 %v510
        %v671 = vpop.f32.mrf.mxu0
        %v672 = vadd.f32 %v419, %v671
        %v673 = vpop.f32.mrf.mxu0
        %v674 = vadd.f32 %v419, %v673
        %675 = vdwg.mxu0
        %v676 = vmax.f32 %v587, 0.0
        %v677 = vmax.f32 %v589, 0.0
        %v678 = vmax.f32 %v592, 0.0
        %v679 = vmax.f32 %v594, 0.0
        %v680 = vmax.f32 %v597, 0.0
        %v681 = vmax.f32 %v599, 0.0
        %v682 = vmax.f32 %v602, 0.0
        %v683 = vmax.f32 %v604, 0.0
        %v684 = vmax.f32 %v607, 0.0
        %v685 = vmax.f32 %v609, 0.0
        %v686 = vmax.f32 %v612, 0.0
        %v687 = vmax.f32 %v614, 0.0
        %v688 = vmax.f32 %v617, 0.0
        %v689 = vmax.f32 %v619, 0.0
        %v690 = vmax.f32 %v622, 0.0
        %v691 = vmax.f32 %v624, 0.0
        %v692 = vmax.f32 %v627, 0.0
        %v693 = vmax.f32 %v629, 0.0
        %v694 = vmax.f32 %v632, 0.0
        %v695 = vmax.f32 %v634, 0.0
        %v696 = vmax.f32 %v637, 0.0
        %v697 = vmax.f32 %v639, 0.0
        %v698 = vmax.f32 %v642, 0.0
        %v699 = vmax.f32 %v644, 0.0
        %v700 = vmax.f32 %v647, 0.0
        %v701 = vmax.f32 %v649, 0.0
        %v702 = vmax.f32 %v652, 0.0
        %v703 = vmax.f32 %v654, 0.0
        %v704 = vmax.f32 %v657, 0.0
        %v705 = vmax.f32 %v659, 0.0
        %v706 = vmax.f32 %v662, 0.0
        %v707 = vmax.f32 %v664, 0.0
        %v708 = vmax.f32 %v667, 0.0
        %v709 = vmax.f32 %v669, 0.0
        %v710 = vmax.f32 %v672, 0.0
        %v711 = vmax.f32 %v674, 0.0
        %v712 = vpack.c.bf16 %v676, %v676
        %v713 = vpack.c.bf16 %v677, %v677
        %v714 = vpack.c.bf16 %v678, %v678
        %v715 = vpack.c.bf16 %v679, %v679
        %v716 = vpack.c.bf16 %v680, %v680
        %v717 = vpack.c.bf16 %v681, %v681
        %v718 = vpack.c.bf16 %v682, %v682
        %v719 = vpack.c.bf16 %v683, %v683
        %v720 = vpack.c.bf16 %v684, %v684
        %v721 = vpack.c.bf16 %v685, %v685
        %v722 = vpack.c.bf16 %v686, %v686
        %v723 = vpack.c.bf16 %v687, %v687
        %v724 = vpack.c.bf16 %v688, %v688
        %v725 = vpack.c.bf16 %v689, %v689
        %v726 = vpack.c.bf16 %v690, %v690
        %v727 = vpack.c.bf16 %v691, %v691
        %v728 = vpack.c.bf16 %v692, %v692
        %v729 = vpack.c.bf16 %v693, %v693
        %v730 = vpack.c.bf16 %v694, %v694
        %v731 = vpack.c.bf16 %v695, %v695
        %v732 = vpack.c.bf16 %v696, %v696
        %v733 = vpack.c.bf16 %v697, %v697
        %v734 = vpack.c.bf16 %v698, %v698
        %v735 = vpack.c.bf16 %v699, %v699
        %v736 = vpack.c.bf16 %v700, %v700
        %v737 = vpack.c.bf16 %v701, %v701
        %v738 = vpack.c.bf16 %v702, %v702
        %v739 = vpack.c.bf16 %v703, %v703
        %v740 = vpack.c.bf16 %v704, %v704
        %v741 = vpack.c.bf16 %v705, %v705
        %v742 = vpack.c.bf16 %v706, %v706
        %v743 = vpack.c.bf16 %v707, %v707
        %v744 = vpack.c.bf16 %v708, %v708
        %v745 = vpack.c.bf16 %v709, %v709
        %v746 = vpack.c.bf16 %v710, %v710
        %v747 = vpack.c.bf16 %v711, %v711
        %v784 = vunpack.c.l.b16 %v712
        %v785 = vunpack.c.l.b16 %v713
        %v786 = vunpack.c.l.b16 %v714
        %v787 = vunpack.c.l.b16 %v715
        %v788 = vunpack.c.l.b16 %v716
        %v789 = vunpack.c.l.b16 %v717
        %v790 = vunpack.c.l.b16 %v718
        %v791 = vunpack.c.l.b16 %v719
        %v792 = vunpack.c.l.b16 %v720
        %v793 = vunpack.c.l.b16 %v721
        %v794 = vunpack.c.l.b16 %v722
        %v795 = vunpack.c.l.b16 %v723
        %v796 = vunpack.c.l.b16 %v724
        %v797 = vunpack.c.l.b16 %v725
        %v798 = vunpack.c.l.b16 %v726
        %v799 = vunpack.c.l.b16 %v727
        %v800 = vunpack.c.l.b16 %v728
        %v801 = vunpack.c.l.b16 %v729
        %v802 = vunpack.c.l.b16 %v730
        %v803 = vunpack.c.l.b16 %v731
        %v804 = vunpack.c.l.b16 %v732
        %v805 = vunpack.c.l.b16 %v733
        %v806 = vunpack.c.l.b16 %v734
        %v807 = vunpack.c.l.b16 %v735
        %v808 = vunpack.c.l.b16 %v736
        %v809 = vunpack.c.l.b16 %v737
        %v810 = vunpack.c.l.b16 %v738
        %v811 = vunpack.c.l.b16 %v739
        %v812 = vunpack.c.l.b16 %v740
        %v813 = vunpack.c.l.b16 %v741
        %v814 = vunpack.c.l.b16 %v742
        %v815 = vunpack.c.l.b16 %v743
        %v816 = vunpack.c.l.b16 %v744
        %v817 = vunpack.c.l.b16 %v745
        %v818 = vunpack.c.l.b16 %v746
        %v819 = vunpack.c.l.b16 %v747
        %v820 = vpack.c.b16 %v785, %v784
        %v821 = vpack.c.b16 %v787, %v786
        %v822 = vpack.c.b16 %v789, %v788
        %v823 = vpack.c.b16 %v791, %v790
        %v824 = vpack.c.b16 %v793, %v792
        %v825 = vpack.c.b16 %v795, %v794
        %v826 = vpack.c.b16 %v797, %v796
        %v827 = vpack.c.b16 %v799, %v798
        %v828 = vpack.c.b16 %v801, %v800
        %v829 = vpack.c.b16 %v803, %v802
        %v830 = vpack.c.b16 %v805, %v804
        %v831 = vpack.c.b16 %v807, %v806
        %v832 = vpack.c.b16 %v809, %v808
        %v833 = vpack.c.b16 %v811, %v810
        %v834 = vpack.c.b16 %v813, %v812
        %v835 = vpack.c.b16 %v815, %v814
        %v836 = vpack.c.b16 %v817, %v816
        %v837 = vpack.c.b16 %v819, %v818
        %vm838 = vsmask.f32 256
        %v840 = vshrl.u32 %v820, 16
        %v842 = vrot.slane %v840, 7
        %v843 = vshll.u32 %v820, 16
        %v845 = vor.u32 %v842, %v843
        %v847 = vshrl.u32 %v821, 16
        %v849 = vrot.slane %v847, 7
        %v850 = vshll.u32 %v821, 16
        %v852 = vor.u32 %v849, %v850
        %v853 = vsel %vm838, %v842, %v852
        %v855 = vshrl.u32 %v822, 16
        %v857 = vrot.slane %v855, 7
        %v858 = vshll.u32 %v822, 16
        %v860 = vor.u32 %v857, %v858
        %v861 = vsel %vm838, %v849, %v860
        %v863 = vshrl.u32 %v823, 16
        %v865 = vrot.slane %v863, 7
        %v866 = vshll.u32 %v823, 16
        %v868 = vor.u32 %v865, %v866
        %v869 = vsel %vm838, %v857, %v868
        %v871 = vshrl.u32 %v824, 16
        %v873 = vrot.slane %v871, 7
        %v874 = vshll.u32 %v824, 16
        %v876 = vor.u32 %v873, %v874
        %v877 = vsel %vm838, %v865, %v876
        %v879 = vshrl.u32 %v825, 16
        %v881 = vrot.slane %v879, 7
        %v882 = vshll.u32 %v825, 16
        %v884 = vor.u32 %v881, %v882
        %v885 = vsel %vm838, %v873, %v884
        %v887 = vshrl.u32 %v826, 16
        %v889 = vrot.slane %v887, 7
        %v890 = vshll.u32 %v826, 16
        %v892 = vor.u32 %v889, %v890
        %v893 = vsel %vm838, %v881, %v892
        %v895 = vshrl.u32 %v827, 16
        %v897 = vrot.slane %v895, 7
        %v898 = vshll.u32 %v827, 16
        %v900 = vor.u32 %v897, %v898
        %v901 = vsel %vm838, %v889, %v900
        %v903 = vshrl.u32 %v828, 16
        %v905 = vrot.slane %v903, 7
        %v906 = vshll.u32 %v828, 16
        %v908 = vor.u32 %v905, %v906
        %v909 = vsel %vm838, %v897, %v908
        %v911 = vshrl.u32 %v829, 16
        %v913 = vrot.slane %v911, 7
        %v914 = vshll.u32 %v829, 16
        %v916 = vor.u32 %v913, %v914
        %v917 = vsel %vm838, %v905, %v916
        %v919 = vshrl.u32 %v830, 16
        %v921 = vrot.slane %v919, 7
        %v922 = vshll.u32 %v830, 16
        %v924 = vor.u32 %v921, %v922
        %v925 = vsel %vm838, %v913, %v924
        %v927 = vshrl.u32 %v831, 16
        %v929 = vrot.slane %v927, 7
        %v930 = vshll.u32 %v831, 16
        %v932 = vor.u32 %v929, %v930
        %v933 = vsel %vm838, %v921, %v932
        %v935 = vshrl.u32 %v832, 16
        %v937 = vrot.slane %v935, 7
        %v938 = vshll.u32 %v832, 16
        %v940 = vor.u32 %v937, %v938
        %v941 = vsel %vm838, %v929, %v940
        %v943 = vshrl.u32 %v833, 16
        %v945 = vrot.slane %v943, 7
        %v946 = vshll.u32 %v833, 16
        %v948 = vor.u32 %v945, %v946
        %v949 = vsel %vm838, %v937, %v948
        %v951 = vshrl.u32 %v834, 16
        %v953 = vrot.slane %v951, 7
        %v954 = vshll.u32 %v834, 16
        %v956 = vor.u32 %v953, %v954
        %v957 = vsel %vm838, %v945, %v956
        %v959 = vshrl.u32 %v835, 16
        %v961 = vrot.slane %v959, 7
        %v962 = vshll.u32 %v835, 16
        %v964 = vor.u32 %v961, %v962
        %v965 = vsel %vm838, %v953, %v964
        %v967 = vshrl.u32 %v836, 16
        %v969 = vrot.slane %v967, 7
        %v970 = vshll.u32 %v836, 16
        %v972 = vor.u32 %v969, %v970
        %v973 = vsel %vm838, %v961, %v972
        %v975 = vshrl.u32 %v837, 16
        %v977 = vrot.slane %v975, 7
        %v978 = vshll.u32 %v837, 16
        %v980 = vor.u32 %v977, %v978
        %v981 = vsel %vm838, %v969, %v980
        %vm1000 = vcmask 1040384
        %vm1001 = vmand %vm1000, %vm838
        %v1002 = vsel %vm1001, 0, %v845
        %vm1003 = vsmask.f32 7424
        %v1004 = vrot.slane %v843, 1
        %v1005 = vor.u32 %v840, %v1004
        %v1006 = vrot.slane %v850, 1
        %v1007 = vsel %vm1003, %v1005, %v1006
        %v1008 = vor.u32 %v847, %v1006
        %v1009 = vrot.slane %v858, 1
        %v1010 = vsel %vm1003, %v1008, %v1009
        %v1011 = vor.u32 %v855, %v1009
        %v1012 = vrot.slane %v866, 1
        %v1013 = vsel %vm1003, %v1011, %v1012
        %v1014 = vor.u32 %v863, %v1012
        %v1015 = vrot.slane %v874, 1
        %v1016 = vsel %vm1003, %v1014, %v1015
        %v1017 = vor.u32 %v871, %v1015
        %v1018 = vrot.slane %v882, 1
        %v1019 = vsel %vm1003, %v1017, %v1018
        %v1020 = vor.u32 %v879, %v1018
        %v1021 = vrot.slane %v890, 1
        %v1022 = vsel %vm1003, %v1020, %v1021
        %v1023 = vor.u32 %v887, %v1021
        %v1024 = vrot.slane %v898, 1
        %v1025 = vsel %vm1003, %v1023, %v1024
        %v1026 = vor.u32 %v895, %v1024
        %v1027 = vrot.slane %v906, 1
        %v1028 = vsel %vm1003, %v1026, %v1027
        %v1029 = vor.u32 %v903, %v1027
        %v1030 = vrot.slane %v914, 1
        %v1031 = vsel %vm1003, %v1029, %v1030
        %v1032 = vor.u32 %v911, %v1030
        %v1033 = vrot.slane %v922, 1
        %v1034 = vsel %vm1003, %v1032, %v1033
        %v1035 = vor.u32 %v919, %v1033
        %v1036 = vrot.slane %v930, 1
        %v1037 = vsel %vm1003, %v1035, %v1036
        %v1038 = vor.u32 %v927, %v1036
        %v1039 = vrot.slane %v938, 1
        %v1040 = vsel %vm1003, %v1038, %v1039
        %v1041 = vor.u32 %v935, %v1039
        %v1042 = vrot.slane %v946, 1
        %v1043 = vsel %vm1003, %v1041, %v1042
        %v1044 = vor.u32 %v943, %v1042
        %v1045 = vrot.slane %v954, 1
        %v1046 = vsel %vm1003, %v1044, %v1045
        %v1047 = vor.u32 %v951, %v1045
        %v1048 = vrot.slane %v962, 1
        %v1049 = vsel %vm1003, %v1047, %v1048
        %v1050 = vor.u32 %v959, %v1048
        %v1051 = vrot.slane %v970, 1
        %v1052 = vsel %vm1003, %v1050, %v1051
        %v1053 = vor.u32 %v967, %v1051
        %v1054 = vrot.slane %v978, 1
        %v1055 = vsel %vm1003, %v1053, %v1054
        %v1056 = vor.u32 %v975, %v1054
        %vm1075 = vcmask 1047552
        %vm1076 = vmand %vm1075, %vm1003
        %v1077 = vsel %vm1076, %v1056, 0
        %v1078 = vld [vmem:[%s7] sm:$0xff]
        %v1079 = vld [vmem:[%s7 + $0x8] sm:$0xff]
        %v1080 = vld [vmem:[%s7 + $0x10] sm:$0xff]
        %v1081 = vld [vmem:[%s7 + $0x18] sm:$0xff]
        %v1082 = vld [vmem:[%s7 + $0x20] sm:$0xff]
        %v1083 = vld [vmem:[%s7 + $0x28] sm:$0xff]
        %v1084 = vld [vmem:[%s7 + $0x30] sm:$0xff]
        %v1085 = vld [vmem:[%s7 + $0x38] sm:$0xff]
        %v1086 = vld [vmem:[%s7 + $0x40] sm:$0xff]
        %v1087 = vld [vmem:[%s7 + $0x48] sm:$0xff]
        %v1088 = vld [vmem:[%s7 + $0x50] sm:$0xff]
        %v1089 = vld [vmem:[%s7 + $0x58] sm:$0xff]
        %v1090 = vld [vmem:[%s7 + $0x60] sm:$0xff]
        %v1091 = vld [vmem:[%s7 + $0x68] sm:$0xff]
        %v1092 = vld [vmem:[%s7 + $0x70] sm:$0xff]
        %v1093 = vld [vmem:[%s7 + $0x78] sm:$0xff]
        %v1094 = vld [vmem:[%s7 + $0x80] sm:$0xff]
        %v1095 = vld [vmem:[%s7 + $0x88] sm:$0xff]
        %v1096 = vld [vmem:[%s7 + $0x90] sm:$0xff]
        %v1097 = vld [vmem:[%s7 + $0x98] sm:$0xff]
        %v1098 = vld [vmem:[%s7 + $0xa0] sm:$0xff]
        %v1099 = vld [vmem:[%s7 + $0xa8] sm:$0xff]
        %v1100 = vld [vmem:[%s7 + $0xb0] sm:$0xff]
        %v1101 = vld [vmem:[%s7 + $0xb8] sm:$0xff]
        %v1102 = vld [vmem:[%s7 + $0xc0] sm:$0xff]
        %v1103 = vld [vmem:[%s7 + $0xc8] sm:$0xff]
        %v1104 = vld [vmem:[%s7 + $0xd0] sm:$0xff]
        %v1105 = vld [vmem:[%s7 + $0xd8] sm:$0xff]
        %v1106 = vld [vmem:[%s7 + $0xe0] sm:$0xff]
        %v1107 = vld [vmem:[%s7 + $0xe8] sm:$0xff]
        %v1108 = vld [vmem:[%s7 + $0xf0] sm:$0xff]
        %v1109 = vld [vmem:[%s7 + $0xf8] sm:$0xff]
        %v1110 = vld [vmem:[%s7 + $0x100] sm:$0xff]
        %v1111 = vld [vmem:[%s7 + $0x108] sm:$0xff]
        %v1112 = vld [vmem:[%s7 + $0x110] sm:$0xff]
        %v1113 = vld [vmem:[%s7 + $0x118] sm:$0xff]
        %vm1114 = vcmp.gt.f32.partialorder %v1078, 0.5
        %vm1115 = vcmp.gt.f32.partialorder %v1079, 0.5
        %vm1116 = vcmp.gt.f32.partialorder %v1080, 0.5
        %vm1117 = vcmp.gt.f32.partialorder %v1081, 0.5
        %vm1118 = vcmp.gt.f32.partialorder %v1082, 0.5
        %vm1119 = vcmp.gt.f32.partialorder %v1083, 0.5
        %vm1120 = vcmp.gt.f32.partialorder %v1084, 0.5
        %vm1121 = vcmp.gt.f32.partialorder %v1085, 0.5
        %vm1122 = vcmp.gt.f32.partialorder %v1086, 0.5
        %vm1123 = vcmp.gt.f32.partialorder %v1087, 0.5
        %vm1124 = vcmp.gt.f32.partialorder %v1088, 0.5
        %vm1125 = vcmp.gt.f32.partialorder %v1089, 0.5
        %vm1126 = vcmp.gt.f32.partialorder %v1090, 0.5
        %vm1127 = vcmp.gt.f32.partialorder %v1091, 0.5
        %vm1128 = vcmp.gt.f32.partialorder %v1092, 0.5
        %vm1129 = vcmp.gt.f32.partialorder %v1093, 0.5
        %vm1130 = vcmp.gt.f32.partialorder %v1094, 0.5
        %vm1131 = vcmp.gt.f32.partialorder %v1095, 0.5
        %vm1132 = vcmp.gt.f32.partialorder %v1096, 0.5
        %vm1133 = vcmp.gt.f32.partialorder %v1097, 0.5
        %vm1134 = vcmp.gt.f32.partialorder %v1098, 0.5
        %vm1135 = vcmp.gt.f32.partialorder %v1099, 0.5
        %vm1136 = vcmp.gt.f32.partialorder %v1100, 0.5
        %vm1137 = vcmp.gt.f32.partialorder %v1101, 0.5
        %vm1138 = vcmp.gt.f32.partialorder %v1102, 0.5
        %vm1139 = vcmp.gt.f32.partialorder %v1103, 0.5
        %vm1140 = vcmp.gt.f32.partialorder %v1104, 0.5
        %vm1141 = vcmp.gt.f32.partialorder %v1105, 0.5
        %vm1142 = vcmp.gt.f32.partialorder %v1106, 0.5
        %vm1143 = vcmp.gt.f32.partialorder %v1107, 0.5
        %vm1144 = vcmp.gt.f32.partialorder %v1108, 0.5
        %vm1145 = vcmp.gt.f32.partialorder %v1109, 0.5
        %vm1146 = vcmp.gt.f32.partialorder %v1110, 0.5
        %vm1147 = vcmp.gt.f32.partialorder %v1111, 0.5
        %vm1148 = vcmp.gt.f32.partialorder %v1112, 0.5
        %vm1149 = vcmp.gt.f32.partialorder %v1113, 0.5
        %v1150 = vld [vmem:[%s8] sm:$0xff]
        %v1151 = vld [vmem:[%s8 + $0x8] sm:$0xff]
        %v1152 = vld [vmem:[%s8 + $0x10] sm:$0xff]
        %v1153 = vld [vmem:[%s8 + $0x18] sm:$0xff]
        %v1154 = vld [vmem:[%s8 + $0x20] sm:$0xff]
        %v1155 = vld [vmem:[%s8 + $0x28] sm:$0xff]
        %v1156 = vld [vmem:[%s8 + $0x30] sm:$0xff]
        %v1157 = vld [vmem:[%s8 + $0x38] sm:$0xff]
        %v1158 = vld [vmem:[%s8 + $0x40] sm:$0xff]
        %v1159 = vld [vmem:[%s8 + $0x48] sm:$0xff]
        %v1160 = vld [vmem:[%s8 + $0x50] sm:$0xff]
        %v1161 = vld [vmem:[%s8 + $0x58] sm:$0xff]
        %v1162 = vld [vmem:[%s8 + $0x60] sm:$0xff]
        %v1163 = vld [vmem:[%s8 + $0x68] sm:$0xff]
        %v1164 = vld [vmem:[%s8 + $0x70] sm:$0xff]
        %v1165 = vld [vmem:[%s8 + $0x78] sm:$0xff]
        %v1166 = vld [vmem:[%s8 + $0x80] sm:$0xff]
        %v1167 = vld [vmem:[%s8 + $0x88] sm:$0xff]
        %v1168 = vld [vmem:[%s8 + $0x90] sm:$0xff]
        %v1169 = vld [vmem:[%s8 + $0x98] sm:$0xff]
        %v1170 = vld [vmem:[%s8 + $0xa0] sm:$0xff]
        %v1171 = vld [vmem:[%s8 + $0xa8] sm:$0xff]
        %v1172 = vld [vmem:[%s8 + $0xb0] sm:$0xff]
        %v1173 = vld [vmem:[%s8 + $0xb8] sm:$0xff]
        %v1174 = vld [vmem:[%s8 + $0xc0] sm:$0xff]
        %v1175 = vld [vmem:[%s8 + $0xc8] sm:$0xff]
        %v1176 = vld [vmem:[%s8 + $0xd0] sm:$0xff]
        %v1177 = vld [vmem:[%s8 + $0xd8] sm:$0xff]
        %v1178 = vld [vmem:[%s8 + $0xe0] sm:$0xff]
        %v1179 = vld [vmem:[%s8 + $0xe8] sm:$0xff]
        %v1180 = vld [vmem:[%s8 + $0xf0] sm:$0xff]
        %v1181 = vld [vmem:[%s8 + $0xf8] sm:$0xff]
        %v1182 = vld [vmem:[%s8 + $0x100] sm:$0xff]
        %v1183 = vld [vmem:[%s8 + $0x108] sm:$0xff]
        %v1184 = vld [vmem:[%s8 + $0x110] sm:$0xff]
        %v1185 = vld [vmem:[%s8 + $0x118] sm:$0xff]
        %vm1186 = vcmp.gt.f32.partialorder %v1150, 0.5
        %vm1187 = vcmp.gt.f32.partialorder %v1151, 0.5
        %vm1188 = vcmp.gt.f32.partialorder %v1152, 0.5
        %vm1189 = vcmp.gt.f32.partialorder %v1153, 0.5
        %vm1190 = vcmp.gt.f32.partialorder %v1154, 0.5
        %vm1191 = vcmp.gt.f32.partialorder %v1155, 0.5
        %vm1192 = vcmp.gt.f32.partialorder %v1156, 0.5
        %vm1193 = vcmp.gt.f32.partialorder %v1157, 0.5
        %vm1194 = vcmp.gt.f32.partialorder %v1158, 0.5
        %vm1195 = vcmp.gt.f32.partialorder %v1159, 0.5
        %vm1196 = vcmp.gt.f32.partialorder %v1160, 0.5
        %vm1197 = vcmp.gt.f32.partialorder %v1161, 0.5
        %vm1198 = vcmp.gt.f32.partialorder %v1162, 0.5
        %vm1199 = vcmp.gt.f32.partialorder %v1163, 0.5
        %vm1200 = vcmp.gt.f32.partialorder %v1164, 0.5
        %vm1201 = vcmp.gt.f32.partialorder %v1165, 0.5
        %vm1202 = vcmp.gt.f32.partialorder %v1166, 0.5
        %vm1203 = vcmp.gt.f32.partialorder %v1167, 0.5
        %vm1204 = vcmp.gt.f32.partialorder %v1168, 0.5
        %vm1205 = vcmp.gt.f32.partialorder %v1169, 0.5
        %vm1206 = vcmp.gt.f32.partialorder %v1170, 0.5
        %vm1207 = vcmp.gt.f32.partialorder %v1171, 0.5
        %vm1208 = vcmp.gt.f32.partialorder %v1172, 0.5
        %vm1209 = vcmp.gt.f32.partialorder %v1173, 0.5
        %vm1210 = vcmp.gt.f32.partialorder %v1174, 0.5
        %vm1211 = vcmp.gt.f32.partialorder %v1175, 0.5
        %vm1212 = vcmp.gt.f32.partialorder %v1176, 0.5
        %vm1213 = vcmp.gt.f32.partialorder %v1177, 0.5
        %vm1214 = vcmp.gt.f32.partialorder %v1178, 0.5
        %vm1215 = vcmp.gt.f32.partialorder %v1179, 0.5
        %vm1216 = vcmp.gt.f32.partialorder %v1180, 0.5
        %vm1217 = vcmp.gt.f32.partialorder %v1181, 0.5
        %vm1218 = vcmp.gt.f32.partialorder %v1182, 0.5
        %vm1219 = vcmp.gt.f32.partialorder %v1183, 0.5
        %vm1220 = vcmp.gt.f32.partialorder %v1184, 0.5
        %vm1221 = vcmp.gt.f32.partialorder %v1185, 0.5
        %v1222 = vsel %vm1114, 1, 0
        %v1223 = vsel %vm1115, 1, 0
        %v1224 = vsel %vm1116, 1, 0
        %v1225 = vsel %vm1117, 1, 0
        %v1226 = vsel %vm1118, 1, 0
        %v1227 = vsel %vm1119, 1, 0
        %v1228 = vsel %vm1120, 1, 0
        %v1229 = vsel %vm1121, 1, 0
        %v1230 = vsel %vm1122, 1, 0
        %v1231 = vsel %vm1123, 1, 0
        %v1232 = vsel %vm1124, 1, 0
        %v1233 = vsel %vm1125, 1, 0
        %v1234 = vsel %vm1126, 1, 0
        %v1235 = vsel %vm1127, 1, 0
        %v1236 = vsel %vm1128, 1, 0
        %v1237 = vsel %vm1129, 1, 0
        %v1238 = vsel %vm1130, 1, 0
        %v1239 = vsel %vm1131, 1, 0
        %v1240 = vsel %vm1132, 1, 0
        %v1241 = vsel %vm1133, 1, 0
        %v1242 = vsel %vm1134, 1, 0
        %v1243 = vsel %vm1135, 1, 0
        %v1244 = vsel %vm1136, 1, 0
        %v1245 = vsel %vm1137, 1, 0
        %v1246 = vsel %vm1138, 1, 0
        %v1247 = vsel %vm1139, 1, 0
        %v1248 = vsel %vm1140, 1, 0
        %v1249 = vsel %vm1141, 1, 0
        %v1250 = vsel %vm1142, 1, 0
        %v1251 = vsel %vm1143, 1, 0
        %v1252 = vsel %vm1144, 1, 0
        %v1253 = vsel %vm1145, 1, 0
        %v1254 = vsel %vm1146, 1, 0
        %v1255 = vsel %vm1147, 1, 0
        %v1256 = vsel %vm1148, 1, 0
        %v1257 = vsel %vm1149, 1, 0
        %1258 = vset.pattern.permute.xlu0 0
        %1259 = vperm.xlu0 %1258, %v1222
        %v1260 = vpop.permute.xlu0 %1259
        %1261 = vset.pattern.permute.xlu0 0
        %1262 = vperm.xlu0 %1261, %v1223
        %v1263 = vpop.permute.xlu0 %1262
        %1264 = vset.pattern.permute.xlu0 0
        %1265 = vperm.xlu0 %1264, %v1224
        %v1266 = vpop.permute.xlu0 %1265
        %1267 = vset.pattern.permute.xlu0 0
        %1268 = vperm.xlu0 %1267, %v1225
        %v1269 = vpop.permute.xlu0 %1268
        %1270 = vset.pattern.permute.xlu0 0
        %1271 = vperm.xlu0 %1270, %v1226
        %v1272 = vpop.permute.xlu0 %1271
        %1273 = vset.pattern.permute.xlu0 0
        %1274 = vperm.xlu0 %1273, %v1227
        %v1275 = vpop.permute.xlu0 %1274
        %1276 = vset.pattern.permute.xlu0 0
        %1277 = vperm.xlu0 %1276, %v1228
        %v1278 = vpop.permute.xlu0 %1277
        %1279 = vset.pattern.permute.xlu0 0
        %1280 = vperm.xlu0 %1279, %v1229
        %v1281 = vpop.permute.xlu0 %1280
        %1282 = vset.pattern.permute.xlu0 0
        %1283 = vperm.xlu0 %1282, %v1230
        %v1284 = vpop.permute.xlu0 %1283
        %1285 = vset.pattern.permute.xlu0 0
        %1286 = vperm.xlu0 %1285, %v1231
        %v1287 = vpop.permute.xlu0 %1286
        %1288 = vset.pattern.permute.xlu0 0
        %1289 = vperm.xlu0 %1288, %v1232
        %v1290 = vpop.permute.xlu0 %1289
        %1291 = vset.pattern.permute.xlu0 0
        %1292 = vperm.xlu0 %1291, %v1233
        %v1293 = vpop.permute.xlu0 %1292
        %1294 = vset.pattern.permute.xlu0 0
        %1295 = vperm.xlu0 %1294, %v1234
        %v1296 = vpop.permute.xlu0 %1295
        %1297 = vset.pattern.permute.xlu0 0
        %1298 = vperm.xlu0 %1297, %v1235
        %v1299 = vpop.permute.xlu0 %1298
        %1300 = vset.pattern.permute.xlu0 0
        %1301 = vperm.xlu0 %1300, %v1236
        %v1302 = vpop.permute.xlu0 %1301
        %1303 = vset.pattern.permute.xlu0 0
        %1304 = vperm.xlu0 %1303, %v1237
        %v1305 = vpop.permute.xlu0 %1304
        %1306 = vset.pattern.permute.xlu0 0
        %1307 = vperm.xlu0 %1306, %v1238
        %v1308 = vpop.permute.xlu0 %1307
        %1309 = vset.pattern.permute.xlu0 0
        %1310 = vperm.xlu0 %1309, %v1239
        %v1311 = vpop.permute.xlu0 %1310
        %1312 = vset.pattern.permute.xlu0 0
        %1313 = vperm.xlu0 %1312, %v1240
        %v1314 = vpop.permute.xlu0 %1313
        %1315 = vset.pattern.permute.xlu0 0
        %1316 = vperm.xlu0 %1315, %v1241
        %v1317 = vpop.permute.xlu0 %1316
        %1318 = vset.pattern.permute.xlu0 0
        %1319 = vperm.xlu0 %1318, %v1242
        %v1320 = vpop.permute.xlu0 %1319
        %1321 = vset.pattern.permute.xlu0 0
        %1322 = vperm.xlu0 %1321, %v1243
        %v1323 = vpop.permute.xlu0 %1322
        %1324 = vset.pattern.permute.xlu0 0
        %1325 = vperm.xlu0 %1324, %v1244
        %v1326 = vpop.permute.xlu0 %1325
        %1327 = vset.pattern.permute.xlu0 0
        %1328 = vperm.xlu0 %1327, %v1245
        %v1329 = vpop.permute.xlu0 %1328
        %1330 = vset.pattern.permute.xlu0 0
        %1331 = vperm.xlu0 %1330, %v1246
        %v1332 = vpop.permute.xlu0 %1331
        %1333 = vset.pattern.permute.xlu0 0
        %1334 = vperm.xlu0 %1333, %v1247
        %v1335 = vpop.permute.xlu0 %1334
        %1336 = vset.pattern.permute.xlu0 0
        %1337 = vperm.xlu0 %1336, %v1248
        %v1338 = vpop.permute.xlu0 %1337
        %1339 = vset.pattern.permute.xlu0 0
        %1340 = vperm.xlu0 %1339, %v1249
        %v1341 = vpop.permute.xlu0 %1340
        %1342 = vset.pattern.permute.xlu0 0
        %1343 = vperm.xlu0 %1342, %v1250
        %v1344 = vpop.permute.xlu0 %1343
        %1345 = vset.pattern.permute.xlu0 0
        %1346 = vperm.xlu0 %1345, %v1251
        %v1347 = vpop.permute.xlu0 %1346
        %1348 = vset.pattern.permute.xlu0 0
        %1349 = vperm.xlu0 %1348, %v1252
        %v1350 = vpop.permute.xlu0 %1349
        %1351 = vset.pattern.permute.xlu0 0
        %1352 = vperm.xlu0 %1351, %v1253
        %v1353 = vpop.permute.xlu0 %1352
        %1354 = vset.pattern.permute.xlu0 0
        %1355 = vperm.xlu0 %1354, %v1254
        %v1356 = vpop.permute.xlu0 %1355
        %1357 = vset.pattern.permute.xlu0 0
        %1358 = vperm.xlu0 %1357, %v1255
        %v1359 = vpop.permute.xlu0 %1358
        %1360 = vset.pattern.permute.xlu0 0
        %1361 = vperm.xlu0 %1360, %v1256
        %v1362 = vpop.permute.xlu0 %1361
        %1363 = vset.pattern.permute.xlu0 0
        %1364 = vperm.xlu0 %1363, %v1257
        %v1365 = vpop.permute.xlu0 %1364
        %vm1366 = vcmp.eq.s32.totalorder %v1260, 1
        %vm1367 = vcmp.eq.s32.totalorder %v1263, 1
        %vm1368 = vcmp.eq.s32.totalorder %v1266, 1
        %vm1369 = vcmp.eq.s32.totalorder %v1269, 1
        %vm1370 = vcmp.eq.s32.totalorder %v1272, 1
        %vm1371 = vcmp.eq.s32.totalorder %v1275, 1
        %vm1372 = vcmp.eq.s32.totalorder %v1278, 1
        %vm1373 = vcmp.eq.s32.totalorder %v1281, 1
        %vm1374 = vcmp.eq.s32.totalorder %v1284, 1
        %vm1375 = vcmp.eq.s32.totalorder %v1287, 1
        %vm1376 = vcmp.eq.s32.totalorder %v1290, 1
        %vm1377 = vcmp.eq.s32.totalorder %v1293, 1
        %vm1378 = vcmp.eq.s32.totalorder %v1296, 1
        %vm1379 = vcmp.eq.s32.totalorder %v1299, 1
        %vm1380 = vcmp.eq.s32.totalorder %v1302, 1
        %vm1381 = vcmp.eq.s32.totalorder %v1305, 1
        %vm1382 = vcmp.eq.s32.totalorder %v1308, 1
        %vm1383 = vcmp.eq.s32.totalorder %v1311, 1
        %vm1384 = vcmp.eq.s32.totalorder %v1314, 1
        %vm1385 = vcmp.eq.s32.totalorder %v1317, 1
        %vm1386 = vcmp.eq.s32.totalorder %v1320, 1
        %vm1387 = vcmp.eq.s32.totalorder %v1323, 1
        %vm1388 = vcmp.eq.s32.totalorder %v1326, 1
        %vm1389 = vcmp.eq.s32.totalorder %v1329, 1
        %vm1390 = vcmp.eq.s32.totalorder %v1332, 1
        %vm1391 = vcmp.eq.s32.totalorder %v1335, 1
        %vm1392 = vcmp.eq.s32.totalorder %v1338, 1
        %vm1393 = vcmp.eq.s32.totalorder %v1341, 1
        %vm1394 = vcmp.eq.s32.totalorder %v1344, 1
        %vm1395 = vcmp.eq.s32.totalorder %v1347, 1
        %vm1396 = vcmp.eq.s32.totalorder %v1350, 1
        %vm1397 = vcmp.eq.s32.totalorder %v1353, 1
        %vm1398 = vcmp.eq.s32.totalorder %v1356, 1
        %vm1399 = vcmp.eq.s32.totalorder %v1359, 1
        %vm1400 = vcmp.eq.s32.totalorder %v1362, 1
        %vm1401 = vcmp.eq.s32.totalorder %v1365, 1
        %vm1402 = vmpackc.low %vm1366, %vm1366
        %vm1403 = vmpackc.low %vm1367, %vm1367
        %vm1404 = vmpackc.low %vm1368, %vm1368
        %vm1405 = vmpackc.low %vm1369, %vm1369
        %vm1406 = vmpackc.low %vm1370, %vm1370
        %vm1407 = vmpackc.low %vm1371, %vm1371
        %vm1408 = vmpackc.low %vm1372, %vm1372
        %vm1409 = vmpackc.low %vm1373, %vm1373
        %vm1410 = vmpackc.low %vm1374, %vm1374
        %vm1411 = vmpackc.low %vm1375, %vm1375
        %vm1412 = vmpackc.low %vm1376, %vm1376
        %vm1413 = vmpackc.low %vm1377, %vm1377
        %vm1414 = vmpackc.low %vm1378, %vm1378
        %vm1415 = vmpackc.low %vm1379, %vm1379
        %vm1416 = vmpackc.low %vm1380, %vm1380
        %vm1417 = vmpackc.low %vm1381, %vm1381
        %vm1418 = vmpackc.low %vm1382, %vm1382
        %vm1419 = vmpackc.low %vm1383, %vm1383
        %vm1420 = vmpackc.low %vm1384, %vm1384
        %vm1421 = vmpackc.low %vm1385, %vm1385
        %vm1422 = vmpackc.low %vm1386, %vm1386
        %vm1423 = vmpackc.low %vm1387, %vm1387
        %vm1424 = vmpackc.low %vm1388, %vm1388
        %vm1425 = vmpackc.low %vm1389, %vm1389
        %vm1426 = vmpackc.low %vm1390, %vm1390
        %vm1427 = vmpackc.low %vm1391, %vm1391
        %vm1428 = vmpackc.low %vm1392, %vm1392
        %vm1429 = vmpackc.low %vm1393, %vm1393
        %vm1430 = vmpackc.low %vm1394, %vm1394
        %vm1431 = vmpackc.low %vm1395, %vm1395
        %vm1432 = vmpackc.low %vm1396, %vm1396
        %vm1433 = vmpackc.low %vm1397, %vm1397
        %vm1434 = vmpackc.low %vm1398, %vm1398
        %vm1435 = vmpackc.low %vm1399, %vm1399
        %vm1436 = vmpackc.low %vm1400, %vm1400
        %vm1437 = vmpackc.low %vm1401, %vm1401
        %v1438 = vsel %vm1402, 65537, 0
        %v1439 = vsel %vm1403, 65537, 0
        %v1440 = vsel %vm1404, 65537, 0
        %v1441 = vsel %vm1405, 65537, 0
        %v1442 = vsel %vm1406, 65537, 0
        %v1443 = vsel %vm1407, 65537, 0
        %v1444 = vsel %vm1408, 65537, 0
        %v1445 = vsel %vm1409, 65537, 0
        %v1446 = vsel %vm1410, 65537, 0
        %v1447 = vsel %vm1411, 65537, 0
        %v1448 = vsel %vm1412, 65537, 0
        %v1449 = vsel %vm1413, 65537, 0
        %v1450 = vsel %vm1414, 65537, 0
        %v1451 = vsel %vm1415, 65537, 0
        %v1452 = vsel %vm1416, 65537, 0
        %v1453 = vsel %vm1417, 65537, 0
        %v1454 = vsel %vm1418, 65537, 0
        %v1455 = vsel %vm1419, 65537, 0
        %v1456 = vsel %vm1420, 65537, 0
        %v1457 = vsel %vm1421, 65537, 0
        %v1458 = vsel %vm1422, 65537, 0
        %v1459 = vsel %vm1423, 65537, 0
        %v1460 = vsel %vm1424, 65537, 0
        %v1461 = vsel %vm1425, 65537, 0
        %v1462 = vsel %vm1426, 65537, 0
        %v1463 = vsel %vm1427, 65537, 0
        %v1464 = vsel %vm1428, 65537, 0
        %v1465 = vsel %vm1429, 65537, 0
        %v1466 = vsel %vm1430, 65537, 0
        %v1467 = vsel %vm1431, 65537, 0
        %v1468 = vsel %vm1432, 65537, 0
        %v1469 = vsel %vm1433, 65537, 0
        %v1470 = vsel %vm1434, 65537, 0
        %v1471 = vsel %vm1435, 65537, 0
        %v1472 = vsel %vm1436, 65537, 0
        %v1473 = vsel %vm1437, 65537, 0
        %v1474 = vunpack.c.l.b16 %v1438
        %v1475 = vunpack.c.l.b16 %v1439
        %v1476 = vunpack.c.l.b16 %v1440
        %v1477 = vunpack.c.l.b16 %v1441
        %v1478 = vunpack.c.l.b16 %v1442
        %v1479 = vunpack.c.l.b16 %v1443
        %v1480 = vunpack.c.l.b16 %v1444
        %v1481 = vunpack.c.l.b16 %v1445
        %v1482 = vunpack.c.l.b16 %v1446
        %v1483 = vunpack.c.l.b16 %v1447
        %v1484 = vunpack.c.l.b16 %v1448
        %v1485 = vunpack.c.l.b16 %v1449
        %v1486 = vunpack.c.l.b16 %v1450
        %v1487 = vunpack.c.l.b16 %v1451
        %v1488 = vunpack.c.l.b16 %v1452
        %v1489 = vunpack.c.l.b16 %v1453
        %v1490 = vunpack.c.l.b16 %v1454
        %v1491 = vunpack.c.l.b16 %v1455
        %v1492 = vunpack.c.l.b16 %v1456
        %v1493 = vunpack.c.l.b16 %v1457
        %v1494 = vunpack.c.l.b16 %v1458
        %v1495 = vunpack.c.l.b16 %v1459
        %v1496 = vunpack.c.l.b16 %v1460
        %v1497 = vunpack.c.l.b16 %v1461
        %v1498 = vunpack.c.l.b16 %v1462
        %v1499 = vunpack.c.l.b16 %v1463
        %v1500 = vunpack.c.l.b16 %v1464
        %v1501 = vunpack.c.l.b16 %v1465
        %v1502 = vunpack.c.l.b16 %v1466
        %v1503 = vunpack.c.l.b16 %v1467
        %v1504 = vunpack.c.l.b16 %v1468
        %v1505 = vunpack.c.l.b16 %v1469
        %v1506 = vunpack.c.l.b16 %v1470
        %v1507 = vunpack.c.l.b16 %v1471
        %v1508 = vunpack.c.l.b16 %v1472
        %v1509 = vunpack.c.l.b16 %v1473
        %v1510 = vpack.c.b16 %v1475, %v1474
        %v1511 = vpack.c.b16 %v1477, %v1476
        %v1512 = vpack.c.b16 %v1479, %v1478
        %v1513 = vpack.c.b16 %v1481, %v1480
        %v1514 = vpack.c.b16 %v1483, %v1482
        %v1515 = vpack.c.b16 %v1485, %v1484
        %v1516 = vpack.c.b16 %v1487, %v1486
        %v1517 = vpack.c.b16 %v1489, %v1488
        %v1518 = vpack.c.b16 %v1491, %v1490
        %v1519 = vpack.c.b16 %v1493, %v1492
        %v1520 = vpack.c.b16 %v1495, %v1494
        %v1521 = vpack.c.b16 %v1497, %v1496
        %v1522 = vpack.c.b16 %v1499, %v1498
        %v1523 = vpack.c.b16 %v1501, %v1500
        %v1524 = vpack.c.b16 %v1503, %v1502
        %v1525 = vpack.c.b16 %v1505, %v1504
        %v1526 = vpack.c.b16 %v1507, %v1506
        %v1527 = vpack.c.b16 %v1509, %v1508
        %v1528 = vunpack.c.l.b16 %v1510
        %v1529 = vunpack.c.h.b16 %v1510
        %v1530 = vunpack.c.l.b16 0
        %v1531 = vunpack.c.h.b16 0
        %vm1532 = vcmp.ne.s32.totalorder %v1528, %v1530
        %vm1533 = vcmp.ne.s32.totalorder %v1529, %v1531
        %vm1534 = vmpackc.low %vm1533, %vm1532
        %v1535 = vunpack.c.l.b16 %v1511
        %v1536 = vunpack.c.h.b16 %v1511
        %v1537 = vunpack.c.l.b16 0
        %v1538 = vunpack.c.h.b16 0
        %vm1539 = vcmp.ne.s32.totalorder %v1535, %v1537
        %vm1540 = vcmp.ne.s32.totalorder %v1536, %v1538
        %vm1541 = vmpackc.low %vm1540, %vm1539
        %v1542 = vunpack.c.l.b16 %v1512
        %v1543 = vunpack.c.h.b16 %v1512
        %v1544 = vunpack.c.l.b16 0
        %v1545 = vunpack.c.h.b16 0
        %vm1546 = vcmp.ne.s32.totalorder %v1542, %v1544
        %vm1547 = vcmp.ne.s32.totalorder %v1543, %v1545
        %vm1548 = vmpackc.low %vm1547, %vm1546
        %v1549 = vunpack.c.l.b16 %v1513
        %v1550 = vunpack.c.h.b16 %v1513
        %v1551 = vunpack.c.l.b16 0
        %v1552 = vunpack.c.h.b16 0
        %vm1553 = vcmp.ne.s32.totalorder %v1549, %v1551
        %vm1554 = vcmp.ne.s32.totalorder %v1550, %v1552
        %vm1555 = vmpackc.low %vm1554, %vm1553
        %v1556 = vunpack.c.l.b16 %v1514
        %v1557 = vunpack.c.h.b16 %v1514
        %v1558 = vunpack.c.l.b16 0
        %v1559 = vunpack.c.h.b16 0
        %vm1560 = vcmp.ne.s32.totalorder %v1556, %v1558
        %vm1561 = vcmp.ne.s32.totalorder %v1557, %v1559
        %vm1562 = vmpackc.low %vm1561, %vm1560
        %v1563 = vunpack.c.l.b16 %v1515
        %v1564 = vunpack.c.h.b16 %v1515
        %v1565 = vunpack.c.l.b16 0
        %v1566 = vunpack.c.h.b16 0
        %vm1567 = vcmp.ne.s32.totalorder %v1563, %v1565
        %vm1568 = vcmp.ne.s32.totalorder %v1564, %v1566
        %vm1569 = vmpackc.low %vm1568, %vm1567
        %v1570 = vunpack.c.l.b16 %v1516
        %v1571 = vunpack.c.h.b16 %v1516
        %v1572 = vunpack.c.l.b16 0
        %v1573 = vunpack.c.h.b16 0
        %vm1574 = vcmp.ne.s32.totalorder %v1570, %v1572
        %vm1575 = vcmp.ne.s32.totalorder %v1571, %v1573
        %vm1576 = vmpackc.low %vm1575, %vm1574
        %v1577 = vunpack.c.l.b16 %v1517
        %v1578 = vunpack.c.h.b16 %v1517
        %v1579 = vunpack.c.l.b16 0
        %v1580 = vunpack.c.h.b16 0
        %vm1581 = vcmp.ne.s32.totalorder %v1577, %v1579
        %vm1582 = vcmp.ne.s32.totalorder %v1578, %v1580
        %vm1583 = vmpackc.low %vm1582, %vm1581
        %v1584 = vunpack.c.l.b16 %v1518
        %v1585 = vunpack.c.h.b16 %v1518
        %v1586 = vunpack.c.l.b16 0
        %v1587 = vunpack.c.h.b16 0
        %vm1588 = vcmp.ne.s32.totalorder %v1584, %v1586
        %vm1589 = vcmp.ne.s32.totalorder %v1585, %v1587
        %vm1590 = vmpackc.low %vm1589, %vm1588
        %v1591 = vunpack.c.l.b16 %v1519
        %v1592 = vunpack.c.h.b16 %v1519
        %v1593 = vunpack.c.l.b16 0
        %v1594 = vunpack.c.h.b16 0
        %vm1595 = vcmp.ne.s32.totalorder %v1591, %v1593
        %vm1596 = vcmp.ne.s32.totalorder %v1592, %v1594
        %vm1597 = vmpackc.low %vm1596, %vm1595
        %v1598 = vunpack.c.l.b16 %v1520
        %v1599 = vunpack.c.h.b16 %v1520
        %v1600 = vunpack.c.l.b16 0
        %v1601 = vunpack.c.h.b16 0
        %vm1602 = vcmp.ne.s32.totalorder %v1598, %v1600
        %vm1603 = vcmp.ne.s32.totalorder %v1599, %v1601
        %vm1604 = vmpackc.low %vm1603, %vm1602
        %v1605 = vunpack.c.l.b16 %v1521
        %v1606 = vunpack.c.h.b16 %v1521
        %v1607 = vunpack.c.l.b16 0
        %v1608 = vunpack.c.h.b16 0
        %vm1609 = vcmp.ne.s32.totalorder %v1605, %v1607
        %vm1610 = vcmp.ne.s32.totalorder %v1606, %v1608
        %vm1611 = vmpackc.low %vm1610, %vm1609
        %v1612 = vunpack.c.l.b16 %v1522
        %v1613 = vunpack.c.h.b16 %v1522
        %v1614 = vunpack.c.l.b16 0
        %v1615 = vunpack.c.h.b16 0
        %vm1616 = vcmp.ne.s32.totalorder %v1612, %v1614
        %vm1617 = vcmp.ne.s32.totalorder %v1613, %v1615
        %vm1618 = vmpackc.low %vm1617, %vm1616
        %v1619 = vunpack.c.l.b16 %v1523
        %v1620 = vunpack.c.h.b16 %v1523
        %v1621 = vunpack.c.l.b16 0
        %v1622 = vunpack.c.h.b16 0
        %vm1623 = vcmp.ne.s32.totalorder %v1619, %v1621
        %vm1624 = vcmp.ne.s32.totalorder %v1620, %v1622
        %vm1625 = vmpackc.low %vm1624, %vm1623
        %v1626 = vunpack.c.l.b16 %v1524
        %v1627 = vunpack.c.h.b16 %v1524
        %v1628 = vunpack.c.l.b16 0
        %v1629 = vunpack.c.h.b16 0
        %vm1630 = vcmp.ne.s32.totalorder %v1626, %v1628
        %vm1631 = vcmp.ne.s32.totalorder %v1627, %v1629
        %vm1632 = vmpackc.low %vm1631, %vm1630
        %v1633 = vunpack.c.l.b16 %v1525
        %v1634 = vunpack.c.h.b16 %v1525
        %v1635 = vunpack.c.l.b16 0
        %v1636 = vunpack.c.h.b16 0
        %vm1637 = vcmp.ne.s32.totalorder %v1633, %v1635
        %vm1638 = vcmp.ne.s32.totalorder %v1634, %v1636
        %vm1639 = vmpackc.low %vm1638, %vm1637
        %v1640 = vunpack.c.l.b16 %v1526
        %v1641 = vunpack.c.h.b16 %v1526
        %v1642 = vunpack.c.l.b16 0
        %v1643 = vunpack.c.h.b16 0
        %vm1644 = vcmp.ne.s32.totalorder %v1640, %v1642
        %vm1645 = vcmp.ne.s32.totalorder %v1641, %v1643
        %vm1646 = vmpackc.low %vm1645, %vm1644
        %v1647 = vunpack.c.l.b16 %v1527
        %v1648 = vunpack.c.h.b16 %v1527
        %v1649 = vunpack.c.l.b16 0
        %v1650 = vunpack.c.h.b16 0
        %vm1651 = vcmp.ne.s32.totalorder %v1647, %v1649
        %vm1652 = vcmp.ne.s32.totalorder %v1648, %v1650
        %vm1653 = vmpackc.low %vm1652, %vm1651
        %v1654 = vsel %vm1534, %v1002, 0
        %v1655 = vsel %vm1541, %v853, 0
        %v1656 = vsel %vm1548, %v861, 0
        %v1657 = vsel %vm1555, %v869, 0
        %v1658 = vsel %vm1562, %v877, 0
        %v1659 = vsel %vm1569, %v885, 0
        %v1660 = vsel %vm1576, %v893, 0
        %v1661 = vsel %vm1583, %v901, 0
        %v1662 = vsel %vm1590, %v909, 0
        %v1663 = vsel %vm1597, %v917, 0
        %v1664 = vsel %vm1604, %v925, 0
        %v1665 = vsel %vm1611, %v933, 0
        %v1666 = vsel %vm1618, %v941, 0
        %v1667 = vsel %vm1625, %v949, 0
        %v1668 = vsel %vm1632, %v957, 0
        %v1669 = vsel %vm1639, %v965, 0
        %v1670 = vsel %vm1646, %v973, 0
        %v1671 = vsel %vm1653, %v981, 0
        %v1690 = vunpack.c.l.b16 %v1654
        %v1691 = vunpack.c.h.b16 %v1654
        %v1692 = vunpack.c.l.b16 %v1655
        %v1693 = vunpack.c.h.b16 %v1655
        %v1694 = vunpack.c.l.b16 %v1656
        %v1695 = vunpack.c.h.b16 %v1656
        %v1696 = vunpack.c.l.b16 %v1657
        %v1697 = vunpack.c.h.b16 %v1657
        %v1698 = vunpack.c.l.b16 %v1658
        %v1699 = vunpack.c.h.b16 %v1658
        %v1700 = vunpack.c.l.b16 %v1659
        %v1701 = vunpack.c.h.b16 %v1659
        %v1702 = vunpack.c.l.b16 %v1660
        %v1703 = vunpack.c.h.b16 %v1660
        %v1704 = vunpack.c.l.b16 %v1661
        %v1705 = vunpack.c.h.b16 %v1661
        %v1706 = vunpack.c.l.b16 %v1662
        %v1707 = vunpack.c.h.b16 %v1662
        %v1708 = vunpack.c.l.b16 %v1663
        %v1709 = vunpack.c.h.b16 %v1663
        %v1710 = vunpack.c.l.b16 %v1664
        %v1711 = vunpack.c.h.b16 %v1664
        %v1712 = vunpack.c.l.b16 %v1665
        %v1713 = vunpack.c.h.b16 %v1665
        %v1714 = vunpack.c.l.b16 %v1666
        %v1715 = vunpack.c.h.b16 %v1666
        %v1716 = vunpack.c.l.b16 %v1667
        %v1717 = vunpack.c.h.b16 %v1667
        %v1718 = vunpack.c.l.b16 %v1668
        %v1719 = vunpack.c.h.b16 %v1668
        %v1720 = vunpack.c.l.b16 %v1669
        %v1721 = vunpack.c.h.b16 %v1669
        %v1722 = vunpack.c.l.b16 %v1670
        %v1723 = vunpack.c.h.b16 %v1670
        %v1724 = vunpack.c.l.b16 %v1671
        %v1725 = vunpack.c.h.b16 %v1671
        %v1726 = vpack.c.b16 %v1690, %v1690
        %v1727 = vpack.c.b16 %v1691, %v1691
        %v1728 = vpack.c.b16 %v1692, %v1692
        %v1729 = vpack.c.b16 %v1693, %v1693
        %v1730 = vpack.c.b16 %v1694, %v1694
        %v1731 = vpack.c.b16 %v1695, %v1695
        %v1732 = vpack.c.b16 %v1696, %v1696
        %v1733 = vpack.c.b16 %v1697, %v1697
        %v1734 = vpack.c.b16 %v1698, %v1698
        %v1735 = vpack.c.b16 %v1699, %v1699
        %v1736 = vpack.c.b16 %v1700, %v1700
        %v1737 = vpack.c.b16 %v1701, %v1701
        %v1738 = vpack.c.b16 %v1702, %v1702
        %v1739 = vpack.c.b16 %v1703, %v1703
        %v1740 = vpack.c.b16 %v1704, %v1704
        %v1741 = vpack.c.b16 %v1705, %v1705
        %v1742 = vpack.c.b16 %v1706, %v1706
        %v1743 = vpack.c.b16 %v1707, %v1707
        %v1744 = vpack.c.b16 %v1708, %v1708
        %v1745 = vpack.c.b16 %v1709, %v1709
        %v1746 = vpack.c.b16 %v1710, %v1710
        %v1747 = vpack.c.b16 %v1711, %v1711
        %v1748 = vpack.c.b16 %v1712, %v1712
        %v1749 = vpack.c.b16 %v1713, %v1713
        %v1750 = vpack.c.b16 %v1714, %v1714
        %v1751 = vpack.c.b16 %v1715, %v1715
        %v1752 = vpack.c.b16 %v1716, %v1716
        %v1753 = vpack.c.b16 %v1717, %v1717
        %v1754 = vpack.c.b16 %v1718, %v1718
        %v1755 = vpack.c.b16 %v1719, %v1719
        %v1756 = vpack.c.b16 %v1720, %v1720
        %v1757 = vpack.c.b16 %v1721, %v1721
        %v1758 = vpack.c.b16 %v1722, %v1722
        %v1759 = vpack.c.b16 %v1723, %v1723
        %v1760 = vpack.c.b16 %v1724, %v1724
        %v1761 = vpack.c.b16 %v1725, %v1725
        %vm1798 = vcmask 257024
        %1799 = vst.msk [vmem:[#allocation3] sm:$0xf] %vm1798, %v1726
        %1800 = vst.msk [vmem:[#allocation3 + $0x4] sm:$0xf] %vm1798, %v1727
        %1801 = vst.msk [vmem:[#allocation3 + $0x8] sm:$0xf] %vm1798, %v1728
        %1802 = vst.msk [vmem:[#allocation3 + $0xc] sm:$0xf] %vm1798, %v1729
        %1803 = vst.msk [vmem:[#allocation3 + $0x10] sm:$0xf] %vm1798, %v1730
        %1804 = vst.msk [vmem:[#allocation3 + $0x14] sm:$0xf] %vm1798, %v1731
        %1805 = vst.msk [vmem:[#allocation3 + $0x18] sm:$0xf] %vm1798, %v1732
        %1806 = vst.msk [vmem:[#allocation3 + $0x1c] sm:$0xf] %vm1798, %v1733
        %1807 = vst.msk [vmem:[#allocation3 + $0x20] sm:$0xf] %vm1798, %v1734
        %1808 = vst.msk [vmem:[#allocation3 + $0x24] sm:$0xf] %vm1798, %v1735
        %1809 = vst.msk [vmem:[#allocation3 + $0x28] sm:$0xf] %vm1798, %v1736
        %1810 = vst.msk [vmem:[#allocation3 + $0x2c] sm:$0xf] %vm1798, %v1737
        %1811 = vst.msk [vmem:[#allocation3 + $0x30] sm:$0xf] %vm1798, %v1738
        %1812 = vst.msk [vmem:[#allocation3 + $0x34] sm:$0xf] %vm1798, %v1739
        %1813 = vst.msk [vmem:[#allocation3 + $0x38] sm:$0xf] %vm1798, %v1740
        %1814 = vst.msk [vmem:[#allocation3 + $0x3c] sm:$0xf] %vm1798, %v1741
        %1815 = vst.msk [vmem:[#allocation3 + $0x40] sm:$0xf] %vm1798, %v1742
        %1816 = vst.msk [vmem:[#allocation3 + $0x44] sm:$0xf] %vm1798, %v1743
        %1817 = vst.msk [vmem:[#allocation3 + $0x48] sm:$0xf] %vm1798, %v1744
        %1818 = vst.msk [vmem:[#allocation3 + $0x4c] sm:$0xf] %vm1798, %v1745
        %1819 = vst.msk [vmem:[#allocation3 + $0x50] sm:$0xf] %vm1798, %v1746
        %1820 = vst.msk [vmem:[#allocation3 + $0x54] sm:$0xf] %vm1798, %v1747
        %1821 = vst.msk [vmem:[#allocation3 + $0x58] sm:$0xf] %vm1798, %v1748
        %1822 = vst.msk [vmem:[#allocation3 + $0x5c] sm:$0xf] %vm1798, %v1749
        %1823 = vst.msk [vmem:[#allocation3 + $0x60] sm:$0xf] %vm1798, %v1750
        %1824 = vst.msk [vmem:[#allocation3 + $0x64] sm:$0xf] %vm1798, %v1751
        %1825 = vst.msk [vmem:[#allocation3 + $0x68] sm:$0xf] %vm1798, %v1752
        %1826 = vst.msk [vmem:[#allocation3 + $0x6c] sm:$0xf] %vm1798, %v1753
        %1827 = vst.msk [vmem:[#allocation3 + $0x70] sm:$0xf] %vm1798, %v1754
        %1828 = vst.msk [vmem:[#allocation3 + $0x74] sm:$0xf] %vm1798, %v1755
        %1829 = vst.msk [vmem:[#allocation3 + $0x78] sm:$0xf] %vm1798, %v1756
        %1830 = vst.msk [vmem:[#allocation3 + $0x7c] sm:$0xf] %vm1798, %v1757
        %1831 = vst.msk [vmem:[#allocation3 + $0x80] sm:$0xf] %vm1798, %v1758
        %1832 = vst.msk [vmem:[#allocation3 + $0x84] sm:$0xf] %vm1798, %v1759
        %1833 = vst.msk [vmem:[#allocation3 + $0x88] sm:$0xf] %vm1798, %v1760
        %1834 = vst.msk [vmem:[#allocation3 + $0x8c] sm:$0xf] %vm1798, %v1761
        %1835 = vrot.lane.b32.xlu0 %v712, 32
        %v1836 = vpop.permute.xlu0 %1835
        %1837 = vrot.lane.b32.xlu0 %v713, 32
        %v1838 = vpop.permute.xlu0 %1837
        %1839 = vrot.lane.b32.xlu0 %v714, 32
        %v1840 = vpop.permute.xlu0 %1839
        %1841 = vrot.lane.b32.xlu0 %v715, 32
        %v1842 = vpop.permute.xlu0 %1841
        %1843 = vrot.lane.b32.xlu0 %v716, 32
        %v1844 = vpop.permute.xlu0 %1843
        %1845 = vrot.lane.b32.xlu0 %v717, 32
        %v1846 = vpop.permute.xlu0 %1845
        %1847 = vrot.lane.b32.xlu0 %v718, 32
        %v1848 = vpop.permute.xlu0 %1847
        %1849 = vrot.lane.b32.xlu0 %v719, 32
        %v1850 = vpop.permute.xlu0 %1849
        %1851 = vrot.lane.b32.xlu0 %v720, 32
        %v1852 = vpop.permute.xlu0 %1851
        %1853 = vrot.lane.b32.xlu0 %v721, 32
        %v1854 = vpop.permute.xlu0 %1853
        %1855 = vrot.lane.b32.xlu0 %v722, 32
        %v1856 = vpop.permute.xlu0 %1855
        %1857 = vrot.lane.b32.xlu0 %v723, 32
        %v1858 = vpop.permute.xlu0 %1857
        %1859 = vrot.lane.b32.xlu0 %v724, 32
        %v1860 = vpop.permute.xlu0 %1859
        %1861 = vrot.lane.b32.xlu0 %v725, 32
        %v1862 = vpop.permute.xlu0 %1861
        %1863 = vrot.lane.b32.xlu0 %v726, 32
        %v1864 = vpop.permute.xlu0 %1863
        %1865 = vrot.lane.b32.xlu0 %v727, 32
        %v1866 = vpop.permute.xlu0 %1865
        %1867 = vrot.lane.b32.xlu0 %v728, 32
        %v1868 = vpop.permute.xlu0 %1867
        %1869 = vrot.lane.b32.xlu0 %v729, 32
        %v1870 = vpop.permute.xlu0 %1869
        %1871 = vrot.lane.b32.xlu0 %v730, 32
        %v1872 = vpop.permute.xlu0 %1871
        %1873 = vrot.lane.b32.xlu0 %v731, 32
        %v1874 = vpop.permute.xlu0 %1873
        %1875 = vrot.lane.b32.xlu0 %v732, 32
        %v1876 = vpop.permute.xlu0 %1875
        %1877 = vrot.lane.b32.xlu0 %v733, 32
        %v1878 = vpop.permute.xlu0 %1877
        %1879 = vrot.lane.b32.xlu0 %v734, 32
        %v1880 = vpop.permute.xlu0 %1879
        %1881 = vrot.lane.b32.xlu0 %v735, 32
        %v1882 = vpop.permute.xlu0 %1881
        %1883 = vrot.lane.b32.xlu0 %v736, 32
        %v1884 = vpop.permute.xlu0 %1883
        %1885 = vrot.lane.b32.xlu0 %v737, 32
        %v1886 = vpop.permute.xlu0 %1885
        %1887 = vrot.lane.b32.xlu0 %v738, 32
        %v1888 = vpop.permute.xlu0 %1887
        %1889 = vrot.lane.b32.xlu0 %v739, 32
        %v1890 = vpop.permute.xlu0 %1889
        %1891 = vrot.lane.b32.xlu0 %v740, 32
        %v1892 = vpop.permute.xlu0 %1891
        %1893 = vrot.lane.b32.xlu0 %v741, 32
        %v1894 = vpop.permute.xlu0 %1893
        %1895 = vrot.lane.b32.xlu0 %v742, 32
        %v1896 = vpop.permute.xlu0 %1895
        %1897 = vrot.lane.b32.xlu0 %v743, 32
        %v1898 = vpop.permute.xlu0 %1897
        %1899 = vrot.lane.b32.xlu0 %v744, 32
        %v1900 = vpop.permute.xlu0 %1899
        %1901 = vrot.lane.b32.xlu0 %v745, 32
        %v1902 = vpop.permute.xlu0 %1901
        %1903 = vrot.lane.b32.xlu0 %v746, 32
        %v1904 = vpop.permute.xlu0 %1903
        %1905 = vrot.lane.b32.xlu0 %v747, 32
        %v1906 = vpop.permute.xlu0 %1905
        %vm1943 = vcmask 519424
        %1944 = vst.msk [vmem:[#allocation3] sm:$0xf] %vm1943, %v1836
        %1945 = vst.msk [vmem:[#allocation3 + $0x4] sm:$0xf] %vm1943, %v1838
        %1946 = vst.msk [vmem:[#allocation3 + $0x8] sm:$0xf] %vm1943, %v1840
        %1947 = vst.msk [vmem:[#allocation3 + $0xc] sm:$0xf] %vm1943, %v1842
        %1948 = vst.msk [vmem:[#allocation3 + $0x10] sm:$0xf] %vm1943, %v1844
        %1949 = vst.msk [vmem:[#allocation3 + $0x14] sm:$0xf] %vm1943, %v1846
        %1950 = vst.msk [vmem:[#allocation3 + $0x18] sm:$0xf] %vm1943, %v1848
        %1951 = vst.msk [vmem:[#allocation3 + $0x1c] sm:$0xf] %vm1943, %v1850
        %1952 = vst.msk [vmem:[#allocation3 + $0x20] sm:$0xf] %vm1943, %v1852
        %1953 = vst.msk [vmem:[#allocation3 + $0x24] sm:$0xf] %vm1943, %v1854
        %1954 = vst.msk [vmem:[#allocation3 + $0x28] sm:$0xf] %vm1943, %v1856
        %1955 = vst.msk [vmem:[#allocation3 + $0x2c] sm:$0xf] %vm1943, %v1858
        %1956 = vst.msk [vmem:[#allocation3 + $0x30] sm:$0xf] %vm1943, %v1860
        %1957 = vst.msk [vmem:[#allocation3 + $0x34] sm:$0xf] %vm1943, %v1862
        %1958 = vst.msk [vmem:[#allocation3 + $0x38] sm:$0xf] %vm1943, %v1864
        %1959 = vst.msk [vmem:[#allocation3 + $0x3c] sm:$0xf] %vm1943, %v1866
        %1960 = vst.msk [vmem:[#allocation3 + $0x40] sm:$0xf] %vm1943, %v1868
        %1961 = vst.msk [vmem:[#allocation3 + $0x44] sm:$0xf] %vm1943, %v1870
        %1962 = vst.msk [vmem:[#allocation3 + $0x48] sm:$0xf] %vm1943, %v1872
        %1963 = vst.msk [vmem:[#allocation3 + $0x4c] sm:$0xf] %vm1943, %v1874
        %1964 = vst.msk [vmem:[#allocation3 + $0x50] sm:$0xf] %vm1943, %v1876
        %1965 = vst.msk [vmem:[#allocation3 + $0x54] sm:$0xf] %vm1943, %v1878
        %1966 = vst.msk [vmem:[#allocation3 + $0x58] sm:$0xf] %vm1943, %v1880
        %1967 = vst.msk [vmem:[#allocation3 + $0x5c] sm:$0xf] %vm1943, %v1882
        %1968 = vst.msk [vmem:[#allocation3 + $0x60] sm:$0xf] %vm1943, %v1884
        %1969 = vst.msk [vmem:[#allocation3 + $0x64] sm:$0xf] %vm1943, %v1886
        %1970 = vst.msk [vmem:[#allocation3 + $0x68] sm:$0xf] %vm1943, %v1888
        %1971 = vst.msk [vmem:[#allocation3 + $0x6c] sm:$0xf] %vm1943, %v1890
        %1972 = vst.msk [vmem:[#allocation3 + $0x70] sm:$0xf] %vm1943, %v1892
        %1973 = vst.msk [vmem:[#allocation3 + $0x74] sm:$0xf] %vm1943, %v1894
        %1974 = vst.msk [vmem:[#allocation3 + $0x78] sm:$0xf] %vm1943, %v1896
        %1975 = vst.msk [vmem:[#allocation3 + $0x7c] sm:$0xf] %vm1943, %v1898
        %1976 = vst.msk [vmem:[#allocation3 + $0x80] sm:$0xf] %vm1943, %v1900
        %1977 = vst.msk [vmem:[#allocation3 + $0x84] sm:$0xf] %vm1943, %v1902
        %1978 = vst.msk [vmem:[#allocation3 + $0x88] sm:$0xf] %vm1943, %v1904
        %1979 = vst.msk [vmem:[#allocation3 + $0x8c] sm:$0xf] %vm1943, %v1906
        %v1980 = vsel %vm1186, 1, 0
        %v1981 = vsel %vm1187, 1, 0
        %v1982 = vsel %vm1188, 1, 0
        %v1983 = vsel %vm1189, 1, 0
        %v1984 = vsel %vm1190, 1, 0
        %v1985 = vsel %vm1191, 1, 0
        %v1986 = vsel %vm1192, 1, 0
        %v1987 = vsel %vm1193, 1, 0
        %v1988 = vsel %vm1194, 1, 0
        %v1989 = vsel %vm1195, 1, 0
        %v1990 = vsel %vm1196, 1, 0
        %v1991 = vsel %vm1197, 1, 0
        %v1992 = vsel %vm1198, 1, 0
        %v1993 = vsel %vm1199, 1, 0
        %v1994 = vsel %vm1200, 1, 0
        %v1995 = vsel %vm1201, 1, 0
        %v1996 = vsel %vm1202, 1, 0
        %v1997 = vsel %vm1203, 1, 0
        %v1998 = vsel %vm1204, 1, 0
        %v1999 = vsel %vm1205, 1, 0
        %v2000 = vsel %vm1206, 1, 0
        %v2001 = vsel %vm1207, 1, 0
        %v2002 = vsel %vm1208, 1, 0
        %v2003 = vsel %vm1209, 1, 0
        %v2004 = vsel %vm1210, 1, 0
        %v2005 = vsel %vm1211, 1, 0
        %v2006 = vsel %vm1212, 1, 0
        %v2007 = vsel %vm1213, 1, 0
        %v2008 = vsel %vm1214, 1, 0
        %v2009 = vsel %vm1215, 1, 0
        %v2010 = vsel %vm1216, 1, 0
        %v2011 = vsel %vm1217, 1, 0
        %v2012 = vsel %vm1218, 1, 0
        %v2013 = vsel %vm1219, 1, 0
        %v2014 = vsel %vm1220, 1, 0
        %v2015 = vsel %vm1221, 1, 0
        %2016 = vset.pattern.permute.xlu0 0
        %2017 = vperm.xlu0 %2016, %v1980
        %v2018 = vpop.permute.xlu0 %2017
        %2019 = vset.pattern.permute.xlu0 0
        %2020 = vperm.xlu0 %2019, %v1981
        %v2021 = vpop.permute.xlu0 %2020
        %2022 = vset.pattern.permute.xlu0 0
        %2023 = vperm.xlu0 %2022, %v1982
        %v2024 = vpop.permute.xlu0 %2023
        %2025 = vset.pattern.permute.xlu0 0
        %2026 = vperm.xlu0 %2025, %v1983
        %v2027 = vpop.permute.xlu0 %2026
        %2028 = vset.pattern.permute.xlu0 0
        %2029 = vperm.xlu0 %2028, %v1984
        %v2030 = vpop.permute.xlu0 %2029
        %2031 = vset.pattern.permute.xlu0 0
        %2032 = vperm.xlu0 %2031, %v1985
        %v2033 = vpop.permute.xlu0 %2032
        %2034 = vset.pattern.permute.xlu0 0
        %2035 = vperm.xlu0 %2034, %v1986
        %v2036 = vpop.permute.xlu0 %2035
        %2037 = vset.pattern.permute.xlu0 0
        %2038 = vperm.xlu0 %2037, %v1987
        %v2039 = vpop.permute.xlu0 %2038
        %2040 = vset.pattern.permute.xlu0 0
        %2041 = vperm.xlu0 %2040, %v1988
        %v2042 = vpop.permute.xlu0 %2041
        %2043 = vset.pattern.permute.xlu0 0
        %2044 = vperm.xlu0 %2043, %v1989
        %v2045 = vpop.permute.xlu0 %2044
        %2046 = vset.pattern.permute.xlu0 0
        %2047 = vperm.xlu0 %2046, %v1990
        %v2048 = vpop.permute.xlu0 %2047
        %2049 = vset.pattern.permute.xlu0 0
        %2050 = vperm.xlu0 %2049, %v1991
        %v2051 = vpop.permute.xlu0 %2050
        %2052 = vset.pattern.permute.xlu0 0
        %2053 = vperm.xlu0 %2052, %v1992
        %v2054 = vpop.permute.xlu0 %2053
        %2055 = vset.pattern.permute.xlu0 0
        %2056 = vperm.xlu0 %2055, %v1993
        %v2057 = vpop.permute.xlu0 %2056
        %2058 = vset.pattern.permute.xlu0 0
        %2059 = vperm.xlu0 %2058, %v1994
        %v2060 = vpop.permute.xlu0 %2059
        %2061 = vset.pattern.permute.xlu0 0
        %2062 = vperm.xlu0 %2061, %v1995
        %v2063 = vpop.permute.xlu0 %2062
        %2064 = vset.pattern.permute.xlu0 0
        %2065 = vperm.xlu0 %2064, %v1996
        %v2066 = vpop.permute.xlu0 %2065
        %2067 = vset.pattern.permute.xlu0 0
        %2068 = vperm.xlu0 %2067, %v1997
        %v2069 = vpop.permute.xlu0 %2068
        %2070 = vset.pattern.permute.xlu0 0
        %2071 = vperm.xlu0 %2070, %v1998
        %v2072 = vpop.permute.xlu0 %2071
        %2073 = vset.pattern.permute.xlu0 0
        %2074 = vperm.xlu0 %2073, %v1999
        %v2075 = vpop.permute.xlu0 %2074
        %2076 = vset.pattern.permute.xlu0 0
        %2077 = vperm.xlu0 %2076, %v2000
        %v2078 = vpop.permute.xlu0 %2077
        %2079 = vset.pattern.permute.xlu0 0
        %2080 = vperm.xlu0 %2079, %v2001
        %v2081 = vpop.permute.xlu0 %2080
        %2082 = vset.pattern.permute.xlu0 0
        %2083 = vperm.xlu0 %2082, %v2002
        %v2084 = vpop.permute.xlu0 %2083
        %2085 = vset.pattern.permute.xlu0 0
        %2086 = vperm.xlu0 %2085, %v2003
        %v2087 = vpop.permute.xlu0 %2086
        %2088 = vset.pattern.permute.xlu0 0
        %2089 = vperm.xlu0 %2088, %v2004
        %v2090 = vpop.permute.xlu0 %2089
        %2091 = vset.pattern.permute.xlu0 0
        %2092 = vperm.xlu0 %2091, %v2005
        %v2093 = vpop.permute.xlu0 %2092
        %2094 = vset.pattern.permute.xlu0 0
        %2095 = vperm.xlu0 %2094, %v2006
        %v2096 = vpop.permute.xlu0 %2095
        %2097 = vset.pattern.permute.xlu0 0
        %2098 = vperm.xlu0 %2097, %v2007
        %v2099 = vpop.permute.xlu0 %2098
        %2100 = vset.pattern.permute.xlu0 0
        %2101 = vperm.xlu0 %2100, %v2008
        %v2102 = vpop.permute.xlu0 %2101
        %2103 = vset.pattern.permute.xlu0 0
        %2104 = vperm.xlu0 %2103, %v2009
        %v2105 = vpop.permute.xlu0 %2104
        %2106 = vset.pattern.permute.xlu0 0
        %2107 = vperm.xlu0 %2106, %v2010
        %v2108 = vpop.permute.xlu0 %2107
        %2109 = vset.pattern.permute.xlu0 0
        %2110 = vperm.xlu0 %2109, %v2011
        %v2111 = vpop.permute.xlu0 %2110
        %2112 = vset.pattern.permute.xlu0 0
        %2113 = vperm.xlu0 %2112, %v2012
        %v2114 = vpop.permute.xlu0 %2113
        %2115 = vset.pattern.permute.xlu0 0
        %2116 = vperm.xlu0 %2115, %v2013
        %v2117 = vpop.permute.xlu0 %2116
        %2118 = vset.pattern.permute.xlu0 0
        %2119 = vperm.xlu0 %2118, %v2014
        %v2120 = vpop.permute.xlu0 %2119
        %2121 = vset.pattern.permute.xlu0 0
        %2122 = vperm.xlu0 %2121, %v2015
        %v2123 = vpop.permute.xlu0 %2122
        %vm2124 = vcmp.eq.s32.totalorder %v2018, 1
        %vm2125 = vcmp.eq.s32.totalorder %v2021, 1
        %vm2126 = vcmp.eq.s32.totalorder %v2024, 1
        %vm2127 = vcmp.eq.s32.totalorder %v2027, 1
        %vm2128 = vcmp.eq.s32.totalorder %v2030, 1
        %vm2129 = vcmp.eq.s32.totalorder %v2033, 1
        %vm2130 = vcmp.eq.s32.totalorder %v2036, 1
        %vm2131 = vcmp.eq.s32.totalorder %v2039, 1
        %vm2132 = vcmp.eq.s32.totalorder %v2042, 1
        %vm2133 = vcmp.eq.s32.totalorder %v2045, 1
        %vm2134 = vcmp.eq.s32.totalorder %v2048, 1
        %vm2135 = vcmp.eq.s32.totalorder %v2051, 1
        %vm2136 = vcmp.eq.s32.totalorder %v2054, 1
        %vm2137 = vcmp.eq.s32.totalorder %v2057, 1
        %vm2138 = vcmp.eq.s32.totalorder %v2060, 1
        %vm2139 = vcmp.eq.s32.totalorder %v2063, 1
        %vm2140 = vcmp.eq.s32.totalorder %v2066, 1
        %vm2141 = vcmp.eq.s32.totalorder %v2069, 1
        %vm2142 = vcmp.eq.s32.totalorder %v2072, 1
        %vm2143 = vcmp.eq.s32.totalorder %v2075, 1
        %vm2144 = vcmp.eq.s32.totalorder %v2078, 1
        %vm2145 = vcmp.eq.s32.totalorder %v2081, 1
        %vm2146 = vcmp.eq.s32.totalorder %v2084, 1
        %vm2147 = vcmp.eq.s32.totalorder %v2087, 1
        %vm2148 = vcmp.eq.s32.totalorder %v2090, 1
        %vm2149 = vcmp.eq.s32.totalorder %v2093, 1
        %vm2150 = vcmp.eq.s32.totalorder %v2096, 1
        %vm2151 = vcmp.eq.s32.totalorder %v2099, 1
        %vm2152 = vcmp.eq.s32.totalorder %v2102, 1
        %vm2153 = vcmp.eq.s32.totalorder %v2105, 1
        %vm2154 = vcmp.eq.s32.totalorder %v2108, 1
        %vm2155 = vcmp.eq.s32.totalorder %v2111, 1
        %vm2156 = vcmp.eq.s32.totalorder %v2114, 1
        %vm2157 = vcmp.eq.s32.totalorder %v2117, 1
        %vm2158 = vcmp.eq.s32.totalorder %v2120, 1
        %vm2159 = vcmp.eq.s32.totalorder %v2123, 1
        %vm2160 = vmpackc.low %vm2124, %vm2124
        %vm2161 = vmpackc.low %vm2125, %vm2125
        %vm2162 = vmpackc.low %vm2126, %vm2126
        %vm2163 = vmpackc.low %vm2127, %vm2127
        %vm2164 = vmpackc.low %vm2128, %vm2128
        %vm2165 = vmpackc.low %vm2129, %vm2129
        %vm2166 = vmpackc.low %vm2130, %vm2130
        %vm2167 = vmpackc.low %vm2131, %vm2131
        %vm2168 = vmpackc.low %vm2132, %vm2132
        %vm2169 = vmpackc.low %vm2133, %vm2133
        %vm2170 = vmpackc.low %vm2134, %vm2134
        %vm2171 = vmpackc.low %vm2135, %vm2135
        %vm2172 = vmpackc.low %vm2136, %vm2136
        %vm2173 = vmpackc.low %vm2137, %vm2137
        %vm2174 = vmpackc.low %vm2138, %vm2138
        %vm2175 = vmpackc.low %vm2139, %vm2139
        %vm2176 = vmpackc.low %vm2140, %vm2140
        %vm2177 = vmpackc.low %vm2141, %vm2141
        %vm2178 = vmpackc.low %vm2142, %vm2142
        %vm2179 = vmpackc.low %vm2143, %vm2143
        %vm2180 = vmpackc.low %vm2144, %vm2144
        %vm2181 = vmpackc.low %vm2145, %vm2145
        %vm2182 = vmpackc.low %vm2146, %vm2146
        %vm2183 = vmpackc.low %vm2147, %vm2147
        %vm2184 = vmpackc.low %vm2148, %vm2148
        %vm2185 = vmpackc.low %vm2149, %vm2149
        %vm2186 = vmpackc.low %vm2150, %vm2150
        %vm2187 = vmpackc.low %vm2151, %vm2151
        %vm2188 = vmpackc.low %vm2152, %vm2152
        %vm2189 = vmpackc.low %vm2153, %vm2153
        %vm2190 = vmpackc.low %vm2154, %vm2154
        %vm2191 = vmpackc.low %vm2155, %vm2155
        %vm2192 = vmpackc.low %vm2156, %vm2156
        %vm2193 = vmpackc.low %vm2157, %vm2157
        %vm2194 = vmpackc.low %vm2158, %vm2158
        %vm2195 = vmpackc.low %vm2159, %vm2159
        %v2196 = vsel %vm2160, 65537, 0
        %v2197 = vsel %vm2161, 65537, 0
        %v2198 = vsel %vm2162, 65537, 0
        %v2199 = vsel %vm2163, 65537, 0
        %v2200 = vsel %vm2164, 65537, 0
        %v2201 = vsel %vm2165, 65537, 0
        %v2202 = vsel %vm2166, 65537, 0
        %v2203 = vsel %vm2167, 65537, 0
        %v2204 = vsel %vm2168, 65537, 0
        %v2205 = vsel %vm2169, 65537, 0
        %v2206 = vsel %vm2170, 65537, 0
        %v2207 = vsel %vm2171, 65537, 0
        %v2208 = vsel %vm2172, 65537, 0
        %v2209 = vsel %vm2173, 65537, 0
        %v2210 = vsel %vm2174, 65537, 0
        %v2211 = vsel %vm2175, 65537, 0
        %v2212 = vsel %vm2176, 65537, 0
        %v2213 = vsel %vm2177, 65537, 0
        %v2214 = vsel %vm2178, 65537, 0
        %v2215 = vsel %vm2179, 65537, 0
        %v2216 = vsel %vm2180, 65537, 0
        %v2217 = vsel %vm2181, 65537, 0
        %v2218 = vsel %vm2182, 65537, 0
        %v2219 = vsel %vm2183, 65537, 0
        %v2220 = vsel %vm2184, 65537, 0
        %v2221 = vsel %vm2185, 65537, 0
        %v2222 = vsel %vm2186, 65537, 0
        %v2223 = vsel %vm2187, 65537, 0
        %v2224 = vsel %vm2188, 65537, 0
        %v2225 = vsel %vm2189, 65537, 0
        %v2226 = vsel %vm2190, 65537, 0
        %v2227 = vsel %vm2191, 65537, 0
        %v2228 = vsel %vm2192, 65537, 0
        %v2229 = vsel %vm2193, 65537, 0
        %v2230 = vsel %vm2194, 65537, 0
        %v2231 = vsel %vm2195, 65537, 0
        %v2232 = vunpack.c.l.b16 %v2196
        %v2233 = vunpack.c.l.b16 %v2197
        %v2234 = vunpack.c.l.b16 %v2198
        %v2235 = vunpack.c.l.b16 %v2199
        %v2236 = vunpack.c.l.b16 %v2200
        %v2237 = vunpack.c.l.b16 %v2201
        %v2238 = vunpack.c.l.b16 %v2202
        %v2239 = vunpack.c.l.b16 %v2203
        %v2240 = vunpack.c.l.b16 %v2204
        %v2241 = vunpack.c.l.b16 %v2205
        %v2242 = vunpack.c.l.b16 %v2206
        %v2243 = vunpack.c.l.b16 %v2207
        %v2244 = vunpack.c.l.b16 %v2208
        %v2245 = vunpack.c.l.b16 %v2209
        %v2246 = vunpack.c.l.b16 %v2210
        %v2247 = vunpack.c.l.b16 %v2211
        %v2248 = vunpack.c.l.b16 %v2212
        %v2249 = vunpack.c.l.b16 %v2213
        %v2250 = vunpack.c.l.b16 %v2214
        %v2251 = vunpack.c.l.b16 %v2215
        %v2252 = vunpack.c.l.b16 %v2216
        %v2253 = vunpack.c.l.b16 %v2217
        %v2254 = vunpack.c.l.b16 %v2218
        %v2255 = vunpack.c.l.b16 %v2219
        %v2256 = vunpack.c.l.b16 %v2220
        %v2257 = vunpack.c.l.b16 %v2221
        %v2258 = vunpack.c.l.b16 %v2222
        %v2259 = vunpack.c.l.b16 %v2223
        %v2260 = vunpack.c.l.b16 %v2224
        %v2261 = vunpack.c.l.b16 %v2225
        %v2262 = vunpack.c.l.b16 %v2226
        %v2263 = vunpack.c.l.b16 %v2227
        %v2264 = vunpack.c.l.b16 %v2228
        %v2265 = vunpack.c.l.b16 %v2229
        %v2266 = vunpack.c.l.b16 %v2230
        %v2267 = vunpack.c.l.b16 %v2231
        %v2268 = vpack.c.b16 %v2233, %v2232
        %v2269 = vpack.c.b16 %v2235, %v2234
        %v2270 = vpack.c.b16 %v2237, %v2236
        %v2271 = vpack.c.b16 %v2239, %v2238
        %v2272 = vpack.c.b16 %v2241, %v2240
        %v2273 = vpack.c.b16 %v2243, %v2242
        %v2274 = vpack.c.b16 %v2245, %v2244
        %v2275 = vpack.c.b16 %v2247, %v2246
        %v2276 = vpack.c.b16 %v2249, %v2248
        %v2277 = vpack.c.b16 %v2251, %v2250
        %v2278 = vpack.c.b16 %v2253, %v2252
        %v2279 = vpack.c.b16 %v2255, %v2254
        %v2280 = vpack.c.b16 %v2257, %v2256
        %v2281 = vpack.c.b16 %v2259, %v2258
        %v2282 = vpack.c.b16 %v2261, %v2260
        %v2283 = vpack.c.b16 %v2263, %v2262
        %v2284 = vpack.c.b16 %v2265, %v2264
        %v2285 = vpack.c.b16 %v2267, %v2266
        %v2286 = vunpack.c.l.b16 %v2268
        %v2287 = vunpack.c.h.b16 %v2268
        %v2288 = vunpack.c.l.b16 0
        %v2289 = vunpack.c.h.b16 0
        %vm2290 = vcmp.ne.s32.totalorder %v2286, %v2288
        %vm2291 = vcmp.ne.s32.totalorder %v2287, %v2289
        %vm2292 = vmpackc.low %vm2291, %vm2290
        %v2293 = vunpack.c.l.b16 %v2269
        %v2294 = vunpack.c.h.b16 %v2269
        %v2295 = vunpack.c.l.b16 0
        %v2296 = vunpack.c.h.b16 0
        %vm2297 = vcmp.ne.s32.totalorder %v2293, %v2295
        %vm2298 = vcmp.ne.s32.totalorder %v2294, %v2296
        %vm2299 = vmpackc.low %vm2298, %vm2297
        %v2300 = vunpack.c.l.b16 %v2270
        %v2301 = vunpack.c.h.b16 %v2270
        %v2302 = vunpack.c.l.b16 0
        %v2303 = vunpack.c.h.b16 0
        %vm2304 = vcmp.ne.s32.totalorder %v2300, %v2302
        %vm2305 = vcmp.ne.s32.totalorder %v2301, %v2303
        %vm2306 = vmpackc.low %vm2305, %vm2304
        %v2307 = vunpack.c.l.b16 %v2271
        %v2308 = vunpack.c.h.b16 %v2271
        %v2309 = vunpack.c.l.b16 0
        %v2310 = vunpack.c.h.b16 0
        %vm2311 = vcmp.ne.s32.totalorder %v2307, %v2309
        %vm2312 = vcmp.ne.s32.totalorder %v2308, %v2310
        %vm2313 = vmpackc.low %vm2312, %vm2311
        %v2314 = vunpack.c.l.b16 %v2272
        %v2315 = vunpack.c.h.b16 %v2272
        %v2316 = vunpack.c.l.b16 0
        %v2317 = vunpack.c.h.b16 0
        %vm2318 = vcmp.ne.s32.totalorder %v2314, %v2316
        %vm2319 = vcmp.ne.s32.totalorder %v2315, %v2317
        %vm2320 = vmpackc.low %vm2319, %vm2318
        %v2321 = vunpack.c.l.b16 %v2273
        %v2322 = vunpack.c.h.b16 %v2273
        %v2323 = vunpack.c.l.b16 0
        %v2324 = vunpack.c.h.b16 0
        %vm2325 = vcmp.ne.s32.totalorder %v2321, %v2323
        %vm2326 = vcmp.ne.s32.totalorder %v2322, %v2324
        %vm2327 = vmpackc.low %vm2326, %vm2325
        %v2328 = vunpack.c.l.b16 %v2274
        %v2329 = vunpack.c.h.b16 %v2274
        %v2330 = vunpack.c.l.b16 0
        %v2331 = vunpack.c.h.b16 0
        %vm2332 = vcmp.ne.s32.totalorder %v2328, %v2330
        %vm2333 = vcmp.ne.s32.totalorder %v2329, %v2331
        %vm2334 = vmpackc.low %vm2333, %vm2332
        %v2335 = vunpack.c.l.b16 %v2275
        %v2336 = vunpack.c.h.b16 %v2275
        %v2337 = vunpack.c.l.b16 0
        %v2338 = vunpack.c.h.b16 0
        %vm2339 = vcmp.ne.s32.totalorder %v2335, %v2337
        %vm2340 = vcmp.ne.s32.totalorder %v2336, %v2338
        %vm2341 = vmpackc.low %vm2340, %vm2339
        %v2342 = vunpack.c.l.b16 %v2276
        %v2343 = vunpack.c.h.b16 %v2276
        %v2344 = vunpack.c.l.b16 0
        %v2345 = vunpack.c.h.b16 0
        %vm2346 = vcmp.ne.s32.totalorder %v2342, %v2344
        %vm2347 = vcmp.ne.s32.totalorder %v2343, %v2345
        %vm2348 = vmpackc.low %vm2347, %vm2346
        %v2349 = vunpack.c.l.b16 %v2277
        %v2350 = vunpack.c.h.b16 %v2277
        %v2351 = vunpack.c.l.b16 0
        %v2352 = vunpack.c.h.b16 0
        %vm2353 = vcmp.ne.s32.totalorder %v2349, %v2351
        %vm2354 = vcmp.ne.s32.totalorder %v2350, %v2352
        %vm2355 = vmpackc.low %vm2354, %vm2353
        %v2356 = vunpack.c.l.b16 %v2278
        %v2357 = vunpack.c.h.b16 %v2278
        %v2358 = vunpack.c.l.b16 0
        %v2359 = vunpack.c.h.b16 0
        %vm2360 = vcmp.ne.s32.totalorder %v2356, %v2358
        %vm2361 = vcmp.ne.s32.totalorder %v2357, %v2359
        %vm2362 = vmpackc.low %vm2361, %vm2360
        %v2363 = vunpack.c.l.b16 %v2279
        %v2364 = vunpack.c.h.b16 %v2279
        %v2365 = vunpack.c.l.b16 0
        %v2366 = vunpack.c.h.b16 0
        %vm2367 = vcmp.ne.s32.totalorder %v2363, %v2365
        %vm2368 = vcmp.ne.s32.totalorder %v2364, %v2366
        %vm2369 = vmpackc.low %vm2368, %vm2367
        %v2370 = vunpack.c.l.b16 %v2280
        %v2371 = vunpack.c.h.b16 %v2280
        %v2372 = vunpack.c.l.b16 0
        %v2373 = vunpack.c.h.b16 0
        %vm2374 = vcmp.ne.s32.totalorder %v2370, %v2372
        %vm2375 = vcmp.ne.s32.totalorder %v2371, %v2373
        %vm2376 = vmpackc.low %vm2375, %vm2374
        %v2377 = vunpack.c.l.b16 %v2281
        %v2378 = vunpack.c.h.b16 %v2281
        %v2379 = vunpack.c.l.b16 0
        %v2380 = vunpack.c.h.b16 0
        %vm2381 = vcmp.ne.s32.totalorder %v2377, %v2379
        %vm2382 = vcmp.ne.s32.totalorder %v2378, %v2380
        %vm2383 = vmpackc.low %vm2382, %vm2381
        %v2384 = vunpack.c.l.b16 %v2282
        %v2385 = vunpack.c.h.b16 %v2282
        %v2386 = vunpack.c.l.b16 0
        %v2387 = vunpack.c.h.b16 0
        %vm2388 = vcmp.ne.s32.totalorder %v2384, %v2386
        %vm2389 = vcmp.ne.s32.totalorder %v2385, %v2387
        %vm2390 = vmpackc.low %vm2389, %vm2388
        %v2391 = vunpack.c.l.b16 %v2283
        %v2392 = vunpack.c.h.b16 %v2283
        %v2393 = vunpack.c.l.b16 0
        %v2394 = vunpack.c.h.b16 0
        %vm2395 = vcmp.ne.s32.totalorder %v2391, %v2393
        %vm2396 = vcmp.ne.s32.totalorder %v2392, %v2394
        %vm2397 = vmpackc.low %vm2396, %vm2395
        %v2398 = vunpack.c.l.b16 %v2284
        %v2399 = vunpack.c.h.b16 %v2284
        %v2400 = vunpack.c.l.b16 0
        %v2401 = vunpack.c.h.b16 0
        %vm2402 = vcmp.ne.s32.totalorder %v2398, %v2400
        %vm2403 = vcmp.ne.s32.totalorder %v2399, %v2401
        %vm2404 = vmpackc.low %vm2403, %vm2402
        %v2405 = vunpack.c.l.b16 %v2285
        %v2406 = vunpack.c.h.b16 %v2285
        %v2407 = vunpack.c.l.b16 0
        %v2408 = vunpack.c.h.b16 0
        %vm2409 = vcmp.ne.s32.totalorder %v2405, %v2407
        %vm2410 = vcmp.ne.s32.totalorder %v2406, %v2408
        %vm2411 = vmpackc.low %vm2410, %vm2409
        %v2412 = vsel %vm2292, %v1007, 0
        %v2413 = vsel %vm2299, %v1010, 0
        %v2414 = vsel %vm2306, %v1013, 0
        %v2415 = vsel %vm2313, %v1016, 0
        %v2416 = vsel %vm2320, %v1019, 0
        %v2417 = vsel %vm2327, %v1022, 0
        %v2418 = vsel %vm2334, %v1025, 0
        %v2419 = vsel %vm2341, %v1028, 0
        %v2420 = vsel %vm2348, %v1031, 0
        %v2421 = vsel %vm2355, %v1034, 0
        %v2422 = vsel %vm2362, %v1037, 0
        %v2423 = vsel %vm2369, %v1040, 0
        %v2424 = vsel %vm2376, %v1043, 0
        %v2425 = vsel %vm2383, %v1046, 0
        %v2426 = vsel %vm2390, %v1049, 0
        %v2427 = vsel %vm2397, %v1052, 0
        %v2428 = vsel %vm2404, %v1055, 0
        %v2429 = vsel %vm2411, %v1077, 0
        %v2448 = vunpack.c.l.b16 %v2412
        %v2449 = vunpack.c.h.b16 %v2412
        %v2450 = vunpack.c.l.b16 %v2413
        %v2451 = vunpack.c.h.b16 %v2413
        %v2452 = vunpack.c.l.b16 %v2414
        %v2453 = vunpack.c.h.b16 %v2414
        %v2454 = vunpack.c.l.b16 %v2415
        %v2455 = vunpack.c.h.b16 %v2415
        %v2456 = vunpack.c.l.b16 %v2416
        %v2457 = vunpack.c.h.b16 %v2416
        %v2458 = vunpack.c.l.b16 %v2417
        %v2459 = vunpack.c.h.b16 %v2417
        %v2460 = vunpack.c.l.b16 %v2418
        %v2461 = vunpack.c.h.b16 %v2418
        %v2462 = vunpack.c.l.b16 %v2419
        %v2463 = vunpack.c.h.b16 %v2419
        %v2464 = vunpack.c.l.b16 %v2420
        %v2465 = vunpack.c.h.b16 %v2420
        %v2466 = vunpack.c.l.b16 %v2421
        %v2467 = vunpack.c.h.b16 %v2421
        %v2468 = vunpack.c.l.b16 %v2422
        %v2469 = vunpack.c.h.b16 %v2422
        %v2470 = vunpack.c.l.b16 %v2423
        %v2471 = vunpack.c.h.b16 %v2423
        %v2472 = vunpack.c.l.b16 %v2424
        %v2473 = vunpack.c.h.b16 %v2424
        %v2474 = vunpack.c.l.b16 %v2425
        %v2475 = vunpack.c.h.b16 %v2425
        %v2476 = vunpack.c.l.b16 %v2426
        %v2477 = vunpack.c.h.b16 %v2426
        %v2478 = vunpack.c.l.b16 %v2427
        %v2479 = vunpack.c.h.b16 %v2427
        %v2480 = vunpack.c.l.b16 %v2428
        %v2481 = vunpack.c.h.b16 %v2428
        %v2482 = vunpack.c.l.b16 %v2429
        %v2483 = vunpack.c.h.b16 %v2429
        %v2484 = vpack.c.b16 %v2448, %v2448
        %v2485 = vpack.c.b16 %v2449, %v2449
        %v2486 = vpack.c.b16 %v2450, %v2450
        %v2487 = vpack.c.b16 %v2451, %v2451
        %v2488 = vpack.c.b16 %v2452, %v2452
        %v2489 = vpack.c.b16 %v2453, %v2453
        %v2490 = vpack.c.b16 %v2454, %v2454
        %v2491 = vpack.c.b16 %v2455, %v2455
        %v2492 = vpack.c.b16 %v2456, %v2456
        %v2493 = vpack.c.b16 %v2457, %v2457
        %v2494 = vpack.c.b16 %v2458, %v2458
        %v2495 = vpack.c.b16 %v2459, %v2459
        %v2496 = vpack.c.b16 %v2460, %v2460
        %v2497 = vpack.c.b16 %v2461, %v2461
        %v2498 = vpack.c.b16 %v2462, %v2462
        %v2499 = vpack.c.b16 %v2463, %v2463
        %v2500 = vpack.c.b16 %v2464, %v2464
        %v2501 = vpack.c.b16 %v2465, %v2465
        %v2502 = vpack.c.b16 %v2466, %v2466
        %v2503 = vpack.c.b16 %v2467, %v2467
        %v2504 = vpack.c.b16 %v2468, %v2468
        %v2505 = vpack.c.b16 %v2469, %v2469
        %v2506 = vpack.c.b16 %v2470, %v2470
        %v2507 = vpack.c.b16 %v2471, %v2471
        %v2508 = vpack.c.b16 %v2472, %v2472
        %v2509 = vpack.c.b16 %v2473, %v2473
        %v2510 = vpack.c.b16 %v2474, %v2474
        %v2511 = vpack.c.b16 %v2475, %v2475
        %v2512 = vpack.c.b16 %v2476, %v2476
        %v2513 = vpack.c.b16 %v2477, %v2477
        %v2514 = vpack.c.b16 %v2478, %v2478
        %v2515 = vpack.c.b16 %v2479, %v2479
        %v2516 = vpack.c.b16 %v2480, %v2480
        %v2517 = vpack.c.b16 %v2481, %v2481
        %v2518 = vpack.c.b16 %v2482, %v2482
        %v2519 = vpack.c.b16 %v2483, %v2483
        %2520 = vrot.lane.b32.xlu0 %v2484, 64
        %v2521 = vpop.permute.xlu0 %2520
        %2522 = vrot.lane.b32.xlu0 %v2485, 64
        %v2523 = vpop.permute.xlu0 %2522
        %2524 = vrot.lane.b32.xlu0 %v2486, 64
        %v2525 = vpop.permute.xlu0 %2524
        %2526 = vrot.lane.b32.xlu0 %v2487, 64
        %v2527 = vpop.permute.xlu0 %2526
        %2528 = vrot.lane.b32.xlu0 %v2488, 64
        %v2529 = vpop.permute.xlu0 %2528
        %2530 = vrot.lane.b32.xlu0 %v2489, 64
        %v2531 = vpop.permute.xlu0 %2530
        %2532 = vrot.lane.b32.xlu0 %v2490, 64
        %v2533 = vpop.permute.xlu0 %2532
        %2534 = vrot.lane.b32.xlu0 %v2491, 64
        %v2535 = vpop.permute.xlu0 %2534
        %2536 = vrot.lane.b32.xlu0 %v2492, 64
        %v2537 = vpop.permute.xlu0 %2536
        %2538 = vrot.lane.b32.xlu0 %v2493, 64
        %v2539 = vpop.permute.xlu0 %2538
        %2540 = vrot.lane.b32.xlu0 %v2494, 64
        %v2541 = vpop.permute.xlu0 %2540
        %2542 = vrot.lane.b32.xlu0 %v2495, 64
        %v2543 = vpop.permute.xlu0 %2542
        %2544 = vrot.lane.b32.xlu0 %v2496, 64
        %v2545 = vpop.permute.xlu0 %2544
        %2546 = vrot.lane.b32.xlu0 %v2497, 64
        %v2547 = vpop.permute.xlu0 %2546
        %2548 = vrot.lane.b32.xlu0 %v2498, 64
        %v2549 = vpop.permute.xlu0 %2548
        %2550 = vrot.lane.b32.xlu0 %v2499, 64
        %v2551 = vpop.permute.xlu0 %2550
        %2552 = vrot.lane.b32.xlu0 %v2500, 64
        %v2553 = vpop.permute.xlu0 %2552
        %2554 = vrot.lane.b32.xlu0 %v2501, 64
        %v2555 = vpop.permute.xlu0 %2554
        %2556 = vrot.lane.b32.xlu0 %v2502, 64
        %v2557 = vpop.permute.xlu0 %2556
        %2558 = vrot.lane.b32.xlu0 %v2503, 64
        %v2559 = vpop.permute.xlu0 %2558
        %2560 = vrot.lane.b32.xlu0 %v2504, 64
        %v2561 = vpop.permute.xlu0 %2560
        %2562 = vrot.lane.b32.xlu0 %v2505, 64
        %v2563 = vpop.permute.xlu0 %2562
        %2564 = vrot.lane.b32.xlu0 %v2506, 64
        %v2565 = vpop.permute.xlu0 %2564
        %2566 = vrot.lane.b32.xlu0 %v2507, 64
        %v2567 = vpop.permute.xlu0 %2566
        %2568 = vrot.lane.b32.xlu0 %v2508, 64
        %v2569 = vpop.permute.xlu0 %2568
        %2570 = vrot.lane.b32.xlu0 %v2509, 64
        %v2571 = vpop.permute.xlu0 %2570
        %2572 = vrot.lane.b32.xlu0 %v2510, 64
        %v2573 = vpop.permute.xlu0 %2572
        %2574 = vrot.lane.b32.xlu0 %v2511, 64
        %v2575 = vpop.permute.xlu0 %2574
        %2576 = vrot.lane.b32.xlu0 %v2512, 64
        %v2577 = vpop.permute.xlu0 %2576
        %2578 = vrot.lane.b32.xlu0 %v2513, 64
        %v2579 = vpop.permute.xlu0 %2578
        %2580 = vrot.lane.b32.xlu0 %v2514, 64
        %v2581 = vpop.permute.xlu0 %2580
        %2582 = vrot.lane.b32.xlu0 %v2515, 64
        %v2583 = vpop.permute.xlu0 %2582
        %2584 = vrot.lane.b32.xlu0 %v2516, 64
        %v2585 = vpop.permute.xlu0 %2584
        %2586 = vrot.lane.b32.xlu0 %v2517, 64
        %v2587 = vpop.permute.xlu0 %2586
        %2588 = vrot.lane.b32.xlu0 %v2518, 64
        %v2589 = vpop.permute.xlu0 %2588
        %2590 = vrot.lane.b32.xlu0 %v2519, 64
        %v2591 = vpop.permute.xlu0 %2590
        %vm2628 = vcmask 781824
        %2629 = vst.msk [vmem:[#allocation3] sm:$0xf] %vm2628, %v2521
        %2630 = vst.msk [vmem:[#allocation3 + $0x4] sm:$0xf] %vm2628, %v2523
        %2631 = vst.msk [vmem:[#allocation3 + $0x8] sm:$0xf] %vm2628, %v2525
        %2632 = vst.msk [vmem:[#allocation3 + $0xc] sm:$0xf] %vm2628, %v2527
        %2633 = vst.msk [vmem:[#allocation3 + $0x10] sm:$0xf] %vm2628, %v2529
        %2634 = vst.msk [vmem:[#allocation3 + $0x14] sm:$0xf] %vm2628, %v2531
        %2635 = vst.msk [vmem:[#allocation3 + $0x18] sm:$0xf] %vm2628, %v2533
        %2636 = vst.msk [vmem:[#allocation3 + $0x1c] sm:$0xf] %vm2628, %v2535
        %2637 = vst.msk [vmem:[#allocation3 + $0x20] sm:$0xf] %vm2628, %v2537
        %2638 = vst.msk [vmem:[#allocation3 + $0x24] sm:$0xf] %vm2628, %v2539
        %2639 = vst.msk [vmem:[#allocation3 + $0x28] sm:$0xf] %vm2628, %v2541
        %2640 = vst.msk [vmem:[#allocation3 + $0x2c] sm:$0xf] %vm2628, %v2543
        %2641 = vst.msk [vmem:[#allocation3 + $0x30] sm:$0xf] %vm2628, %v2545
        %2642 = vst.msk [vmem:[#allocation3 + $0x34] sm:$0xf] %vm2628, %v2547
        %2643 = vst.msk [vmem:[#allocation3 + $0x38] sm:$0xf] %vm2628, %v2549
        %2644 = vst.msk [vmem:[#allocation3 + $0x3c] sm:$0xf] %vm2628, %v2551
        %2645 = vst.msk [vmem:[#allocation3 + $0x40] sm:$0xf] %vm2628, %v2553
        %2646 = vst.msk [vmem:[#allocation3 + $0x44] sm:$0xf] %vm2628, %v2555
        %2647 = vst.msk [vmem:[#allocation3 + $0x48] sm:$0xf] %vm2628, %v2557
        %2648 = vst.msk [vmem:[#allocation3 + $0x4c] sm:$0xf] %vm2628, %v2559
        %2649 = vst.msk [vmem:[#allocation3 + $0x50] sm:$0xf] %vm2628, %v2561
        %2650 = vst.msk [vmem:[#allocation3 + $0x54] sm:$0xf] %vm2628, %v2563
        %2651 = vst.msk [vmem:[#allocation3 + $0x58] sm:$0xf] %vm2628, %v2565
        %2652 = vst.msk [vmem:[#allocation3 + $0x5c] sm:$0xf] %vm2628, %v2567
        %2653 = vst.msk [vmem:[#allocation3 + $0x60] sm:$0xf] %vm2628, %v2569
        %2654 = vst.msk [vmem:[#allocation3 + $0x64] sm:$0xf] %vm2628, %v2571
        %2655 = vst.msk [vmem:[#allocation3 + $0x68] sm:$0xf] %vm2628, %v2573
        %2656 = vst.msk [vmem:[#allocation3 + $0x6c] sm:$0xf] %vm2628, %v2575
        %2657 = vst.msk [vmem:[#allocation3 + $0x70] sm:$0xf] %vm2628, %v2577
        %2658 = vst.msk [vmem:[#allocation3 + $0x74] sm:$0xf] %vm2628, %v2579
        %2659 = vst.msk [vmem:[#allocation3 + $0x78] sm:$0xf] %vm2628, %v2581
        %2660 = vst.msk [vmem:[#allocation3 + $0x7c] sm:$0xf] %vm2628, %v2583
        %2661 = vst.msk [vmem:[#allocation3 + $0x80] sm:$0xf] %vm2628, %v2585
        %2662 = vst.msk [vmem:[#allocation3 + $0x84] sm:$0xf] %vm2628, %v2587
        %2663 = vst.msk [vmem:[#allocation3 + $0x88] sm:$0xf] %vm2628, %v2589
        %2664 = vst.msk [vmem:[#allocation3 + $0x8c] sm:$0xf] %vm2628, %v2591
        %p2665 = scmp.eq.s32.totalorder %s28, 0
        // Predicated region
        $region72: #{tpu_custom_call.1} parent=51 // pred_check
          %p2666 = pneg %p2665
        $region73: #{tpu_custom_call.1} parent=51 // pred_check_branch
          %2668 = sbr.rel (%p2666) target = $region75
        $region74: #{tpu_custom_call.1} parent=51 // pred_region
          %vm2669 = vcmask 781312
          %2670 = vst.msk [vmem:[#allocation3] sm:$0xf] %vm2669, 0
          %2671 = vst.msk [vmem:[#allocation3 + $0x4] sm:$0xf] %vm2669, 0
          %2672 = vst.msk [vmem:[#allocation3 + $0x88] sm:$0xf] %vm2669, 0
          %2673 = vst.msk [vmem:[#allocation3 + $0x8c] sm:$0xf] %vm2669, 0
        $region75: #{tpu_custom_call.1} parent=51 // pred_fallthru
          _
        %v2674 = vld [vmem:[#allocation3] sm:$0xf]
        %v2675 = vld [vmem:[#allocation3 + $0x4] sm:$0xf]
        %v2676 = vld [vmem:[#allocation3 + $0x8] sm:$0xf]
        %v2677 = vld [vmem:[#allocation3 + $0xc] sm:$0xf]
        %v2678 = vld [vmem:[#allocation3 + $0x10] sm:$0xf]
        %v2679 = vld [vmem:[#allocation3 + $0x14] sm:$0xf]
        %v2680 = vld [vmem:[#allocation3 + $0x18] sm:$0xf]
        %v2681 = vld [vmem:[#allocation3 + $0x1c] sm:$0xf]
        %v2682 = vld [vmem:[#allocation3 + $0x20] sm:$0xf]
        %v2683 = vld [vmem:[#allocation3 + $0x24] sm:$0xf]
        %v2684 = vld [vmem:[#allocation3 + $0x28] sm:$0xf]
        %v2685 = vld [vmem:[#allocation3 + $0x2c] sm:$0xf]
        %v2686 = vld [vmem:[#allocation3 + $0x30] sm:$0xf]
        %v2687 = vld [vmem:[#allocation3 + $0x34] sm:$0xf]
        %v2688 = vld [vmem:[#allocation3 + $0x38] sm:$0xf]
        %v2689 = vld [vmem:[#allocation3 + $0x3c] sm:$0xf]
        %v2690 = vld [vmem:[#allocation3 + $0x40] sm:$0xf]
        %v2691 = vld [vmem:[#allocation3 + $0x44] sm:$0xf]
        %v2692 = vld [vmem:[#allocation3 + $0x48] sm:$0xf]
        %v2693 = vld [vmem:[#allocation3 + $0x4c] sm:$0xf]
        %v2694 = vld [vmem:[#allocation3 + $0x50] sm:$0xf]
        %v2695 = vld [vmem:[#allocation3 + $0x54] sm:$0xf]
        %v2696 = vld [vmem:[#allocation3 + $0x58] sm:$0xf]
        %v2697 = vld [vmem:[#allocation3 + $0x5c] sm:$0xf]
        %v2698 = vld [vmem:[#allocation3 + $0x60] sm:$0xf]
        %v2699 = vld [vmem:[#allocation3 + $0x64] sm:$0xf]
        %v2700 = vld [vmem:[#allocation3 + $0x68] sm:$0xf]
        %v2701 = vld [vmem:[#allocation3 + $0x6c] sm:$0xf]
        %v2702 = vld [vmem:[#allocation3 + $0x70] sm:$0xf]
        %v2703 = vld [vmem:[#allocation3 + $0x74] sm:$0xf]
        %v2704 = vld [vmem:[#allocation3 + $0x78] sm:$0xf]
        %v2705 = vld [vmem:[#allocation3 + $0x7c] sm:$0xf]
        %v2706 = vld [vmem:[%s2] sm:$0xf]
        %v2707 = vld [vmem:[%s2 + $0x4] sm:$0xf]
        %v2708 = vld [vmem:[%s2 + $0x8] sm:$0xf]
        %v2709 = vld [vmem:[%s2 + $0xc] sm:$0xf]
        %v2710 = vld [vmem:[%s2 + $0x10] sm:$0xf]
        %v2711 = vld [vmem:[%s2 + $0x14] sm:$0xf]
        %v2712 = vld [vmem:[%s2 + $0x18] sm:$0xf]
        %v2713 = vld [vmem:[%s2 + $0x1c] sm:$0xf]
        %v2714 = vld [vmem:[%s2 + $0x20] sm:$0xf]
        %v2715 = vld [vmem:[%s2 + $0x24] sm:$0xf]
        %v2716 = vld [vmem:[%s2 + $0x28] sm:$0xf]
        %v2717 = vld [vmem:[%s2 + $0x2c] sm:$0xf]
        %v2718 = vld [vmem:[#allocation3 + $0x80] sm:$0xf]
        %v2719 = vld [vmem:[#allocation3 + $0x84] sm:$0xf]
        %s2720 = scalar_lea.vmem %s2, 48
        %v2721 = vld [vmem:[%s2720] sm:$0xf]
        %v2722 = vld [vmem:[%s2720 + $0x4] sm:$0xf]
        %v2723 = vld [vmem:[%s2720 + $0x8] sm:$0xf]
        %v2724 = vld [vmem:[%s2720 + $0xc] sm:$0xf]
        %v2725 = vld [vmem:[%s2720 + $0x10] sm:$0xf]
        %v2726 = vld [vmem:[%s2720 + $0x14] sm:$0xf]
        %v2727 = vld [vmem:[%s2720 + $0x18] sm:$0xf]
        %v2728 = vld [vmem:[%s2720 + $0x1c] sm:$0xf]
        %v2729 = vld [vmem:[%s2720 + $0x20] sm:$0xf]
        %v2730 = vld [vmem:[%s2720 + $0x24] sm:$0xf]
        %v2731 = vld [vmem:[%s2720 + $0x28] sm:$0xf]
        %v2732 = vld [vmem:[%s2720 + $0x2c] sm:$0xf]
        %v2765 = vunpack.c.l.b16 %v2676
        %v2766 = vunpack.c.l.b16 %v2677
        %v2767 = vunpack.c.l.b16 %v2678
        %v2768 = vunpack.c.l.b16 %v2679
        %v2769 = vunpack.c.l.b16 %v2680
        %v2770 = vunpack.c.l.b16 %v2681
        %v2771 = vunpack.c.l.b16 %v2682
        %v2772 = vunpack.c.l.b16 %v2683
        %v2773 = vunpack.c.l.b16 %v2684
        %v2774 = vunpack.c.l.b16 %v2685
        %v2775 = vunpack.c.l.b16 %v2686
        %v2776 = vunpack.c.l.b16 %v2687
        %v2777 = vunpack.c.l.b16 %v2688
        %v2778 = vunpack.c.l.b16 %v2689
        %v2779 = vunpack.c.l.b16 %v2690
        %v2780 = vunpack.c.l.b16 %v2691
        %v2781 = vunpack.c.l.b16 %v2692
        %v2782 = vunpack.c.l.b16 %v2693
        %v2783 = vunpack.c.l.b16 %v2694
        %v2784 = vunpack.c.l.b16 %v2695
        %v2785 = vunpack.c.l.b16 %v2696
        %v2786 = vunpack.c.l.b16 %v2697
        %v2787 = vunpack.c.l.b16 %v2698
        %v2788 = vunpack.c.l.b16 %v2699
        %v2789 = vunpack.c.l.b16 %v2700
        %v2790 = vunpack.c.l.b16 %v2701
        %v2791 = vunpack.c.l.b16 %v2702
        %v2792 = vunpack.c.l.b16 %v2703
        %v2793 = vunpack.c.l.b16 %v2704
        %v2794 = vunpack.c.l.b16 %v2705
        %v2795 = vunpack.c.l.b16 %v2718
        %v2796 = vunpack.c.l.b16 %v2719
        %v2797 = vpack.c.b16 %v2766, %v2765
        %v2798 = vpack.c.b16 %v2768, %v2767
        %v2799 = vpack.c.b16 %v2770, %v2769
        %v2800 = vpack.c.b16 %v2772, %v2771
        %v2801 = vpack.c.b16 %v2774, %v2773
        %v2802 = vpack.c.b16 %v2776, %v2775
        %v2803 = vpack.c.b16 %v2778, %v2777
        %v2804 = vpack.c.b16 %v2780, %v2779
        %v2805 = vpack.c.b16 %v2782, %v2781
        %v2806 = vpack.c.b16 %v2784, %v2783
        %v2807 = vpack.c.b16 %v2786, %v2785
        %v2808 = vpack.c.b16 %v2788, %v2787
        %v2809 = vpack.c.b16 %v2790, %v2789
        %v2810 = vpack.c.b16 %v2792, %v2791
        %v2811 = vpack.c.b16 %v2794, %v2793
        %v2812 = vpack.c.b16 %v2796, %v2795
        %v2825 = vunpack.c.l.b16 %v2721
        %v2826 = vunpack.c.l.b16 %v2722
        %v2827 = vunpack.c.l.b16 %v2723
        %v2828 = vunpack.c.l.b16 %v2724
        %v2829 = vunpack.c.l.b16 %v2725
        %v2830 = vunpack.c.l.b16 %v2726
        %v2831 = vunpack.c.l.b16 %v2727
        %v2832 = vunpack.c.l.b16 %v2728
        %v2833 = vunpack.c.l.b16 %v2729
        %v2834 = vunpack.c.l.b16 %v2730
        %v2835 = vunpack.c.l.b16 %v2731
        %v2836 = vunpack.c.l.b16 %v2732
        %v2837 = vpack.c.b16 %v2826, %v2825
        %v2838 = vpack.c.b16 %v2828, %v2827
        %v2839 = vpack.c.b16 %v2830, %v2829
        %v2840 = vpack.c.b16 %v2832, %v2831
        %v2841 = vpack.c.b16 %v2834, %v2833
        %v2842 = vpack.c.b16 %v2836, %v2835
        %vm2849 = vcmask 785408
        %v2851 = vsel %vm2849, %v2797, 0
        %v2854 = vsel %vm2849, %v2798, 0
        %v2857 = vsel %vm2849, %v2799, 0
        %v2860 = vsel %vm2849, %v2800, 0
        %v2863 = vsel %vm2849, %v2801, 0
        %v2866 = vsel %vm2849, %v2802, 0
        %v2869 = vsel %vm2849, %v2803, 0
        %v2872 = vsel %vm2849, %v2804, 0
        %v2875 = vsel %vm2849, %v2805, 0
        %v2878 = vsel %vm2849, %v2806, 0
        %v2881 = vsel %vm2849, %v2807, 0
        %v2884 = vsel %vm2849, %v2808, 0
        %v2887 = vsel %vm2849, %v2809, 0
        %v2890 = vsel %vm2849, %v2810, 0
        %v2893 = vsel %vm2849, %v2811, 0
        %v2896 = vsel %vm2849, %v2812, 0
        %2898 = vmatpush.bf16.msra.mxu0 0
        %2899 = vmatpush.bf16.msra.mxu0 0
        %2900 = vmatpush.bf16.msra.mxu0 %v2842
        %2901 = vmatpush.bf16.msra.mxu0 %v2841
        %2902 = vmatpush.bf16.msra.mxu0 %v2840
        %2903 = vmatpush.bf16.msra.mxu0 %v2839
        %2904 = vmatpush.bf16.msra.mxu0 %v2838
        %2905 = vmatpush.bf16.msra.mxu0 %v2837
        %2906 = vmatmul.bf16.gmra.mxu0 %v2851
        %v2907 = vpop.f32.mrf.mxu0
        %v2908 = vadd.f32 0.0, %v2907
        %v2909 = vpop.f32.mrf.mxu0
        %v2910 = vadd.f32 0.0, %v2909
        %2911 = vmatmul.bf16.gmra.mxu0 %v2854
        %v2912 = vpop.f32.mrf.mxu0
        %v2913 = vadd.f32 0.0, %v2912
        %v2914 = vpop.f32.mrf.mxu0
        %v2915 = vadd.f32 0.0, %v2914
        %2916 = vmatmul.bf16.gmra.mxu0 %v2857
        %v2917 = vpop.f32.mrf.mxu0
        %v2918 = vadd.f32 0.0, %v2917
        %v2919 = vpop.f32.mrf.mxu0
        %v2920 = vadd.f32 0.0, %v2919
        %2921 = vmatmul.bf16.gmra.mxu0 %v2860
        %v2922 = vpop.f32.mrf.mxu0
        %v2923 = vadd.f32 0.0, %v2922
        %v2924 = vpop.f32.mrf.mxu0
        %v2925 = vadd.f32 0.0, %v2924
        %2926 = vmatmul.bf16.gmra.mxu0 %v2863
        %v2927 = vpop.f32.mrf.mxu0
        %v2928 = vadd.f32 0.0, %v2927
        %v2929 = vpop.f32.mrf.mxu0
        %v2930 = vadd.f32 0.0, %v2929
        %2931 = vmatmul.bf16.gmra.mxu0 %v2866
        %v2932 = vpop.f32.mrf.mxu0
        %v2933 = vadd.f32 0.0, %v2932
        %v2934 = vpop.f32.mrf.mxu0
        %v2935 = vadd.f32 0.0, %v2934
        %2936 = vmatmul.bf16.gmra.mxu0 %v2869
        %v2937 = vpop.f32.mrf.mxu0
        %v2938 = vadd.f32 0.0, %v2937
        %v2939 = vpop.f32.mrf.mxu0
        %v2940 = vadd.f32 0.0, %v2939
        %2941 = vmatmul.bf16.gmra.mxu0 %v2872
        %v2942 = vpop.f32.mrf.mxu0
        %v2943 = vadd.f32 0.0, %v2942
        %v2944 = vpop.f32.mrf.mxu0
        %v2945 = vadd.f32 0.0, %v2944
        %2946 = vmatmul.bf16.gmra.mxu0 %v2875
        %v2947 = vpop.f32.mrf.mxu0
        %v2948 = vadd.f32 0.0, %v2947
        %v2949 = vpop.f32.mrf.mxu0
        %v2950 = vadd.f32 0.0, %v2949
        %2951 = vmatmul.bf16.gmra.mxu0 %v2878
        %v2952 = vpop.f32.mrf.mxu0
        %v2953 = vadd.f32 0.0, %v2952
        %v2954 = vpop.f32.mrf.mxu0
        %v2955 = vadd.f32 0.0, %v2954
        %2956 = vmatmul.bf16.gmra.mxu0 %v2881
        %v2957 = vpop.f32.mrf.mxu0
        %v2958 = vadd.f32 0.0, %v2957
        %v2959 = vpop.f32.mrf.mxu0
        %v2960 = vadd.f32 0.0, %v2959
        %2961 = vmatmul.bf16.gmra.mxu0 %v2884
        %v2962 = vpop.f32.mrf.mxu0
        %v2963 = vadd.f32 0.0, %v2962
        %v2964 = vpop.f32.mrf.mxu0
        %v2965 = vadd.f32 0.0, %v2964
        %2966 = vmatmul.bf16.gmra.mxu0 %v2887
        %v2967 = vpop.f32.mrf.mxu0
        %v2968 = vadd.f32 0.0, %v2967
        %v2969 = vpop.f32.mrf.mxu0
        %v2970 = vadd.f32 0.0, %v2969
        %2971 = vmatmul.bf16.gmra.mxu0 %v2890
        %v2972 = vpop.f32.mrf.mxu0
        %v2973 = vadd.f32 0.0, %v2972
        %v2974 = vpop.f32.mrf.mxu0
        %v2975 = vadd.f32 0.0, %v2974
        %2976 = vmatmul.bf16.gmra.mxu0 %v2893
        %v2977 = vpop.f32.mrf.mxu0
        %v2978 = vadd.f32 0.0, %v2977
        %v2979 = vpop.f32.mrf.mxu0
        %v2980 = vadd.f32 0.0, %v2979
        %2981 = vmatmul.bf16.gmra.mxu0 %v2896
        %v2982 = vpop.f32.mrf.mxu0
        %v2983 = vadd.f32 0.0, %v2982
        %v2984 = vpop.f32.mrf.mxu0
        %v2985 = vadd.f32 0.0, %v2984
        %2986 = vdwg.mxu0
        %v2989 = vunpack.c.l.b16 %v2674
        %v2990 = vunpack.c.l.b16 %v2675
        %v2991 = vpack.c.b16 %v2990, %v2989
        %v3004 = vunpack.c.l.b16 %v2706
        %v3005 = vunpack.c.l.b16 %v2707
        %v3006 = vunpack.c.l.b16 %v2708
        %v3007 = vunpack.c.l.b16 %v2709
        %v3008 = vunpack.c.l.b16 %v2710
        %v3009 = vunpack.c.l.b16 %v2711
        %v3010 = vunpack.c.l.b16 %v2712
        %v3011 = vunpack.c.l.b16 %v2713
        %v3012 = vunpack.c.l.b16 %v2714
        %v3013 = vunpack.c.l.b16 %v2715
        %v3014 = vunpack.c.l.b16 %v2716
        %v3015 = vunpack.c.l.b16 %v2717
        %v3016 = vpack.c.b16 %v3005, %v3004
        %v3017 = vpack.c.b16 %v3007, %v3006
        %v3018 = vpack.c.b16 %v3009, %v3008
        %v3019 = vpack.c.b16 %v3011, %v3010
        %v3020 = vpack.c.b16 %v3013, %v3012
        %v3021 = vpack.c.b16 %v3015, %v3014
        %v3029 = vsel %vm2849, %v2991, 0
        %3031 = vmatpush.bf16.msra.mxu0 0
        %3032 = vmatpush.bf16.msra.mxu0 0
        %3033 = vmatpush.bf16.msra.mxu0 %v3021
        %3034 = vmatpush.bf16.msra.mxu0 %v3020
        %3035 = vmatpush.bf16.msra.mxu0 %v3019
        %3036 = vmatpush.bf16.msra.mxu0 %v3018
        %3037 = vmatpush.bf16.msra.mxu0 %v3017
        %3038 = vmatpush.bf16.msra.mxu0 %v3016
        %3039 = vmatmul.bf16.gmra.mxu0 %v3029
        %v3040 = vpop.f32.mrf.mxu0
        %v3041 = vadd.f32 %v2908, %v3040
        %v3042 = vpop.f32.mrf.mxu0
        %v3043 = vadd.f32 %v2910, %v3042
        %3044 = vmatmul.bf16.gmra.mxu0 %v2851
        %v3045 = vpop.f32.mrf.mxu0
        %v3046 = vadd.f32 %v2913, %v3045
        %v3047 = vpop.f32.mrf.mxu0
        %v3048 = vadd.f32 %v2915, %v3047
        %3049 = vmatmul.bf16.gmra.mxu0 %v2854
        %v3050 = vpop.f32.mrf.mxu0
        %v3051 = vadd.f32 %v2918, %v3050
        %v3052 = vpop.f32.mrf.mxu0
        %v3053 = vadd.f32 %v2920, %v3052
        %3054 = vmatmul.bf16.gmra.mxu0 %v2857
        %v3055 = vpop.f32.mrf.mxu0
        %v3056 = vadd.f32 %v2923, %v3055
        %v3057 = vpop.f32.mrf.mxu0
        %v3058 = vadd.f32 %v2925, %v3057
        %3059 = vmatmul.bf16.gmra.mxu0 %v2860
        %v3060 = vpop.f32.mrf.mxu0
        %v3061 = vadd.f32 %v2928, %v3060
        %v3062 = vpop.f32.mrf.mxu0
        %v3063 = vadd.f32 %v2930, %v3062
        %3064 = vmatmul.bf16.gmra.mxu0 %v2863
        %v3065 = vpop.f32.mrf.mxu0
        %v3066 = vadd.f32 %v2933, %v3065
        %v3067 = vpop.f32.mrf.mxu0
        %v3068 = vadd.f32 %v2935, %v3067
        %3069 = vmatmul.bf16.gmra.mxu0 %v2866
        %v3070 = vpop.f32.mrf.mxu0
        %v3071 = vadd.f32 %v2938, %v3070
        %v3072 = vpop.f32.mrf.mxu0
        %v3073 = vadd.f32 %v2940, %v3072
        %3074 = vmatmul.bf16.gmra.mxu0 %v2869
        %v3075 = vpop.f32.mrf.mxu0
        %v3076 = vadd.f32 %v2943, %v3075
        %v3077 = vpop.f32.mrf.mxu0
        %v3078 = vadd.f32 %v2945, %v3077
        %3079 = vmatmul.bf16.gmra.mxu0 %v2872
        %v3080 = vpop.f32.mrf.mxu0
        %v3081 = vadd.f32 %v2948, %v3080
        %v3082 = vpop.f32.mrf.mxu0
        %v3083 = vadd.f32 %v2950, %v3082
        %3084 = vmatmul.bf16.gmra.mxu0 %v2875
        %v3085 = vpop.f32.mrf.mxu0
        %v3086 = vadd.f32 %v2953, %v3085
        %v3087 = vpop.f32.mrf.mxu0
        %v3088 = vadd.f32 %v2955, %v3087
        %3089 = vmatmul.bf16.gmra.mxu0 %v2878
        %v3090 = vpop.f32.mrf.mxu0
        %v3091 = vadd.f32 %v2958, %v3090
        %v3092 = vpop.f32.mrf.mxu0
        %v3093 = vadd.f32 %v2960, %v3092
        %3094 = vmatmul.bf16.gmra.mxu0 %v2881
        %v3095 = vpop.f32.mrf.mxu0
        %v3096 = vadd.f32 %v2963, %v3095
        %v3097 = vpop.f32.mrf.mxu0
        %v3098 = vadd.f32 %v2965, %v3097
        %3099 = vmatmul.bf16.gmra.mxu0 %v2884
        %v3100 = vpop.f32.mrf.mxu0
        %v3101 = vadd.f32 %v2968, %v3100
        %v3102 = vpop.f32.mrf.mxu0
        %v3103 = vadd.f32 %v2970, %v3102
        %3104 = vmatmul.bf16.gmra.mxu0 %v2887
        %v3105 = vpop.f32.mrf.mxu0
        %v3106 = vadd.f32 %v2973, %v3105
        %v3107 = vpop.f32.mrf.mxu0
        %v3108 = vadd.f32 %v2975, %v3107
        %3109 = vmatmul.bf16.gmra.mxu0 %v2890
        %v3110 = vpop.f32.mrf.mxu0
        %v3111 = vadd.f32 %v2978, %v3110
        %v3112 = vpop.f32.mrf.mxu0
        %v3113 = vadd.f32 %v2980, %v3112
        %3114 = vmatmul.bf16.gmra.mxu0 %v2893
        %v3115 = vpop.f32.mrf.mxu0
        %v3116 = vadd.f32 %v2983, %v3115
        %v3117 = vpop.f32.mrf.mxu0
        %v3118 = vadd.f32 %v2985, %v3117
        %3119 = vdwg.mxu0
        %v3120 = vld [vmem:[#allocation3 + $0x10] sm:$0xf]
        %v3121 = vld [vmem:[#allocation3 + $0x14] sm:$0xf]
        %v3122 = vld [vmem:[#allocation3 + $0x18] sm:$0xf]
        %v3123 = vld [vmem:[#allocation3 + $0x1c] sm:$0xf]
        %v3124 = vld [vmem:[#allocation3 + $0x20] sm:$0xf]
        %v3125 = vld [vmem:[#allocation3 + $0x24] sm:$0xf]
        %v3126 = vld [vmem:[#allocation3 + $0x28] sm:$0xf]
        %v3127 = vld [vmem:[#allocation3 + $0x2c] sm:$0xf]
        %v3128 = vld [vmem:[#allocation3 + $0x30] sm:$0xf]
        %v3129 = vld [vmem:[#allocation3 + $0x34] sm:$0xf]
        %v3130 = vld [vmem:[#allocation3 + $0x38] sm:$0xf]
        %v3131 = vld [vmem:[#allocation3 + $0x3c] sm:$0xf]
        %v3132 = vld [vmem:[#allocation3 + $0x40] sm:$0xf]
        %v3133 = vld [vmem:[#allocation3 + $0x44] sm:$0xf]
        %v3134 = vld [vmem:[#allocation3 + $0x48] sm:$0xf]
        %v3135 = vld [vmem:[#allocation3 + $0x4c] sm:$0xf]
        %v3136 = vld [vmem:[#allocation3 + $0x50] sm:$0xf]
        %v3137 = vld [vmem:[#allocation3 + $0x54] sm:$0xf]
        %v3138 = vld [vmem:[#allocation3 + $0x58] sm:$0xf]
        %v3139 = vld [vmem:[#allocation3 + $0x5c] sm:$0xf]
        %v3140 = vld [vmem:[#allocation3 + $0x60] sm:$0xf]
        %v3141 = vld [vmem:[#allocation3 + $0x64] sm:$0xf]
        %v3142 = vld [vmem:[#allocation3 + $0x68] sm:$0xf]
        %v3143 = vld [vmem:[#allocation3 + $0x6c] sm:$0xf]
        %v3144 = vld [vmem:[#allocation3 + $0x70] sm:$0xf]
        %v3145 = vld [vmem:[#allocation3 + $0x74] sm:$0xf]
        %v3146 = vld [vmem:[#allocation3 + $0x78] sm:$0xf]
        %v3147 = vld [vmem:[#allocation3 + $0x7c] sm:$0xf]
        %v3148 = vld [vmem:[#allocation3 + $0x80] sm:$0xf]
        %v3149 = vld [vmem:[#allocation3 + $0x84] sm:$0xf]
        %v3150 = vld [vmem:[#allocation3 + $0x88] sm:$0xf]
        %v3151 = vld [vmem:[#allocation3 + $0x8c] sm:$0xf]
        %s3152 = scalar_lea.vmem %s2, 96
        %v3153 = vld [vmem:[%s3152] sm:$0xf]
        %v3154 = vld [vmem:[%s3152 + $0x4] sm:$0xf]
        %v3155 = vld [vmem:[%s3152 + $0x8] sm:$0xf]
        %v3156 = vld [vmem:[%s3152 + $0xc] sm:$0xf]
        %v3157 = vld [vmem:[%s3152 + $0x10] sm:$0xf]
        %v3158 = vld [vmem:[%s3152 + $0x14] sm:$0xf]
        %v3159 = vld [vmem:[%s3152 + $0x18] sm:$0xf]
        %v3160 = vld [vmem:[%s3152 + $0x1c] sm:$0xf]
        %v3161 = vld [vmem:[%s3152 + $0x20] sm:$0xf]
        %v3162 = vld [vmem:[%s3152 + $0x24] sm:$0xf]
        %v3163 = vld [vmem:[%s3152 + $0x28] sm:$0xf]
        %v3164 = vld [vmem:[%s3152 + $0x2c] sm:$0xf]
        %v3197 = vunpack.c.l.b16 %v3120
        %v3198 = vunpack.c.l.b16 %v3121
        %v3199 = vunpack.c.l.b16 %v3122
        %v3200 = vunpack.c.l.b16 %v3123
        %v3201 = vunpack.c.l.b16 %v3124
        %v3202 = vunpack.c.l.b16 %v3125
        %v3203 = vunpack.c.l.b16 %v3126
        %v3204 = vunpack.c.l.b16 %v3127
        %v3205 = vunpack.c.l.b16 %v3128
        %v3206 = vunpack.c.l.b16 %v3129
        %v3207 = vunpack.c.l.b16 %v3130
        %v3208 = vunpack.c.l.b16 %v3131
        %v3209 = vunpack.c.l.b16 %v3132
        %v3210 = vunpack.c.l.b16 %v3133
        %v3211 = vunpack.c.l.b16 %v3134
        %v3212 = vunpack.c.l.b16 %v3135
        %v3213 = vunpack.c.l.b16 %v3136
        %v3214 = vunpack.c.l.b16 %v3137
        %v3215 = vunpack.c.l.b16 %v3138
        %v3216 = vunpack.c.l.b16 %v3139
        %v3217 = vunpack.c.l.b16 %v3140
        %v3218 = vunpack.c.l.b16 %v3141
        %v3219 = vunpack.c.l.b16 %v3142
        %v3220 = vunpack.c.l.b16 %v3143
        %v3221 = vunpack.c.l.b16 %v3144
        %v3222 = vunpack.c.l.b16 %v3145
        %v3223 = vunpack.c.l.b16 %v3146
        %v3224 = vunpack.c.l.b16 %v3147
        %v3225 = vunpack.c.l.b16 %v3148
        %v3226 = vunpack.c.l.b16 %v3149
        %v3227 = vunpack.c.l.b16 %v3150
        %v3228 = vunpack.c.l.b16 %v3151
        %v3229 = vpack.c.b16 %v3198, %v3197
        %v3230 = vpack.c.b16 %v3200, %v3199
        %v3231 = vpack.c.b16 %v3202, %v3201
        %v3232 = vpack.c.b16 %v3204, %v3203
        %v3233 = vpack.c.b16 %v3206, %v3205
        %v3234 = vpack.c.b16 %v3208, %v3207
        %v3235 = vpack.c.b16 %v3210, %v3209
        %v3236 = vpack.c.b16 %v3212, %v3211
        %v3237 = vpack.c.b16 %v3214, %v3213
        %v3238 = vpack.c.b16 %v3216, %v3215
        %v3239 = vpack.c.b16 %v3218, %v3217
        %v3240 = vpack.c.b16 %v3220, %v3219
        %v3241 = vpack.c.b16 %v3222, %v3221
        %v3242 = vpack.c.b16 %v3224, %v3223
        %v3243 = vpack.c.b16 %v3226, %v3225
        %v3244 = vpack.c.b16 %v3228, %v3227
        %v3257 = vunpack.c.l.b16 %v3153
        %v3258 = vunpack.c.l.b16 %v3154
        %v3259 = vunpack.c.l.b16 %v3155
        %v3260 = vunpack.c.l.b16 %v3156
        %v3261 = vunpack.c.l.b16 %v3157
        %v3262 = vunpack.c.l.b16 %v3158
        %v3263 = vunpack.c.l.b16 %v3159
        %v3264 = vunpack.c.l.b16 %v3160
        %v3265 = vunpack.c.l.b16 %v3161
        %v3266 = vunpack.c.l.b16 %v3162
        %v3267 = vunpack.c.l.b16 %v3163
        %v3268 = vunpack.c.l.b16 %v3164
        %v3269 = vpack.c.b16 %v3258, %v3257
        %v3270 = vpack.c.b16 %v3260, %v3259
        %v3271 = vpack.c.b16 %v3262, %v3261
        %v3272 = vpack.c.b16 %v3264, %v3263
        %v3273 = vpack.c.b16 %v3266, %v3265
        %v3274 = vpack.c.b16 %v3268, %v3267
        %v3282 = vsel %vm2849, %v3229, 0
        %v3285 = vsel %vm2849, %v3230, 0
        %v3288 = vsel %vm2849, %v3231, 0
        %v3291 = vsel %vm2849, %v3232, 0
        %v3294 = vsel %vm2849, %v3233, 0
        %v3297 = vsel %vm2849, %v3234, 0
        %v3300 = vsel %vm2849, %v3235, 0
        %v3303 = vsel %vm2849, %v3236, 0
        %v3306 = vsel %vm2849, %v3237, 0
        %v3309 = vsel %vm2849, %v3238, 0
        %v3312 = vsel %vm2849, %v3239, 0
        %v3315 = vsel %vm2849, %v3240, 0
        %v3318 = vsel %vm2849, %v3241, 0
        %v3321 = vsel %vm2849, %v3242, 0
        %v3324 = vsel %vm2849, %v3243, 0
        %v3327 = vsel %vm2849, %v3244, 0
        %3329 = vmatpush.bf16.msra.mxu0 0
        %3330 = vmatpush.bf16.msra.mxu0 0
        %3331 = vmatpush.bf16.msra.mxu0 %v3274
        %3332 = vmatpush.bf16.msra.mxu0 %v3273
        %3333 = vmatpush.bf16.msra.mxu0 %v3272
        %3334 = vmatpush.bf16.msra.mxu0 %v3271
        %3335 = vmatpush.bf16.msra.mxu0 %v3270
        %3336 = vmatpush.bf16.msra.mxu0 %v3269
        %3337 = vmatmul.bf16.gmra.mxu0 %v3282
        %v3338 = vpop.f32.mrf.mxu0
        %v3339 = vadd.f32 0.0, %v3338
        %v3340 = vpop.f32.mrf.mxu0
        %v3341 = vadd.f32 0.0, %v3340
        %3342 = vmatmul.bf16.gmra.mxu0 %v3285
        %v3343 = vpop.f32.mrf.mxu0
        %v3344 = vadd.f32 0.0, %v3343
        %v3345 = vpop.f32.mrf.mxu0
        %v3346 = vadd.f32 0.0, %v3345
        %3347 = vmatmul.bf16.gmra.mxu0 %v3288
        %v3348 = vpop.f32.mrf.mxu0
        %v3349 = vadd.f32 0.0, %v3348
        %v3350 = vpop.f32.mrf.mxu0
        %v3351 = vadd.f32 0.0, %v3350
        %3352 = vmatmul.bf16.gmra.mxu0 %v3291
        %v3353 = vpop.f32.mrf.mxu0
        %v3354 = vadd.f32 0.0, %v3353
        %v3355 = vpop.f32.mrf.mxu0
        %v3356 = vadd.f32 0.0, %v3355
        %3357 = vmatmul.bf16.gmra.mxu0 %v3294
        %v3358 = vpop.f32.mrf.mxu0
        %v3359 = vadd.f32 0.0, %v3358
        %v3360 = vpop.f32.mrf.mxu0
        %v3361 = vadd.f32 0.0, %v3360
        %3362 = vmatmul.bf16.gmra.mxu0 %v3297
        %v3363 = vpop.f32.mrf.mxu0
        %v3364 = vadd.f32 0.0, %v3363
        %v3365 = vpop.f32.mrf.mxu0
        %v3366 = vadd.f32 0.0, %v3365
        %3367 = vmatmul.bf16.gmra.mxu0 %v3300
        %v3368 = vpop.f32.mrf.mxu0
        %v3369 = vadd.f32 0.0, %v3368
        %v3370 = vpop.f32.mrf.mxu0
        %v3371 = vadd.f32 0.0, %v3370
        %3372 = vmatmul.bf16.gmra.mxu0 %v3303
        %v3373 = vpop.f32.mrf.mxu0
        %v3374 = vadd.f32 0.0, %v3373
        %v3375 = vpop.f32.mrf.mxu0
        %v3376 = vadd.f32 0.0, %v3375
        %3377 = vmatmul.bf16.gmra.mxu0 %v3306
        %v3378 = vpop.f32.mrf.mxu0
        %v3379 = vadd.f32 0.0, %v3378
        %v3380 = vpop.f32.mrf.mxu0
        %v3381 = vadd.f32 0.0, %v3380
        %3382 = vmatmul.bf16.gmra.mxu0 %v3309
        %v3383 = vpop.f32.mrf.mxu0
        %v3384 = vadd.f32 0.0, %v3383
        %v3385 = vpop.f32.mrf.mxu0
        %v3386 = vadd.f32 0.0, %v3385
        %3387 = vmatmul.bf16.gmra.mxu0 %v3312
        %v3388 = vpop.f32.mrf.mxu0
        %v3389 = vadd.f32 0.0, %v3388
        %v3390 = vpop.f32.mrf.mxu0
        %v3391 = vadd.f32 0.0, %v3390
        %3392 = vmatmul.bf16.gmra.mxu0 %v3315
        %v3393 = vpop.f32.mrf.mxu0
        %v3394 = vadd.f32 0.0, %v3393
        %v3395 = vpop.f32.mrf.mxu0
        %v3396 = vadd.f32 0.0, %v3395
        %3397 = vmatmul.bf16.gmra.mxu0 %v3318
        %v3398 = vpop.f32.mrf.mxu0
        %v3399 = vadd.f32 0.0, %v3398
        %v3400 = vpop.f32.mrf.mxu0
        %v3401 = vadd.f32 0.0, %v3400
        %3402 = vmatmul.bf16.gmra.mxu0 %v3321
        %v3403 = vpop.f32.mrf.mxu0
        %v3404 = vadd.f32 0.0, %v3403
        %v3405 = vpop.f32.mrf.mxu0
        %v3406 = vadd.f32 0.0, %v3405
        %3407 = vmatmul.bf16.gmra.mxu0 %v3324
        %v3408 = vpop.f32.mrf.mxu0
        %v3409 = vadd.f32 0.0, %v3408
        %v3410 = vpop.f32.mrf.mxu0
        %v3411 = vadd.f32 0.0, %v3410
        %3412 = vmatmul.bf16.gmra.mxu0 %v3327
        %v3413 = vpop.f32.mrf.mxu0
        %v3414 = vadd.f32 0.0, %v3413
        %v3415 = vpop.f32.mrf.mxu0
        %v3416 = vadd.f32 0.0, %v3415
        %3417 = vdwg.mxu0
        %v3418 = vadd.f32 %v3041, %v3339
        %v3419 = vadd.f32 %v3043, %v3341
        %v3420 = vadd.f32 %v3046, %v3344
        %v3421 = vadd.f32 %v3048, %v3346
        %v3422 = vadd.f32 %v3051, %v3349
        %v3423 = vadd.f32 %v3053, %v3351
        %v3424 = vadd.f32 %v3056, %v3354
        %v3425 = vadd.f32 %v3058, %v3356
        %v3426 = vadd.f32 %v3061, %v3359
        %v3427 = vadd.f32 %v3063, %v3361
        %v3428 = vadd.f32 %v3066, %v3364
        %v3429 = vadd.f32 %v3068, %v3366
        %v3430 = vadd.f32 %v3071, %v3369
        %v3431 = vadd.f32 %v3073, %v3371
        %v3432 = vadd.f32 %v3076, %v3374
        %v3433 = vadd.f32 %v3078, %v3376
        %v3434 = vadd.f32 %v3081, %v3379
        %v3435 = vadd.f32 %v3083, %v3381
        %v3436 = vadd.f32 %v3086, %v3384
        %v3437 = vadd.f32 %v3088, %v3386
        %v3438 = vadd.f32 %v3091, %v3389
        %v3439 = vadd.f32 %v3093, %v3391
        %v3440 = vadd.f32 %v3096, %v3394
        %v3441 = vadd.f32 %v3098, %v3396
        %v3442 = vadd.f32 %v3101, %v3399
        %v3443 = vadd.f32 %v3103, %v3401
        %v3444 = vadd.f32 %v3106, %v3404
        %v3445 = vadd.f32 %v3108, %v3406
        %v3446 = vadd.f32 %v3111, %v3409
        %v3447 = vadd.f32 %v3113, %v3411
        %v3448 = vadd.f32 %v3116, %v3414
        %v3449 = vadd.f32 %v3118, %v3416
        %v3450 = vld [vmem:[%s5] sm:$0x1]
        %v3452 = vperm.slane %v3450, 0
        %v3454 = vadd.f32 %v3418, %v3452
        %v3455 = vadd.f32 %v3419, %v3452
        %v3456 = vadd.f32 %v3420, %v3452
        %v3457 = vadd.f32 %v3421, %v3452
        %v3458 = vadd.f32 %v3422, %v3452
        %v3459 = vadd.f32 %v3423, %v3452
        %v3460 = vadd.f32 %v3424, %v3452
        %v3461 = vadd.f32 %v3425, %v3452
        %v3462 = vadd.f32 %v3426, %v3452
        %v3463 = vadd.f32 %v3427, %v3452
        %v3464 = vadd.f32 %v3428, %v3452
        %v3465 = vadd.f32 %v3429, %v3452
        %v3466 = vadd.f32 %v3430, %v3452
        %v3467 = vadd.f32 %v3431, %v3452
        %v3468 = vadd.f32 %v3432, %v3452
        %v3469 = vadd.f32 %v3433, %v3452
        %v3470 = vadd.f32 %v3434, %v3452
        %v3471 = vadd.f32 %v3435, %v3452
        %v3472 = vadd.f32 %v3436, %v3452
        %v3473 = vadd.f32 %v3437, %v3452
        %v3474 = vadd.f32 %v3438, %v3452
        %v3475 = vadd.f32 %v3439, %v3452
        %v3476 = vadd.f32 %v3440, %v3452
        %v3477 = vadd.f32 %v3441, %v3452
        %v3478 = vadd.f32 %v3442, %v3452
        %v3479 = vadd.f32 %v3443, %v3452
        %v3480 = vadd.f32 %v3444, %v3452
        %v3481 = vadd.f32 %v3445, %v3452
        %v3482 = vadd.f32 %v3446, %v3452
        %v3483 = vadd.f32 %v3447, %v3452
        %v3484 = vadd.f32 %v3448, %v3452
        %v3485 = vadd.f32 %v3449, %v3452
        %v3486 = vmax.f32 %v3454, 0.0
        %v3487 = vmax.f32 %v3455, 0.0
        %v3488 = vmax.f32 %v3456, 0.0
        %v3489 = vmax.f32 %v3457, 0.0
        %v3490 = vmax.f32 %v3458, 0.0
        %v3491 = vmax.f32 %v3459, 0.0
        %v3492 = vmax.f32 %v3460, 0.0
        %v3493 = vmax.f32 %v3461, 0.0
        %v3494 = vmax.f32 %v3462, 0.0
        %v3495 = vmax.f32 %v3463, 0.0
        %v3496 = vmax.f32 %v3464, 0.0
        %v3497 = vmax.f32 %v3465, 0.0
        %v3498 = vmax.f32 %v3466, 0.0
        %v3499 = vmax.f32 %v3467, 0.0
        %v3500 = vmax.f32 %v3468, 0.0
        %v3501 = vmax.f32 %v3469, 0.0
        %v3502 = vmax.f32 %v3470, 0.0
        %v3503 = vmax.f32 %v3471, 0.0
        %v3504 = vmax.f32 %v3472, 0.0
        %v3505 = vmax.f32 %v3473, 0.0
        %v3506 = vmax.f32 %v3474, 0.0
        %v3507 = vmax.f32 %v3475, 0.0
        %v3508 = vmax.f32 %v3476, 0.0
        %v3509 = vmax.f32 %v3477, 0.0
        %v3510 = vmax.f32 %v3478, 0.0
        %v3511 = vmax.f32 %v3479, 0.0
        %v3512 = vmax.f32 %v3480, 0.0
        %v3513 = vmax.f32 %v3481, 0.0
        %v3514 = vmax.f32 %v3482, 0.0
        %v3515 = vmax.f32 %v3483, 0.0
        %v3516 = vmax.f32 %v3484, 0.0
        %v3517 = vmax.f32 %v3485, 0.0
        %v3518 = vpack.c.bf16 %v3487, %v3486
        %v3519 = vpack.c.bf16 %v3489, %v3488
        %v3520 = vpack.c.bf16 %v3491, %v3490
        %v3521 = vpack.c.bf16 %v3493, %v3492
        %v3522 = vpack.c.bf16 %v3495, %v3494
        %v3523 = vpack.c.bf16 %v3497, %v3496
        %v3524 = vpack.c.bf16 %v3499, %v3498
        %v3525 = vpack.c.bf16 %v3501, %v3500
        %v3526 = vpack.c.bf16 %v3503, %v3502
        %v3527 = vpack.c.bf16 %v3505, %v3504
        %v3528 = vpack.c.bf16 %v3507, %v3506
        %v3529 = vpack.c.bf16 %v3509, %v3508
        %v3530 = vpack.c.bf16 %v3511, %v3510
        %v3531 = vpack.c.bf16 %v3513, %v3512
        %v3532 = vpack.c.bf16 %v3515, %v3514
        %v3533 = vpack.c.bf16 %v3517, %v3516
        %v3534 = vld [vmem:[%s3] sm:$0xf]
        %v3535 = vld [vmem:[%s3 + $0x4] sm:$0xf]
        %v3536 = vld [vmem:[%s3 + $0x8] sm:$0xf]
        %v3537 = vld [vmem:[%s3 + $0xc] sm:$0xf]
        %v3538 = vld [vmem:[%s6] sm:$0x1]
        %v3540 = vperm.slane %v3538, 0
        %v3546 = vunpack.c.l.b16 %v3534
        %v3547 = vunpack.c.l.b16 %v3535
        %v3548 = vunpack.c.l.b16 %v3536
        %v3549 = vunpack.c.l.b16 %v3537
        %v3550 = vpack.c.b16 %v3547, %v3546
        %v3551 = vpack.c.b16 %v3549, %v3548
        %vm3554 = vcmask 261120
        %v3556 = vsel %vm3554, %v3518, 0
        %v3559 = vsel %vm3554, %v3519, 0
        %v3562 = vsel %vm3554, %v3520, 0
        %v3565 = vsel %vm3554, %v3521, 0
        %v3568 = vsel %vm3554, %v3522, 0
        %v3571 = vsel %vm3554, %v3523, 0
        %v3574 = vsel %vm3554, %v3524, 0
        %v3577 = vsel %vm3554, %v3525, 0
        %v3580 = vsel %vm3554, %v3526, 0
        %v3583 = vsel %vm3554, %v3527, 0
        %v3586 = vsel %vm3554, %v3528, 0
        %v3589 = vsel %vm3554, %v3529, 0
        %v3592 = vsel %vm3554, %v3530, 0
        %v3595 = vsel %vm3554, %v3531, 0
        %v3598 = vsel %vm3554, %v3532, 0
        %v3601 = vsel %vm3554, %v3533, 0
        %3603 = vmatpush.bf16.msra.mxu0 0
        %3604 = vmatpush.bf16.msra.mxu0 0
        %3605 = vmatpush.bf16.msra.mxu0 0
        %3606 = vmatpush.bf16.msra.mxu0 0
        %3607 = vmatpush.bf16.msra.mxu0 0
        %3608 = vmatpush.bf16.msra.mxu0 0
        %3609 = vmatpush.bf16.msra.mxu0 %v3551
        %3610 = vmatpush.bf16.msra.mxu0 %v3550
        %3611 = vmatmul.bf16.gmra.mxu0 %v3556
        %v3612 = vpop.f32.mrf.mxu0
        %v3613 = vadd.f32 %v3540, %v3612
        %v3614 = vpop.f32.mrf.mxu0
        %v3615 = vadd.f32 %v3540, %v3614
        %3616 = vmatmul.bf16.gmra.mxu0 %v3559
        %v3617 = vpop.f32.mrf.mxu0
        %v3618 = vadd.f32 %v3540, %v3617
        %v3619 = vpop.f32.mrf.mxu0
        %v3620 = vadd.f32 %v3540, %v3619
        %3621 = vmatmul.bf16.gmra.mxu0 %v3562
        %v3622 = vpop.f32.mrf.mxu0
        %v3623 = vadd.f32 %v3540, %v3622
        %v3624 = vpop.f32.mrf.mxu0
        %v3625 = vadd.f32 %v3540, %v3624
        %3626 = vmatmul.bf16.gmra.mxu0 %v3565
        %v3627 = vpop.f32.mrf.mxu0
        %v3628 = vadd.f32 %v3540, %v3627
        %v3629 = vpop.f32.mrf.mxu0
        %v3630 = vadd.f32 %v3540, %v3629
        %3631 = vmatmul.bf16.gmra.mxu0 %v3568
        %v3632 = vpop.f32.mrf.mxu0
        %v3633 = vadd.f32 %v3540, %v3632
        %v3634 = vpop.f32.mrf.mxu0
        %v3635 = vadd.f32 %v3540, %v3634
        %3636 = vmatmul.bf16.gmra.mxu0 %v3571
        %v3637 = vpop.f32.mrf.mxu0
        %v3638 = vadd.f32 %v3540, %v3637
        %v3639 = vpop.f32.mrf.mxu0
        %v3640 = vadd.f32 %v3540, %v3639
        %3641 = vmatmul.bf16.gmra.mxu0 %v3574
        %v3642 = vpop.f32.mrf.mxu0
        %v3643 = vadd.f32 %v3540, %v3642
        %v3644 = vpop.f32.mrf.mxu0
        %v3645 = vadd.f32 %v3540, %v3644
        %3646 = vmatmul.bf16.gmra.mxu0 %v3577
        %v3647 = vpop.f32.mrf.mxu0
        %v3648 = vadd.f32 %v3540, %v3647
        %v3649 = vpop.f32.mrf.mxu0
        %v3650 = vadd.f32 %v3540, %v3649
        %3651 = vmatmul.bf16.gmra.mxu0 %v3580
        %v3652 = vpop.f32.mrf.mxu0
        %v3653 = vadd.f32 %v3540, %v3652
        %v3654 = vpop.f32.mrf.mxu0
        %v3655 = vadd.f32 %v3540, %v3654
        %3656 = vmatmul.bf16.gmra.mxu0 %v3583
        %v3657 = vpop.f32.mrf.mxu0
        %v3658 = vadd.f32 %v3540, %v3657
        %v3659 = vpop.f32.mrf.mxu0
        %v3660 = vadd.f32 %v3540, %v3659
        %3661 = vmatmul.bf16.gmra.mxu0 %v3586
        %v3662 = vpop.f32.mrf.mxu0
        %v3663 = vadd.f32 %v3540, %v3662
        %v3664 = vpop.f32.mrf.mxu0
        %v3665 = vadd.f32 %v3540, %v3664
        %3666 = vmatmul.bf16.gmra.mxu0 %v3589
        %v3667 = vpop.f32.mrf.mxu0
        %v3668 = vadd.f32 %v3540, %v3667
        %v3669 = vpop.f32.mrf.mxu0
        %v3670 = vadd.f32 %v3540, %v3669
        %3671 = vmatmul.bf16.gmra.mxu0 %v3592
        %v3672 = vpop.f32.mrf.mxu0
        %v3673 = vadd.f32 %v3540, %v3672
        %v3674 = vpop.f32.mrf.mxu0
        %v3675 = vadd.f32 %v3540, %v3674
        %3676 = vmatmul.bf16.gmra.mxu0 %v3595
        %v3677 = vpop.f32.mrf.mxu0
        %v3678 = vadd.f32 %v3540, %v3677
        %v3679 = vpop.f32.mrf.mxu0
        %v3680 = vadd.f32 %v3540, %v3679
        %3681 = vmatmul.bf16.gmra.mxu0 %v3598
        %v3682 = vpop.f32.mrf.mxu0
        %v3683 = vadd.f32 %v3540, %v3682
        %v3684 = vpop.f32.mrf.mxu0
        %v3685 = vadd.f32 %v3540, %v3684
        %3686 = vmatmul.bf16.gmra.mxu0 %v3601
        %v3687 = vpop.f32.mrf.mxu0
        %v3688 = vadd.f32 %v3540, %v3687
        %v3689 = vpop.f32.mrf.mxu0
        %v3690 = vadd.f32 %v3540, %v3689
        %3691 = vdwg.mxu0
        %v3692 = vld [vmem:[%s306] sm:$0xf]
        %v3693 = vld [vmem:[%s306 + $0x4] sm:$0xf]
        %v3694 = vld [vmem:[%s306 + $0x8] sm:$0xf]
        %v3695 = vld [vmem:[%s306 + $0xc] sm:$0xf]
        %v3696 = vld [vmem:[%s306 + $0x10] sm:$0xf]
        %v3697 = vld [vmem:[%s306 + $0x14] sm:$0xf]
        %v3698 = vld [vmem:[%s306 + $0x18] sm:$0xf]
        %v3699 = vld [vmem:[%s306 + $0x1c] sm:$0xf]
        %v3700 = vld [vmem:[%s306 + $0x20] sm:$0xf]
        %v3701 = vld [vmem:[%s306 + $0x24] sm:$0xf]
        %v3702 = vld [vmem:[%s306 + $0x28] sm:$0xf]
        %v3703 = vld [vmem:[%s306 + $0x2c] sm:$0xf]
        %v3704 = vld [vmem:[%s306 + $0x30] sm:$0xf]
        %v3705 = vld [vmem:[%s306 + $0x34] sm:$0xf]
        %v3706 = vld [vmem:[%s306 + $0x38] sm:$0xf]
        %v3707 = vld [vmem:[%s306 + $0x3c] sm:$0xf]
        %v3708 = vld [vmem:[%s306 + $0x40] sm:$0xf]
        %v3709 = vld [vmem:[%s306 + $0x44] sm:$0xf]
        %v3710 = vld [vmem:[%s306 + $0x48] sm:$0xf]
        %v3711 = vld [vmem:[%s306 + $0x4c] sm:$0xf]
        %v3712 = vld [vmem:[%s306 + $0x50] sm:$0xf]
        %v3713 = vld [vmem:[%s306 + $0x54] sm:$0xf]
        %v3714 = vld [vmem:[%s306 + $0x58] sm:$0xf]
        %v3715 = vld [vmem:[%s306 + $0x5c] sm:$0xf]
        %v3716 = vld [vmem:[%s306 + $0x60] sm:$0xf]
        %v3717 = vld [vmem:[%s306 + $0x64] sm:$0xf]
        %v3718 = vld [vmem:[%s306 + $0x68] sm:$0xf]
        %v3719 = vld [vmem:[%s306 + $0x6c] sm:$0xf]
        %v3720 = vld [vmem:[%s306 + $0x70] sm:$0xf]
        %v3721 = vld [vmem:[%s306 + $0x74] sm:$0xf]
        %v3722 = vld [vmem:[%s306 + $0x78] sm:$0xf]
        %v3723 = vld [vmem:[%s306 + $0x7c] sm:$0xf]
        %v3724 = vunpack.c.l.bf16 %v3692
        %v3725 = vunpack.c.l.bf16 %v3693
        %v3726 = vunpack.c.l.bf16 %v3694
        %v3727 = vunpack.c.l.bf16 %v3695
        %v3728 = vunpack.c.l.bf16 %v3696
        %v3729 = vunpack.c.l.bf16 %v3697
        %v3730 = vunpack.c.l.bf16 %v3698
        %v3731 = vunpack.c.l.bf16 %v3699
        %v3732 = vunpack.c.l.bf16 %v3700
        %v3733 = vunpack.c.l.bf16 %v3701
        %v3734 = vunpack.c.l.bf16 %v3702
        %v3735 = vunpack.c.l.bf16 %v3703
        %v3736 = vunpack.c.l.bf16 %v3704
        %v3737 = vunpack.c.l.bf16 %v3705
        %v3738 = vunpack.c.l.bf16 %v3706
        %v3739 = vunpack.c.l.bf16 %v3707
        %v3740 = vunpack.c.l.bf16 %v3708
        %v3741 = vunpack.c.l.bf16 %v3709
        %v3742 = vunpack.c.l.bf16 %v3710
        %v3743 = vunpack.c.l.bf16 %v3711
        %v3744 = vunpack.c.l.bf16 %v3712
        %v3745 = vunpack.c.l.bf16 %v3713
        %v3746 = vunpack.c.l.bf16 %v3714
        %v3747 = vunpack.c.l.bf16 %v3715
        %v3748 = vunpack.c.l.bf16 %v3716
        %v3749 = vunpack.c.l.bf16 %v3717
        %v3750 = vunpack.c.l.bf16 %v3718
        %v3751 = vunpack.c.l.bf16 %v3719
        %v3752 = vunpack.c.l.bf16 %v3720
        %v3753 = vunpack.c.l.bf16 %v3721
        %v3754 = vunpack.c.l.bf16 %v3722
        %v3755 = vunpack.c.l.bf16 %v3723
        %v3756 = vadd.f32 %v3613, %v3724
        %v3757 = vadd.f32 %v3615, %v3725
        %v3758 = vadd.f32 %v3618, %v3726
        %v3759 = vadd.f32 %v3620, %v3727
        %v3760 = vadd.f32 %v3623, %v3728
        %v3761 = vadd.f32 %v3625, %v3729
        %v3762 = vadd.f32 %v3628, %v3730
        %v3763 = vadd.f32 %v3630, %v3731
        %v3764 = vadd.f32 %v3633, %v3732
        %v3765 = vadd.f32 %v3635, %v3733
        %v3766 = vadd.f32 %v3638, %v3734
        %v3767 = vadd.f32 %v3640, %v3735
        %v3768 = vadd.f32 %v3643, %v3736
        %v3769 = vadd.f32 %v3645, %v3737
        %v3770 = vadd.f32 %v3648, %v3738
        %v3771 = vadd.f32 %v3650, %v3739
        %v3772 = vadd.f32 %v3653, %v3740
        %v3773 = vadd.f32 %v3655, %v3741
        %v3774 = vadd.f32 %v3658, %v3742
        %v3775 = vadd.f32 %v3660, %v3743
        %v3776 = vadd.f32 %v3663, %v3744
        %v3777 = vadd.f32 %v3665, %v3745
        %v3778 = vadd.f32 %v3668, %v3746
        %v3779 = vadd.f32 %v3670, %v3747
        %v3780 = vadd.f32 %v3673, %v3748
        %v3781 = vadd.f32 %v3675, %v3749
        %v3782 = vadd.f32 %v3678, %v3750
        %v3783 = vadd.f32 %v3680, %v3751
        %v3784 = vadd.f32 %v3683, %v3752
        %v3785 = vadd.f32 %v3685, %v3753
        %v3786 = vadd.f32 %v3688, %v3754
        %v3787 = vadd.f32 %v3690, %v3755
        %v3788 = vmax.f32 %v3756, 0.0
        %v3789 = vmax.f32 %v3757, 0.0
        %v3790 = vmax.f32 %v3758, 0.0
        %v3791 = vmax.f32 %v3759, 0.0
        %v3792 = vmax.f32 %v3760, 0.0
        %v3793 = vmax.f32 %v3761, 0.0
        %v3794 = vmax.f32 %v3762, 0.0
        %v3795 = vmax.f32 %v3763, 0.0
        %v3796 = vmax.f32 %v3764, 0.0
        %v3797 = vmax.f32 %v3765, 0.0
        %v3798 = vmax.f32 %v3766, 0.0
        %v3799 = vmax.f32 %v3767, 0.0
        %v3800 = vmax.f32 %v3768, 0.0
        %v3801 = vmax.f32 %v3769, 0.0
        %v3802 = vmax.f32 %v3770, 0.0
        %v3803 = vmax.f32 %v3771, 0.0
        %v3804 = vmax.f32 %v3772, 0.0
        %v3805 = vmax.f32 %v3773, 0.0
        %v3806 = vmax.f32 %v3774, 0.0
        %v3807 = vmax.f32 %v3775, 0.0
        %v3808 = vmax.f32 %v3776, 0.0
        %v3809 = vmax.f32 %v3777, 0.0
        %v3810 = vmax.f32 %v3778, 0.0
        %v3811 = vmax.f32 %v3779, 0.0
        %v3812 = vmax.f32 %v3780, 0.0
        %v3813 = vmax.f32 %v3781, 0.0
        %v3814 = vmax.f32 %v3782, 0.0
        %v3815 = vmax.f32 %v3783, 0.0
        %v3816 = vmax.f32 %v3784, 0.0
        %v3817 = vmax.f32 %v3785, 0.0
        %v3818 = vmax.f32 %v3786, 0.0
        %v3819 = vmax.f32 %v3787, 0.0
        %v3820 = vpack.c.bf16 %v3788, %v3788
        %v3821 = vpack.c.bf16 %v3789, %v3789
        %v3822 = vpack.c.bf16 %v3790, %v3790
        %v3823 = vpack.c.bf16 %v3791, %v3791
        %v3824 = vpack.c.bf16 %v3792, %v3792
        %v3825 = vpack.c.bf16 %v3793, %v3793
        %v3826 = vpack.c.bf16 %v3794, %v3794
        %v3827 = vpack.c.bf16 %v3795, %v3795
        %v3828 = vpack.c.bf16 %v3796, %v3796
        %v3829 = vpack.c.bf16 %v3797, %v3797
        %v3830 = vpack.c.bf16 %v3798, %v3798
        %v3831 = vpack.c.bf16 %v3799, %v3799
        %v3832 = vpack.c.bf16 %v3800, %v3800
        %v3833 = vpack.c.bf16 %v3801, %v3801
        %v3834 = vpack.c.bf16 %v3802, %v3802
        %v3835 = vpack.c.bf16 %v3803, %v3803
        %v3836 = vpack.c.bf16 %v3804, %v3804
        %v3837 = vpack.c.bf16 %v3805, %v3805
        %v3838 = vpack.c.bf16 %v3806, %v3806
        %v3839 = vpack.c.bf16 %v3807, %v3807
        %v3840 = vpack.c.bf16 %v3808, %v3808
        %v3841 = vpack.c.bf16 %v3809, %v3809
        %v3842 = vpack.c.bf16 %v3810, %v3810
        %v3843 = vpack.c.bf16 %v3811, %v3811
        %v3844 = vpack.c.bf16 %v3812, %v3812
        %v3845 = vpack.c.bf16 %v3813, %v3813
        %v3846 = vpack.c.bf16 %v3814, %v3814
        %v3847 = vpack.c.bf16 %v3815, %v3815
        %v3848 = vpack.c.bf16 %v3816, %v3816
        %v3849 = vpack.c.bf16 %v3817, %v3817
        %v3850 = vpack.c.bf16 %v3818, %v3818
        %v3851 = vpack.c.bf16 %v3819, %v3819
        %3852 = vst [vmem:[%s298] sm:$0xf] %v3820
        %3853 = vst [vmem:[%s298 + $0x4] sm:$0xf] %v3821
        %3854 = vst [vmem:[%s298 + $0x8] sm:$0xf] %v3822
        %3855 = vst [vmem:[%s298 + $0xc] sm:$0xf] %v3823
        %3856 = vst [vmem:[%s298 + $0x10] sm:$0xf] %v3824
        %3857 = vst [vmem:[%s298 + $0x14] sm:$0xf] %v3825
        %3858 = vst [vmem:[%s298 + $0x18] sm:$0xf] %v3826
        %3859 = vst [vmem:[%s298 + $0x1c] sm:$0xf] %v3827
        %3860 = vst [vmem:[%s298 + $0x20] sm:$0xf] %v3828
        %3861 = vst [vmem:[%s298 + $0x24] sm:$0xf] %v3829
        %3862 = vst [vmem:[%s298 + $0x28] sm:$0xf] %v3830
        %3863 = vst [vmem:[%s298 + $0x2c] sm:$0xf] %v3831
        %3864 = vst [vmem:[%s298 + $0x30] sm:$0xf] %v3832
        %3865 = vst [vmem:[%s298 + $0x34] sm:$0xf] %v3833
        %3866 = vst [vmem:[%s298 + $0x38] sm:$0xf] %v3834
        %3867 = vst [vmem:[%s298 + $0x3c] sm:$0xf] %v3835
        %3868 = vst [vmem:[%s298 + $0x40] sm:$0xf] %v3836
        %3869 = vst [vmem:[%s298 + $0x44] sm:$0xf] %v3837
        %3870 = vst [vmem:[%s298 + $0x48] sm:$0xf] %v3838
        %3871 = vst [vmem:[%s298 + $0x4c] sm:$0xf] %v3839
        %3872 = vst [vmem:[%s298 + $0x50] sm:$0xf] %v3840
        %3873 = vst [vmem:[%s298 + $0x54] sm:$0xf] %v3841
        %3874 = vst [vmem:[%s298 + $0x58] sm:$0xf] %v3842
        %3875 = vst [vmem:[%s298 + $0x5c] sm:$0xf] %v3843
        %3876 = vst [vmem:[%s298 + $0x60] sm:$0xf] %v3844
        %3877 = vst [vmem:[%s298 + $0x64] sm:$0xf] %v3845
        %3878 = vst [vmem:[%s298 + $0x68] sm:$0xf] %v3846
        %3879 = vst [vmem:[%s298 + $0x6c] sm:$0xf] %v3847
        %3880 = vst [vmem:[%s298 + $0x70] sm:$0xf] %v3848
        %3881 = vst [vmem:[%s298 + $0x74] sm:$0xf] %v3849
        %3882 = vst [vmem:[%s298 + $0x78] sm:$0xf] %v3850
        %3883 = vst [vmem:[%s298 + $0x7c] sm:$0xf] %v3851
        %s3884 = sand.u32 %s213, 1
        %s3885 = scalar_lea.sflag [#allocation6], %s3884
        %s3886 = sand.u32 %s213, 1
        %s3887 = smul.addr %s3886, 128
        %s3888 = scalar_lea.vmem [#allocation5], %s3887
        // Predicated region
        $region76: #{tpu_custom_call.1} parent=51 // pred_check
          %p3889 = pneg %p223
        $region77: #{tpu_custom_call.1} parent=51 // pred_check_branch
          %3891 = sbr.rel (%p3889) target = $region79
        $region78: #{tpu_custom_call.1} parent=51 // pred_region
          %s3892 = smul.u32 16, %s28
          %3894 = vsyncadd %s3885, 0
          %s3895 = smul.addr %s3892, 2
          %s3896 = smul.addr %s27, 32
          %s3897 = sadd.s32 %s3895, %s3896
          %s3898 = smul.addr %s3897, 4
          %s3899 = scalar_lea.hbm %s9, %s3898
          %s3900 = sshll.u32 %s3888, 4
          %s3901 = int_to_ptr.vmem [resolvable:$true] %s3900
          %s3902 = sshll.u32 %s3899, 4
          %s3903 = int_to_ptr.hbm [resolvable:$true] %s3902
          %3908 = dma.vmem_to_hbm [thread:$0]  %s3901, 2048, %s3903, %s3885, 64, 64, 4
        $region79: #{tpu_custom_call.1} parent=51 // pred_fallthru
          _
      $region52: #{tpu_custom_call.1} parent=5 // pred_fallthru
        _
      %p3909 = scmp.le.s32.totalorder 2, %s18
      // Predicated region
      $region80: #{tpu_custom_call.1} parent=5 // pred_check
        %p3910 = pneg %p3909
      $region81: #{tpu_custom_call.1} parent=5 // pred_check_branch
        %3912 = sbr.rel (%p3910) target = $region83
      $region82: #{tpu_custom_call.1} parent=5 // pred_region
        %s3913 = ssub.s32 %s18, 2
        // Predicated region
        $region84: #{tpu_custom_call.1} parent=82 // pred_check
          %p3914 = pneg %p229
        $region85: #{tpu_custom_call.1} parent=82 // pred_check_branch
          %3916 = sbr.rel (%p3914) target = $region87
        $region86: #{tpu_custom_call.1} parent=82 // pred_region
          %s3917 = sand.u32 %s214, 1
          %s3918 = scalar_lea.sflag [#allocation6], %s3917
          %s3919 = sand.u32 %s214, 1
          %s3920 = smul.addr %s3919, 128
          %s3921 = scalar_lea.vmem [#allocation5], %s3920
          %3923 = dma.done %s3918, 2048
        $region87: #{tpu_custom_call.1} parent=82 // pred_fallthru
          _
      $region83: #{tpu_custom_call.1} parent=5 // pred_fallthru
        _
    $region6: #{tpu_custom_call.1} parent=1 // loop_footer
      %s22 = sadd.s32 1, %s18
    $region7: #{tpu_custom_call.1} parent=1 // loop_footer_branch
      %17 = sbr.rel target = $region3
    $region8: #{tpu_custom_call.1} parent=1 // loop_exit
      _
    %3924 = vsyncpa [#allocation6], 1
    %s3925 = scalar_lea.sflag [#allocation6], 1
    %3926 = vsyncpa %s3925, 1
  %3927 = vsyncmov [#allocation4]
  %s3928 = vpop.sfrf %3927
  %p3929 = scmp.eq.s32.totalorder %s3928, 0
  %p3930 = pneg %p3929
  %3932 = shalt.err (%p3930)

</llo_original>
